<compile_context>
chip_gen: v6e
topology: v6e:2x2x1
jax: 0.10.0
libtpu: 0.0.40
codegen_flags: <defaults>
</compile_context>

<pallas_src>
import functools

import jax
import jax.numpy as jnp
from jax.experimental import pallas as pl
from jax.experimental.pallas import tpu as pltpu


def _round_up(n, m):
    return ((n + m - 1) // m) * m


def _lstm_layer_kernel(x_ref, wih_ref, whh_ref, b_ref,
                       out_ref, hn_ref, cn_ref,
                       pg_ref, *, seq_len, batch_pad, hidden_pad):
    """One LSTM layer, whole sequence, single kernel invocation (no grid).

    x_ref   : (T, Bp, Fp)  compute dtype (f32 or bf16)
    wih_ref : (Fp, 4*Hp)   compute dtype (pre-transposed, gate-block padded)
    whh_ref : (Hp, 4*Hp)   compute dtype (pre-transposed, gate-block padded)
    b_ref   : (1, 4*Hp)    float32 (b_ih + b_hh, gate-block padded)
    out_ref : (T, Bp, Hp)  compute dtype (hidden sequence, next layer's input)
    hn_ref  : (Bp, Hp)     float32 (final hidden state)
    cn_ref  : (Bp, Hp)     float32 (final cell state)
    pg_ref  : (T, Bp, 4*Hp) float32 scratch (hoisted input projection)
    """
    T, Bp, Hp = seq_len, batch_pad, hidden_pad
    Fp = x_ref.shape[-1]
    cdt = whh_ref.dtype

    # ---- Hoisted input projection over the whole sequence (one big matmul).
    x2d = x_ref[...].reshape(T * Bp, Fp)
    pg = jnp.dot(x2d, wih_ref[...], preferred_element_type=jnp.float32)
    pg = pg + b_ref[...]                              # (T*Bp, 4*Hp), f32
    pg_ref[...] = pg.reshape(T, Bp, 4 * Hp)

    # ---- Serial recurrence: only h_prev @ W_hh + elementwise gates per step.
    def step(t, carry):
        h, c = carry                                   # f32 carries
        gates = pg_ref[t] + jnp.dot(h.astype(cdt), whh_ref[...],
                                    preferred_element_type=jnp.float32)
        # Gate order i, f, g, o (PyTorch). Each slice is a full 128-lane block.
        i_g = jax.nn.sigmoid(gates[:, 0 * Hp:1 * Hp])
        f_g = jax.nn.sigmoid(gates[:, 1 * Hp:2 * Hp])
        g_g = jnp.tanh(gates[:, 2 * Hp:3 * Hp])
        o_g = jax.nn.sigmoid(gates[:, 3 * Hp:4 * Hp])
        c_new = f_g * c + i_g * g_g
        h_new = o_g * jnp.tanh(c_new)
        out_ref[t] = h_new.astype(out_ref.dtype)
        return h_new, c_new

    h0 = jnp.zeros((Bp, Hp), jnp.float32)
    c0 = jnp.zeros((Bp, Hp), jnp.float32)
    h_fin, c_fin = jax.lax.fori_loop(0, T, step, (h0, c0), unroll=True)

    hn_ref[...] = h_fin
    cn_ref[...] = c_fin


def lstm_layer(x_pad, w_ih_t, w_hh_t, bias):
    """Run one LSTM layer over the full (padded) sequence.

    x_pad  : (T, Bp, Fp) compute dtype
    w_ih_t : (Fp, 4*Hp)  compute dtype
    w_hh_t : (Hp, 4*Hp)  compute dtype
    bias   : (1, 4*Hp)   float32
    returns: out_seq (T, Bp, Hp) compute dtype, h_n (Bp, Hp) f32, c_n (Bp, Hp) f32
    """
    T, Bp, Fp = x_pad.shape
    Hp = w_hh_t.shape[0]
    assert w_hh_t.shape == (Hp, 4 * Hp)
    assert w_ih_t.shape == (Fp, 4 * Hp)
    assert bias.shape == (1, 4 * Hp)
    assert Bp % 8 == 0 and Hp % 128 == 0 and Fp % 128 == 0

    kernel = functools.partial(_lstm_layer_kernel, seq_len=T,
                               batch_pad=Bp, hidden_pad=Hp)

    out_shape = (
        jax.ShapeDtypeStruct((T, Bp, Hp), x_pad.dtype),   # hidden sequence
        jax.ShapeDtypeStruct((Bp, Hp), jnp.float32),      # final hidden state
        jax.ShapeDtypeStruct((Bp, Hp), jnp.float32),      # final cell state
    )
    vmem = pl.BlockSpec(memory_space=pltpu.MemorySpace.VMEM)

    # TODO(synk): for large B*H, expose a "parallel" batch grid axis so the
    # second TensorCore on v7x gets work, and consider fusing adjacent layers
    # into one pallas_call to keep inter-layer activations in VMEM.
    return pl.pallas_call(
        kernel,
        out_shape=out_shape,
        in_specs=[vmem, vmem, vmem, vmem],
        out_specs=(vmem, vmem, vmem),
        scratch_shapes=[pltpu.VMEM((T, Bp, 4 * Hp), jnp.float32)],
    )(x_pad, w_ih_t, w_hh_t, bias)


def _pack_lstm_weights(w_ih, w_hh, b_ih, b_hh, *, in_pad, hidden_pad, dtype):
    """Pre-transpose + gate-block pad PyTorch-layout LSTM weights (trace time).

    w_ih: (4H, F), w_hh: (4H, H), b_*: (4H,)  ->
    w_ih_t: (in_pad, 4*Hp), w_hh_t: (Hp, 4*Hp), bias: (1, 4*Hp)
    """
    fourH, F = w_ih.shape
    H = fourH // 4
    Hp = hidden_pad
    assert F <= in_pad and H <= Hp and w_hh.shape == (4 * H, H)

    w_ih_t = jnp.zeros((in_pad, 4 * Hp), jnp.float32)
    w_hh_t = jnp.zeros((Hp, 4 * Hp), jnp.float32)
    bias = jnp.zeros((1, 4 * Hp), jnp.float32)
    for g in range(4):  # gate order i, f, g, o
        w_ih_t = w_ih_t.at[:F, g * Hp:g * Hp + H].set(w_ih[g * H:(g + 1) * H, :].T)
        w_hh_t = w_hh_t.at[:H, g * Hp:g * Hp + H].set(w_hh[g * H:(g + 1) * H, :].T)
        bias = bias.at[0, g * Hp:g * Hp + H].set(
            b_ih[g * H:(g + 1) * H] + b_hh[g * H:(g + 1) * H])
    return w_ih_t.astype(dtype), w_hh_t.astype(dtype), bias


def init_encoder_params(key, input_size, embedding_size, hidden_size, num_layers):
    """Deterministic synthetic parameters matching nn.Embedding + nn.LSTM shapes."""
    keys = jax.random.split(key, 1 + 4 * num_layers)
    params = {"embedding": jax.random.normal(keys[0], (input_size, embedding_size),
                                             jnp.float32) * 0.1}
    layers = []
    for layer in range(num_layers):
        in_f = embedding_size if layer == 0 else hidden_size
        k = keys[1 + 4 * layer: 1 + 4 * (layer + 1)]
        scale = 1.0 / jnp.sqrt(hidden_size)
        layers.append({
            "w_ih": jax.random.uniform(k[0], (4 * hidden_size, in_f), jnp.float32,
                                       -scale, scale),
            "w_hh": jax.random.uniform(k[1], (4 * hidden_size, hidden_size),
                                       jnp.float32, -scale, scale),
            "b_ih": jax.random.uniform(k[2], (4 * hidden_size,), jnp.float32,
                                       -scale, scale),
            "b_hh": jax.random.uniform(k[3], (4 * hidden_size,), jnp.float32,
                                       -scale, scale),
        })
    params["layers"] = layers
    return params


def encoder_lstm_forward(params, x_tokens, *, compute_dtype=jnp.float32):
    """EncoderLSTM.forward: returns (hidden_state, cell_state), each (L, B, H).

    compute_dtype: dtype of matmul operands (bfloat16 for v6e/v7x MXU);
    gate math and h/c carries stay float32 inside the kernel.
    """
    # Embedding lookup (gather) + dropout (identity in eval) — plain JAX glue.
    emb = jnp.take(params["embedding"], x_tokens, axis=0)      # (T, B, E) f32
    T, B, E = emb.shape
    H = params["layers"][0]["w_hh"].shape[1]

    Bp = _round_up(B, 8)        # full sublanes
    Hp = _round_up(H, 128)      # full lanes (lane-dense gate slices / stores)
    Ep = _round_up(E, 128)

    x = jnp.zeros((T, Bp, Ep), jnp.float32).at[:, :B, :E].set(emb)
    x = x.astype(compute_dtype)

    h_list, c_list = [], []
    in_pad = Ep
    for lp in params["layers"]:
        w_ih_t, w_hh_t, bias = _pack_lstm_weights(
            lp["w_ih"], lp["w_hh"], lp["b_ih"], lp["b_hh"],
            in_pad=in_pad, hidden_pad=Hp, dtype=compute_dtype)
        x, h_n, c_n = lstm_layer(x, w_ih_t, w_hh_t, bias)
        # Inter-layer dropout is identity in eval mode.
        h_list.append(h_n[:B, :H])
        c_list.append(c_n[:B, :H])
        in_pad = Hp

    hidden_state = jnp.stack(h_list, axis=0)   # (num_layers, B, H)
    cell_state = jnp.stack(c_list, axis=0)     # (num_layers, B, H)
    return hidden_state, cell_state


def _reference_forward(params, x_tokens):
    """Pure-JAX reference (lax.scan LSTM, f32) for correctness checking."""
    emb = jnp.take(params["embedding"], x_tokens, axis=0)
    seq = emb
    h_list, c_list = [], []
    for lp in params["layers"]:
        H = lp["w_hh"].shape[1]
        b = lp["b_ih"] + lp["b_hh"]

        def step(carry, x_t, w_ih=lp["w_ih"], w_hh=lp["w_hh"], b=b, H=H):
            h, c = carry
            g = x_t @ w_ih.T + h @ w_hh.T + b
            i = jax.nn.sigmoid(g[:, 0 * H:1 * H])
            f = jax.nn.sigmoid(g[:, 1 * H:2 * H])
            gg = jnp.tanh(g[:, 2 * H:3 * H])
            o = jax.nn.sigmoid(g[:, 3 * H:4 * H])
            c = f * c + i * gg
            h = o * jnp.tanh(c)
            return (h, c), h

        B = seq.shape[1]
        init = (jnp.zeros((B, H), jnp.float32), jnp.zeros((B, H), jnp.float32))
        (h_n, c_n), out = jax.lax.scan(step, init, seq)
        seq = out
        h_list.append(h_n)
        c_list.append(c_n)
    return jnp.stack(h_list, 0), jnp.stack(c_list, 0)


if __name__ == "__main__":
    # Small shapes consistent with the module's forward.
    input_size = 50        # vocab
    embedding_size = 16
    hidden_size = 32
    num_layers = 2
    seq_len = 8
    batch = 2

    key = jax.random.PRNGKey(0)
    k_params, k_tokens = jax.random.split(key)
    params = init_encoder_params(k_params, input_size, embedding_size,
                                 hidden_size, num_layers)
    x_tokens = jax.random.randint(k_tokens, (seq_len, batch), 0, input_size,
                                  dtype=jnp.int32)

    # Float32 path — exactness check against the pure-JAX reference.
    hidden_state, cell_state = encoder_lstm_forward(params, x_tokens,
                                                    compute_dtype=jnp.float32)
    jax.block_until_ready((hidden_state, cell_state))
    h_ref, c_ref = _reference_forward(params, x_tokens)
    assert hidden_state.shape == (num_layers, batch, hidden_size)
    assert cell_state.shape == (num_layers, batch, hidden_size)
    assert jnp.allclose(hidden_state, h_ref, atol=1e-5, rtol=1e-5)
    assert jnp.allclose(cell_state, c_ref, atol=1e-5, rtol=1e-5)

    # bfloat16 matmul-operand path (v6e/v7x MXU-native); gate math stays f32.
    h_bf16, c_bf16 = encoder_lstm_forward(params, x_tokens,
                                          compute_dtype=jnp.bfloat16)
    jax.block_until_ready((h_bf16, c_bf16))
    assert jnp.allclose(h_bf16, h_ref, atol=5e-2, rtol=0)
    assert jnp.allclose(c_bf16, c_ref, atol=5e-2, rtol=0)

    print("KERNEL_OK")
</pallas_src>

<mosaic_0001>
module attributes {stable_mosaic.version = 11 : i64} {
  func.func @_lstm_layer_kernel(%arg0: memref<8x8x128xf32, #tpu.memory_space<vmem>>, %arg1: memref<128x512xf32, #tpu.memory_space<vmem>>, %arg2: memref<128x512xf32, #tpu.memory_space<vmem>>, %arg3: memref<1x512xf32, #tpu.memory_space<vmem>>, %arg4: memref<8x8x128xf32, #tpu.memory_space<vmem>>, %arg5: memref<8x128xf32, #tpu.memory_space<vmem>>, %arg6: memref<8x128xf32, #tpu.memory_space<vmem>>, %arg7: memref<8x8x512xf32, #tpu.memory_space<vmem>>) attributes {dimension_semantics = [], scalar_prefetch = 0 : i64, scratch_operands = 1 : i64, tpu.core_type = #tpu.core_type<tc>} {
    %c0 = arith.constant 0 : index
    %c0_0 = arith.constant 0 : index
    %c0_1 = arith.constant 0 : index
    %0 = vector.load %arg0[%c0, %c0_0, %c0_1] : memref<8x8x128xf32, #tpu.memory_space<vmem>>, vector<8x8x128xf32>
    %1 = vector.shape_cast %0 : vector<8x8x128xf32> to vector<64x128xf32>
    %c0_2 = arith.constant 0 : index
    %c0_3 = arith.constant 0 : index
    %2 = vector.load %arg1[%c0_2, %c0_3] : memref<128x512xf32, #tpu.memory_space<vmem>>, vector<128x512xf32>
    %cst = arith.constant dense<0.000000e+00> : vector<64x512xf32>
    %3 = tpu.matmul %1, %2, %cst {dimension_numbers = #tpu.dot_dimension_numbers<[1], [0], [0], [1], [0, 0, 1, 1], [], []>} : vector<64x128xf32>, vector<128x512xf32>, vector<64x512xf32> -> vector<64x512xf32>
    %c0_4 = arith.constant 0 : index
    %c0_5 = arith.constant 0 : index
    %4 = vector.load %arg3[%c0_4, %c0_5] : memref<1x512xf32, #tpu.memory_space<vmem>>, vector<1x512xf32>
    %5 = vector.broadcast %4 : vector<1x512xf32> to vector<64x512xf32>
    %6 = arith.addf %3, %5 : vector<64x512xf32>
    %7 = vector.shape_cast %6 : vector<64x512xf32> to vector<8x8x512xf32>
    %c0_6 = arith.constant 0 : index
    %c0_7 = arith.constant 0 : index
    %c0_8 = arith.constant 0 : index
    %8 = vector.load %arg7[%c0_6, %c0_7, %c0_8] : memref<8x8x512xf32, #tpu.memory_space<vmem>>, vector<8x8x512xf32>
    tpu.vector_store %arg7[%c0_6, %c0_7, %c0_8], %7 {strides = array<i32>} : memref<8x8x512xf32, #tpu.memory_space<vmem>>, vector<8x8x512xf32>,
    %cst_9 = arith.constant 0.000000e+00 : f32
    %9 = vector.broadcast %cst_9 : f32 to vector<8x128xf32>
    %cst_10 = arith.constant 0.000000e+00 : f32
    %10 = vector.broadcast %cst_10 : f32 to vector<8x128xf32>
    %c0_i32 = arith.constant 0 : i32
    %11 = arith.index_cast %c0_i32 : i32 to index
    %c0_11 = arith.constant 0 : index
    %c0_12 = arith.constant 0 : index
    %12 = vector.load %arg7[%11, %c0_11, %c0_12] : memref<8x8x512xf32, #tpu.memory_space<vmem>>, vector<1x8x512xf32>
    %13 = vector.shape_cast %12 : vector<1x8x512xf32> to vector<8x512xf32>
    %c0_13 = arith.constant 0 : index
    %c0_14 = arith.constant 0 : index
    %14 = vector.load %arg2[%c0_13, %c0_14] : memref<128x512xf32, #tpu.memory_space<vmem>>, vector<128x512xf32>
    %cst_15 = arith.constant dense<0.000000e+00> : vector<8x512xf32>
    %15 = tpu.matmul %9, %14, %cst_15 {dimension_numbers = #tpu.dot_dimension_numbers<[1], [0], [0], [1], [0, 0, 1, 1], [], []>} : vector<8x128xf32>, vector<128x512xf32>, vector<8x512xf32> -> vector<8x512xf32>
    %16 = arith.addf %13, %15 : vector<8x512xf32>
    %17 = vector.extract_strided_slice %16 {offsets = [0, 0], sizes = [8, 128], strides = [1, 1]} : vector<8x512xf32> to vector<8x128xf32>
    %18 = arith.negf %17 : vector<8x128xf32>
    %19 = math.exp %18 : vector<8x128xf32>
    %cst_16 = arith.constant 1.000000e+00 : f32
    %20 = vector.broadcast %cst_16 : f32 to vector<8x128xf32>
    %21 = arith.addf %20, %19 : vector<8x128xf32>
    %22 = arith.divf %20, %21 : vector<8x128xf32>
    %23 = vector.extract_strided_slice %16 {offsets = [0, 128], sizes = [8, 128], strides = [1, 1]} : vector<8x512xf32> to vector<8x128xf32>
    %24 = arith.negf %23 : vector<8x128xf32>
    %25 = math.exp %24 : vector<8x128xf32>
    %cst_17 = arith.constant 1.000000e+00 : f32
    %26 = vector.broadcast %cst_17 : f32 to vector<8x128xf32>
    %27 = arith.addf %26, %25 : vector<8x128xf32>
    %28 = arith.divf %26, %27 : vector<8x128xf32>
    %29 = vector.extract_strided_slice %16 {offsets = [0, 256], sizes = [8, 128], strides = [1, 1]} : vector<8x512xf32> to vector<8x128xf32>
    %30 = math.tanh %29 : vector<8x128xf32>
    %31 = vector.extract_strided_slice %16 {offsets = [0, 384], sizes = [8, 128], strides = [1, 1]} : vector<8x512xf32> to vector<8x128xf32>
    %32 = arith.negf %31 : vector<8x128xf32>
    %33 = math.exp %32 : vector<8x128xf32>
    %cst_18 = arith.constant 1.000000e+00 : f32
    %34 = vector.broadcast %cst_18 : f32 to vector<8x128xf32>
    %35 = arith.addf %34, %33 : vector<8x128xf32>
    %36 = arith.divf %34, %35 : vector<8x128xf32>
    %37 = arith.mulf %28, %10 : vector<8x128xf32>
    %38 = arith.mulf %22, %30 : vector<8x128xf32>
    %39 = arith.addf %37, %38 : vector<8x128xf32>
    %40 = math.tanh %39 : vector<8x128xf32>
    %41 = arith.mulf %36, %40 : vector<8x128xf32>
    %42 = arith.index_cast %c0_i32 : i32 to index
    %c0_19 = arith.constant 0 : index
    %c0_20 = arith.constant 0 : index
    %43 = vector.load %arg4[%42, %c0_19, %c0_20] : memref<8x8x128xf32, #tpu.memory_space<vmem>>, vector<1x8x128xf32>
    %44 = vector.shape_cast %43 : vector<1x8x128xf32> to vector<8x128xf32>
    %45 = vector.shape_cast %41 : vector<8x128xf32> to vector<1x8x128xf32>
    tpu.vector_store %arg4[%42, %c0_19, %c0_20], %45 {strides = array<i32>} : memref<8x8x128xf32, #tpu.memory_space<vmem>>, vector<1x8x128xf32>,
    %c1_i32 = arith.constant 1 : i32
    %46 = arith.index_cast %c1_i32 : i32 to index
    %c0_21 = arith.constant 0 : index
    %c0_22 = arith.constant 0 : index
    %47 = vector.load %arg7[%46, %c0_21, %c0_22] : memref<8x8x512xf32, #tpu.memory_space<vmem>>, vector<1x8x512xf32>
    %48 = vector.shape_cast %47 : vector<1x8x512xf32> to vector<8x512xf32>
    %c0_23 = arith.constant 0 : index
    %c0_24 = arith.constant 0 : index
    %49 = vector.load %arg2[%c0_23, %c0_24] : memref<128x512xf32, #tpu.memory_space<vmem>>, vector<128x512xf32>
    %cst_25 = arith.constant dense<0.000000e+00> : vector<8x512xf32>
    %50 = tpu.matmul %41, %49, %cst_25 {dimension_numbers = #tpu.dot_dimension_numbers<[1], [0], [0], [1], [0, 0, 1, 1], [], []>} : vector<8x128xf32>, vector<128x512xf32>, vector<8x512xf32> -> vector<8x512xf32>
    %51 = arith.addf %48, %50 : vector<8x512xf32>
    %52 = vector.extract_strided_slice %51 {offsets = [0, 0], sizes = [8, 128], strides = [1, 1]} : vector<8x512xf32> to vector<8x128xf32>
    %53 = arith.negf %52 : vector<8x128xf32>
    %54 = math.exp %53 : vector<8x128xf32>
    %cst_26 = arith.constant 1.000000e+00 : f32
    %55 = vector.broadcast %cst_26 : f32 to vector<8x128xf32>
    %56 = arith.addf %55, %54 : vector<8x128xf32>
    %57 = arith.divf %55, %56 : vector<8x128xf32>
    %58 = vector.extract_strided_slice %51 {offsets = [0, 128], sizes = [8, 128], strides = [1, 1]} : vector<8x512xf32> to vector<8x128xf32>
    %59 = arith.negf %58 : vector<8x128xf32>
    %60 = math.exp %59 : vector<8x128xf32>
    %cst_27 = arith.constant 1.000000e+00 : f32
    %61 = vector.broadcast %cst_27 : f32 to vector<8x128xf32>
    %62 = arith.addf %61, %60 : vector<8x128xf32>
    %63 = arith.divf %61, %62 : vector<8x128xf32>
    %64 = vector.extract_strided_slice %51 {offsets = [0, 256], sizes = [8, 128], strides = [1, 1]} : vector<8x512xf32> to vector<8x128xf32>
    %65 = math.tanh %64 : vector<8x128xf32>
    %66 = vector.extract_strided_slice %51 {offsets = [0, 384], sizes = [8, 128], strides = [1, 1]} : vector<8x512xf32> to vector<8x128xf32>
    %67 = arith.negf %66 : vector<8x128xf32>
    %68 = math.exp %67 : vector<8x128xf32>
    %cst_28 = arith.constant 1.000000e+00 : f32
    %69 = vector.broadcast %cst_28 : f32 to vector<8x128xf32>
    %70 = arith.addf %69, %68 : vector<8x128xf32>
    %71 = arith.divf %69, %70 : vector<8x128xf32>
    %72 = arith.mulf %63, %39 : vector<8x128xf32>
    %73 = arith.mulf %57, %65 : vector<8x128xf32>
    %74 = arith.addf %72, %73 : vector<8x128xf32>
    %75 = math.tanh %74 : vector<8x128xf32>
    %76 = arith.mulf %71, %75 : vector<8x128xf32>
    %77 = arith.index_cast %c1_i32 : i32 to index
    %c0_29 = arith.constant 0 : index
    %c0_30 = arith.constant 0 : index
    %78 = vector.load %arg4[%77, %c0_29, %c0_30] : memref<8x8x128xf32, #tpu.memory_space<vmem>>, vector<1x8x128xf32>
    %79 = vector.shape_cast %78 : vector<1x8x128xf32> to vector<8x128xf32>
    %80 = vector.shape_cast %76 : vector<8x128xf32> to vector<1x8x128xf32>
    tpu.vector_store %arg4[%77, %c0_29, %c0_30], %80 {strides = array<i32>} : memref<8x8x128xf32, #tpu.memory_space<vmem>>, vector<1x8x128xf32>,
    %c2_i32 = arith.constant 2 : i32
    %81 = arith.index_cast %c2_i32 : i32 to index
    %c0_31 = arith.constant 0 : index
    %c0_32 = arith.constant 0 : index
    %82 = vector.load %arg7[%81, %c0_31, %c0_32] : memref<8x8x512xf32, #tpu.memory_space<vmem>>, vector<1x8x512xf32>
    %83 = vector.shape_cast %82 : vector<1x8x512xf32> to vector<8x512xf32>
    %c0_33 = arith.constant 0 : index
    %c0_34 = arith.constant 0 : index
    %84 = vector.load %arg2[%c0_33, %c0_34] : memref<128x512xf32, #tpu.memory_space<vmem>>, vector<128x512xf32>
    %cst_35 = arith.constant dense<0.000000e+00> : vector<8x512xf32>
    %85 = tpu.matmul %76, %84, %cst_35 {dimension_numbers = #tpu.dot_dimension_numbers<[1], [0], [0], [1], [0, 0, 1, 1], [], []>} : vector<8x128xf32>, vector<128x512xf32>, vector<8x512xf32> -> vector<8x512xf32>
    %86 = arith.addf %83, %85 : vector<8x512xf32>
    %87 = vector.extract_strided_slice %86 {offsets = [0, 0], sizes = [8, 128], strides = [1, 1]} : vector<8x512xf32> to vector<8x128xf32>
    %88 = arith.negf %87 : vector<8x128xf32>
    %89 = math.exp %88 : vector<8x128xf32>
    %cst_36 = arith.constant 1.000000e+00 : f32
    %90 = vector.broadcast %cst_36 : f32 to vector<8x128xf32>
    %91 = arith.addf %90, %89 : vector<8x128xf32>
    %92 = arith.divf %90, %91 : vector<8x128xf32>
    %93 = vector.extract_strided_slice %86 {offsets = [0, 128], sizes = [8, 128], strides = [1, 1]} : vector<8x512xf32> to vector<8x128xf32>
    %94 = arith.negf %93 : vector<8x128xf32>
    %95 = math.exp %94 : vector<8x128xf32>
    %cst_37 = arith.constant 1.000000e+00 : f32
    %96 = vector.broadcast %cst_37 : f32 to vector<8x128xf32>
    %97 = arith.addf %96, %95 : vector<8x128xf32>
    %98 = arith.divf %96, %97 : vector<8x128xf32>
    %99 = vector.extract_strided_slice %86 {offsets = [0, 256], sizes = [8, 128], strides = [1, 1]} : vector<8x512xf32> to vector<8x128xf32>
    %100 = math.tanh %99 : vector<8x128xf32>
    %101 = vector.extract_strided_slice %86 {offsets = [0, 384], sizes = [8, 128], strides = [1, 1]} : vector<8x512xf32> to vector<8x128xf32>
    %102 = arith.negf %101 : vector<8x128xf32>
    %103 = math.exp %102 : vector<8x128xf32>
    %cst_38 = arith.constant 1.000000e+00 : f32
    %104 = vector.broadcast %cst_38 : f32 to vector<8x128xf32>
    %105 = arith.addf %104, %103 : vector<8x128xf32>
    %106 = arith.divf %104, %105 : vector<8x128xf32>
    %107 = arith.mulf %98, %74 : vector<8x128xf32>
    %108 = arith.mulf %92, %100 : vector<8x128xf32>
    %109 = arith.addf %107, %108 : vector<8x128xf32>
    %110 = math.tanh %109 : vector<8x128xf32>
    %111 = arith.mulf %106, %110 : vector<8x128xf32>
    %112 = arith.index_cast %c2_i32 : i32 to index
    %c0_39 = arith.constant 0 : index
    %c0_40 = arith.constant 0 : index
    %113 = vector.load %arg4[%112, %c0_39, %c0_40] : memref<8x8x128xf32, #tpu.memory_space<vmem>>, vector<1x8x128xf32>
    %114 = vector.shape_cast %113 : vector<1x8x128xf32> to vector<8x128xf32>
    %115 = vector.shape_cast %111 : vector<8x128xf32> to vector<1x8x128xf32>
    tpu.vector_store %arg4[%112, %c0_39, %c0_40], %115 {strides = array<i32>} : memref<8x8x128xf32, #tpu.memory_space<vmem>>, vector<1x8x128xf32>,
    %c3_i32 = arith.constant 3 : i32
    %116 = arith.index_cast %c3_i32 : i32 to index
    %c0_41 = arith.constant 0 : index
    %c0_42 = arith.constant 0 : index
    %117 = vector.load %arg7[%116, %c0_41, %c0_42] : memref<8x8x512xf32, #tpu.memory_space<vmem>>, vector<1x8x512xf32>
    %118 = vector.shape_cast %117 : vector<1x8x512xf32> to vector<8x512xf32>
    %c0_43 = arith.constant 0 : index
    %c0_44 = arith.constant 0 : index
    %119 = vector.load %arg2[%c0_43, %c0_44] : memref<128x512xf32, #tpu.memory_space<vmem>>, vector<128x512xf32>
    %cst_45 = arith.constant dense<0.000000e+00> : vector<8x512xf32>
    %120 = tpu.matmul %111, %119, %cst_45 {dimension_numbers = #tpu.dot_dimension_numbers<[1], [0], [0], [1], [0, 0, 1, 1], [], []>} : vector<8x128xf32>, vector<128x512xf32>, vector<8x512xf32> -> vector<8x512xf32>
    %121 = arith.addf %118, %120 : vector<8x512xf32>
    %122 = vector.extract_strided_slice %121 {offsets = [0, 0], sizes = [8, 128], strides = [1, 1]} : vector<8x512xf32> to vector<8x128xf32>
    %123 = arith.negf %122 : vector<8x128xf32>
    %124 = math.exp %123 : vector<8x128xf32>
    %cst_46 = arith.constant 1.000000e+00 : f32
    %125 = vector.broadcast %cst_46 : f32 to vector<8x128xf32>
    %126 = arith.addf %125, %124 : vector<8x128xf32>
    %127 = arith.divf %125, %126 : vector<8x128xf32>
    %128 = vector.extract_strided_slice %121 {offsets = [0, 128], sizes = [8, 128], strides = [1, 1]} : vector<8x512xf32> to vector<8x128xf32>
    %129 = arith.negf %128 : vector<8x128xf32>
    %130 = math.exp %129 : vector<8x128xf32>
    %cst_47 = arith.constant 1.000000e+00 : f32
    %131 = vector.broadcast %cst_47 : f32 to vector<8x128xf32>
    %132 = arith.addf %131, %130 : vector<8x128xf32>
    %133 = arith.divf %131, %132 : vector<8x128xf32>
    %134 = vector.extract_strided_slice %121 {offsets = [0, 256], sizes = [8, 128], strides = [1, 1]} : vector<8x512xf32> to vector<8x128xf32>
    %135 = math.tanh %134 : vector<8x128xf32>
    %136 = vector.extract_strided_slice %121 {offsets = [0, 384], sizes = [8, 128], strides = [1, 1]} : vector<8x512xf32> to vector<8x128xf32>
    %137 = arith.negf %136 : vector<8x128xf32>
    %138 = math.exp %137 : vector<8x128xf32>
    %cst_48 = arith.constant 1.000000e+00 : f32
    %139 = vector.broadcast %cst_48 : f32 to vector<8x128xf32>
    %140 = arith.addf %139, %138 : vector<8x128xf32>
    %141 = arith.divf %139, %140 : vector<8x128xf32>
    %142 = arith.mulf %133, %109 : vector<8x128xf32>
    %143 = arith.mulf %127, %135 : vector<8x128xf32>
    %144 = arith.addf %142, %143 : vector<8x128xf32>
    %145 = math.tanh %144 : vector<8x128xf32>
    %146 = arith.mulf %141, %145 : vector<8x128xf32>
    %147 = arith.index_cast %c3_i32 : i32 to index
    %c0_49 = arith.constant 0 : index
    %c0_50 = arith.constant 0 : index
    %148 = vector.load %arg4[%147, %c0_49, %c0_50] : memref<8x8x128xf32, #tpu.memory_space<vmem>>, vector<1x8x128xf32>
    %149 = vector.shape_cast %148 : vector<1x8x128xf32> to vector<8x128xf32>
    %150 = vector.shape_cast %146 : vector<8x128xf32> to vector<1x8x128xf32>
    tpu.vector_store %arg4[%147, %c0_49, %c0_50], %150 {strides = array<i32>} : memref<8x8x128xf32, #tpu.memory_space<vmem>>, vector<1x8x128xf32>,
    %c4_i32 = arith.constant 4 : i32
    %151 = arith.index_cast %c4_i32 : i32 to index
    %c0_51 = arith.constant 0 : index
    %c0_52 = arith.constant 0 : index
    %152 = vector.load %arg7[%151, %c0_51, %c0_52] : memref<8x8x512xf32, #tpu.memory_space<vmem>>, vector<1x8x512xf32>
    %153 = vector.shape_cast %152 : vector<1x8x512xf32> to vector<8x512xf32>
    %c0_53 = arith.constant 0 : index
    %c0_54 = arith.constant 0 : index
    %154 = vector.load %arg2[%c0_53, %c0_54] : memref<128x512xf32, #tpu.memory_space<vmem>>, vector<128x512xf32>
    %cst_55 = arith.constant dense<0.000000e+00> : vector<8x512xf32>
    %155 = tpu.matmul %146, %154, %cst_55 {dimension_numbers = #tpu.dot_dimension_numbers<[1], [0], [0], [1], [0, 0, 1, 1], [], []>} : vector<8x128xf32>, vector<128x512xf32>, vector<8x512xf32> -> vector<8x512xf32>
    %156 = arith.addf %153, %155 : vector<8x512xf32>
    %157 = vector.extract_strided_slice %156 {offsets = [0, 0], sizes = [8, 128], strides = [1, 1]} : vector<8x512xf32> to vector<8x128xf32>
    %158 = arith.negf %157 : vector<8x128xf32>
    %159 = math.exp %158 : vector<8x128xf32>
    %cst_56 = arith.constant 1.000000e+00 : f32
    %160 = vector.broadcast %cst_56 : f32 to vector<8x128xf32>
    %161 = arith.addf %160, %159 : vector<8x128xf32>
    %162 = arith.divf %160, %161 : vector<8x128xf32>
    %163 = vector.extract_strided_slice %156 {offsets = [0, 128], sizes = [8, 128], strides = [1, 1]} : vector<8x512xf32> to vector<8x128xf32>
    %164 = arith.negf %163 : vector<8x128xf32>
    %165 = math.exp %164 : vector<8x128xf32>
    %cst_57 = arith.constant 1.000000e+00 : f32
    %166 = vector.broadcast %cst_57 : f32 to vector<8x128xf32>
    %167 = arith.addf %166, %165 : vector<8x128xf32>
    %168 = arith.divf %166, %167 : vector<8x128xf32>
    %169 = vector.extract_strided_slice %156 {offsets = [0, 256], sizes = [8, 128], strides = [1, 1]} : vector<8x512xf32> to vector<8x128xf32>
    %170 = math.tanh %169 : vector<8x128xf32>
    %171 = vector.extract_strided_slice %156 {offsets = [0, 384], sizes = [8, 128], strides = [1, 1]} : vector<8x512xf32> to vector<8x128xf32>
    %172 = arith.negf %171 : vector<8x128xf32>
    %173 = math.exp %172 : vector<8x128xf32>
    %cst_58 = arith.constant 1.000000e+00 : f32
    %174 = vector.broadcast %cst_58 : f32 to vector<8x128xf32>
    %175 = arith.addf %174, %173 : vector<8x128xf32>
    %176 = arith.divf %174, %175 : vector<8x128xf32>
    %177 = arith.mulf %168, %144 : vector<8x128xf32>
    %178 = arith.mulf %162, %170 : vector<8x128xf32>
    %179 = arith.addf %177, %178 : vector<8x128xf32>
    %180 = math.tanh %179 : vector<8x128xf32>
    %181 = arith.mulf %176, %180 : vector<8x128xf32>
    %182 = arith.index_cast %c4_i32 : i32 to index
    %c0_59 = arith.constant 0 : index
    %c0_60 = arith.constant 0 : index
    %183 = vector.load %arg4[%182, %c0_59, %c0_60] : memref<8x8x128xf32, #tpu.memory_space<vmem>>, vector<1x8x128xf32>
    %184 = vector.shape_cast %183 : vector<1x8x128xf32> to vector<8x128xf32>
    %185 = vector.shape_cast %181 : vector<8x128xf32> to vector<1x8x128xf32>
    tpu.vector_store %arg4[%182, %c0_59, %c0_60], %185 {strides = array<i32>} : memref<8x8x128xf32, #tpu.memory_space<vmem>>, vector<1x8x128xf32>,
    %c5_i32 = arith.constant 5 : i32
    %186 = arith.index_cast %c5_i32 : i32 to index
    %c0_61 = arith.constant 0 : index
    %c0_62 = arith.constant 0 : index
    %187 = vector.load %arg7[%186, %c0_61, %c0_62] : memref<8x8x512xf32, #tpu.memory_space<vmem>>, vector<1x8x512xf32>
    %188 = vector.shape_cast %187 : vector<1x8x512xf32> to vector<8x512xf32>
    %c0_63 = arith.constant 0 : index
    %c0_64 = arith.constant 0 : index
    %189 = vector.load %arg2[%c0_63, %c0_64] : memref<128x512xf32, #tpu.memory_space<vmem>>, vector<128x512xf32>
    %cst_65 = arith.constant dense<0.000000e+00> : vector<8x512xf32>
    %190 = tpu.matmul %181, %189, %cst_65 {dimension_numbers = #tpu.dot_dimension_numbers<[1], [0], [0], [1], [0, 0, 1, 1], [], []>} : vector<8x128xf32>, vector<128x512xf32>, vector<8x512xf32> -> vector<8x512xf32>
    %191 = arith.addf %188, %190 : vector<8x512xf32>
    %192 = vector.extract_strided_slice %191 {offsets = [0, 0], sizes = [8, 128], strides = [1, 1]} : vector<8x512xf32> to vector<8x128xf32>
    %193 = arith.negf %192 : vector<8x128xf32>
    %194 = math.exp %193 : vector<8x128xf32>
    %cst_66 = arith.constant 1.000000e+00 : f32
    %195 = vector.broadcast %cst_66 : f32 to vector<8x128xf32>
    %196 = arith.addf %195, %194 : vector<8x128xf32>
    %197 = arith.divf %195, %196 : vector<8x128xf32>
    %198 = vector.extract_strided_slice %191 {offsets = [0, 128], sizes = [8, 128], strides = [1, 1]} : vector<8x512xf32> to vector<8x128xf32>
    %199 = arith.negf %198 : vector<8x128xf32>
    %200 = math.exp %199 : vector<8x128xf32>
    %cst_67 = arith.constant 1.000000e+00 : f32
    %201 = vector.broadcast %cst_67 : f32 to vector<8x128xf32>
    %202 = arith.addf %201, %200 : vector<8x128xf32>
    %203 = arith.divf %201, %202 : vector<8x128xf32>
    %204 = vector.extract_strided_slice %191 {offsets = [0, 256], sizes = [8, 128], strides = [1, 1]} : vector<8x512xf32> to vector<8x128xf32>
    %205 = math.tanh %204 : vector<8x128xf32>
    %206 = vector.extract_strided_slice %191 {offsets = [0, 384], sizes = [8, 128], strides = [1, 1]} : vector<8x512xf32> to vector<8x128xf32>
    %207 = arith.negf %206 : vector<8x128xf32>
    %208 = math.exp %207 : vector<8x128xf32>
    %cst_68 = arith.constant 1.000000e+00 : f32
    %209 = vector.broadcast %cst_68 : f32 to vector<8x128xf32>
    %210 = arith.addf %209, %208 : vector<8x128xf32>
    %211 = arith.divf %209, %210 : vector<8x128xf32>
    %212 = arith.mulf %203, %179 : vector<8x128xf32>
    %213 = arith.mulf %197, %205 : vector<8x128xf32>
    %214 = arith.addf %212, %213 : vector<8x128xf32>
    %215 = math.tanh %214 : vector<8x128xf32>
    %216 = arith.mulf %211, %215 : vector<8x128xf32>
    %217 = arith.index_cast %c5_i32 : i32 to index
    %c0_69 = arith.constant 0 : index
    %c0_70 = arith.constant 0 : index
    %218 = vector.load %arg4[%217, %c0_69, %c0_70] : memref<8x8x128xf32, #tpu.memory_space<vmem>>, vector<1x8x128xf32>
    %219 = vector.shape_cast %218 : vector<1x8x128xf32> to vector<8x128xf32>
    %220 = vector.shape_cast %216 : vector<8x128xf32> to vector<1x8x128xf32>
    tpu.vector_store %arg4[%217, %c0_69, %c0_70], %220 {strides = array<i32>} : memref<8x8x128xf32, #tpu.memory_space<vmem>>, vector<1x8x128xf32>,
    %c6_i32 = arith.constant 6 : i32
    %221 = arith.index_cast %c6_i32 : i32 to index
    %c0_71 = arith.constant 0 : index
    %c0_72 = arith.constant 0 : index
    %222 = vector.load %arg7[%221, %c0_71, %c0_72] : memref<8x8x512xf32, #tpu.memory_space<vmem>>, vector<1x8x512xf32>
    %223 = vector.shape_cast %222 : vector<1x8x512xf32> to vector<8x512xf32>
    %c0_73 = arith.constant 0 : index
    %c0_74 = arith.constant 0 : index
    %224 = vector.load %arg2[%c0_73, %c0_74] : memref<128x512xf32, #tpu.memory_space<vmem>>, vector<128x512xf32>
    %cst_75 = arith.constant dense<0.000000e+00> : vector<8x512xf32>
    %225 = tpu.matmul %216, %224, %cst_75 {dimension_numbers = #tpu.dot_dimension_numbers<[1], [0], [0], [1], [0, 0, 1, 1], [], []>} : vector<8x128xf32>, vector<128x512xf32>, vector<8x512xf32> -> vector<8x512xf32>
    %226 = arith.addf %223, %225 : vector<8x512xf32>
    %227 = vector.extract_strided_slice %226 {offsets = [0, 0], sizes = [8, 128], strides = [1, 1]} : vector<8x512xf32> to vector<8x128xf32>
    %228 = arith.negf %227 : vector<8x128xf32>
    %229 = math.exp %228 : vector<8x128xf32>
    %cst_76 = arith.constant 1.000000e+00 : f32
    %230 = vector.broadcast %cst_76 : f32 to vector<8x128xf32>
    %231 = arith.addf %230, %229 : vector<8x128xf32>
    %232 = arith.divf %230, %231 : vector<8x128xf32>
    %233 = vector.extract_strided_slice %226 {offsets = [0, 128], sizes = [8, 128], strides = [1, 1]} : vector<8x512xf32> to vector<8x128xf32>
    %234 = arith.negf %233 : vector<8x128xf32>
    %235 = math.exp %234 : vector<8x128xf32>
    %cst_77 = arith.constant 1.000000e+00 : f32
    %236 = vector.broadcast %cst_77 : f32 to vector<8x128xf32>
    %237 = arith.addf %236, %235 : vector<8x128xf32>
    %238 = arith.divf %236, %237 : vector<8x128xf32>
    %239 = vector.extract_strided_slice %226 {offsets = [0, 256], sizes = [8, 128], strides = [1, 1]} : vector<8x512xf32> to vector<8x128xf32>
    %240 = math.tanh %239 : vector<8x128xf32>
    %241 = vector.extract_strided_slice %226 {offsets = [0, 384], sizes = [8, 128], strides = [1, 1]} : vector<8x512xf32> to vector<8x128xf32>
    %242 = arith.negf %241 : vector<8x128xf32>
    %243 = math.exp %242 : vector<8x128xf32>
    %cst_78 = arith.constant 1.000000e+00 : f32
    %244 = vector.broadcast %cst_78 : f32 to vector<8x128xf32>
    %245 = arith.addf %244, %243 : vector<8x128xf32>
    %246 = arith.divf %244, %245 : vector<8x128xf32>
    %247 = arith.mulf %238, %214 : vector<8x128xf32>
    %248 = arith.mulf %232, %240 : vector<8x128xf32>
    %249 = arith.addf %247, %248 : vector<8x128xf32>
    %250 = math.tanh %249 : vector<8x128xf32>
    %251 = arith.mulf %246, %250 : vector<8x128xf32>
    %252 = arith.index_cast %c6_i32 : i32 to index
    %c0_79 = arith.constant 0 : index
    %c0_80 = arith.constant 0 : index
    %253 = vector.load %arg4[%252, %c0_79, %c0_80] : memref<8x8x128xf32, #tpu.memory_space<vmem>>, vector<1x8x128xf32>
    %254 = vector.shape_cast %253 : vector<1x8x128xf32> to vector<8x128xf32>
    %255 = vector.shape_cast %251 : vector<8x128xf32> to vector<1x8x128xf32>
    tpu.vector_store %arg4[%252, %c0_79, %c0_80], %255 {strides = array<i32>} : memref<8x8x128xf32, #tpu.memory_space<vmem>>, vector<1x8x128xf32>,
    %c7_i32 = arith.constant 7 : i32
    %256 = arith.index_cast %c7_i32 : i32 to index
    %c0_81 = arith.constant 0 : index
    %c0_82 = arith.constant 0 : index
    %257 = vector.load %arg7[%256, %c0_81, %c0_82] : memref<8x8x512xf32, #tpu.memory_space<vmem>>, vector<1x8x512xf32>
    %258 = vector.shape_cast %257 : vector<1x8x512xf32> to vector<8x512xf32>
    %c0_83 = arith.constant 0 : index
    %c0_84 = arith.constant 0 : index
    %259 = vector.load %arg2[%c0_83, %c0_84] : memref<128x512xf32, #tpu.memory_space<vmem>>, vector<128x512xf32>
    %cst_85 = arith.constant dense<0.000000e+00> : vector<8x512xf32>
    %260 = tpu.matmul %251, %259, %cst_85 {dimension_numbers = #tpu.dot_dimension_numbers<[1], [0], [0], [1], [0, 0, 1, 1], [], []>} : vector<8x128xf32>, vector<128x512xf32>, vector<8x512xf32> -> vector<8x512xf32>
    %261 = arith.addf %258, %260 : vector<8x512xf32>
    %262 = vector.extract_strided_slice %261 {offsets = [0, 0], sizes = [8, 128], strides = [1, 1]} : vector<8x512xf32> to vector<8x128xf32>
    %263 = arith.negf %262 : vector<8x128xf32>
    %264 = math.exp %263 : vector<8x128xf32>
    %cst_86 = arith.constant 1.000000e+00 : f32
    %265 = vector.broadcast %cst_86 : f32 to vector<8x128xf32>
    %266 = arith.addf %265, %264 : vector<8x128xf32>
    %267 = arith.divf %265, %266 : vector<8x128xf32>
    %268 = vector.extract_strided_slice %261 {offsets = [0, 128], sizes = [8, 128], strides = [1, 1]} : vector<8x512xf32> to vector<8x128xf32>
    %269 = arith.negf %268 : vector<8x128xf32>
    %270 = math.exp %269 : vector<8x128xf32>
    %cst_87 = arith.constant 1.000000e+00 : f32
    %271 = vector.broadcast %cst_87 : f32 to vector<8x128xf32>
    %272 = arith.addf %271, %270 : vector<8x128xf32>
    %273 = arith.divf %271, %272 : vector<8x128xf32>
    %274 = vector.extract_strided_slice %261 {offsets = [0, 256], sizes = [8, 128], strides = [1, 1]} : vector<8x512xf32> to vector<8x128xf32>
    %275 = math.tanh %274 : vector<8x128xf32>
    %276 = vector.extract_strided_slice %261 {offsets = [0, 384], sizes = [8, 128], strides = [1, 1]} : vector<8x512xf32> to vector<8x128xf32>
    %277 = arith.negf %276 : vector<8x128xf32>
    %278 = math.exp %277 : vector<8x128xf32>
    %cst_88 = arith.constant 1.000000e+00 : f32
    %279 = vector.broadcast %cst_88 : f32 to vector<8x128xf32>
    %280 = arith.addf %279, %278 : vector<8x128xf32>
    %281 = arith.divf %279, %280 : vector<8x128xf32>
    %282 = arith.mulf %273, %249 : vector<8x128xf32>
    %283 = arith.mulf %267, %275 : vector<8x128xf32>
    %284 = arith.addf %282, %283 : vector<8x128xf32>
    %285 = math.tanh %284 : vector<8x128xf32>
    %286 = arith.mulf %281, %285 : vector<8x128xf32>
    %287 = arith.index_cast %c7_i32 : i32 to index
    %c0_89 = arith.constant 0 : index
    %c0_90 = arith.constant 0 : index
    %288 = vector.load %arg4[%287, %c0_89, %c0_90] : memref<8x8x128xf32, #tpu.memory_space<vmem>>, vector<1x8x128xf32>
    %289 = vector.shape_cast %288 : vector<1x8x128xf32> to vector<8x128xf32>
    %290 = vector.shape_cast %286 : vector<8x128xf32> to vector<1x8x128xf32>
    tpu.vector_store %arg4[%287, %c0_89, %c0_90], %290 {strides = array<i32>} : memref<8x8x128xf32, #tpu.memory_space<vmem>>, vector<1x8x128xf32>,
    %c8_i32 = arith.constant 8 : i32
    %c0_91 = arith.constant 0 : index
    %c0_92 = arith.constant 0 : index
    %291 = vector.load %arg5[%c0_91, %c0_92] : memref<8x128xf32, #tpu.memory_space<vmem>>, vector<8x128xf32>
    tpu.vector_store %arg5[%c0_91, %c0_92], %286 {strides = array<i32>} : memref<8x128xf32, #tpu.memory_space<vmem>>, vector<8x128xf32>,
    %c0_93 = arith.constant 0 : index
    %c0_94 = arith.constant 0 : index
    %292 = vector.load %arg6[%c0_93, %c0_94] : memref<8x128xf32, #tpu.memory_space<vmem>>, vector<8x128xf32>
    tpu.vector_store %arg6[%c0_93, %c0_94], %284 {strides = array<i32>} : memref<8x128xf32, #tpu.memory_space<vmem>>, vector<8x128xf32>,
    return
  }
}

</mosaic_0001>

<llo_original>
// kernel: tpu_custom_call.1
$region0: #{tpu_custom_call.1}
  #allocation0 [shape = 'u32[]', space=smem, size = 0x4, offset = 0x4, fixed_abs, tag = 'smem constant byte address 0x4 - core index']
  #allocation1 [shape = 'u32[144,128]{1,0:T(1,128)}', space=vmem, size = 0x12000, scoped, tag = 'internal scratch']
  #allocation2 [shape = 'f32[8,8,512]{2,1,0:T(8,128)}', space=vmem, size = 0x20000, scoped, tag = 'scratch operand']
  %s0 = inlined_call_operand.hbm [shape: f32[8,8,128], index: 0, kind: input, shape index: {}]
  %s1 = inlined_call_operand.hbm [shape: f32[128,512], index: 1, kind: input, shape index: {}]
  %s2 = inlined_call_operand.hbm [shape: f32[128,512], index: 2, kind: input, shape index: {}]
  %s3 = inlined_call_operand.vmem [shape: f32[1,512], index: 3, kind: input, shape index: {}]
  %s4 = inlined_call_operand.hbm [shape: f32[8,8,128], index: 4, kind: output, shape index: {0}]
  %s5 = inlined_call_operand.hbm [shape: f32[8,128], index: 5, kind: output, shape index: {1}]
  %s6 = inlined_call_operand.hbm [shape: f32[8,128], index: 6, kind: output, shape index: {2}]
  %7 = xla_tuple %s4, %s5, %s6
  %s8 = sld [smem:[#allocation0]]
  $region54: #{tpu_custom_call.1} parent=0
    _
  %s10 = ssub.s32 1, %s8
  %s11 = scalar_select 0, %s10, %s8
  $region1: #{tpu_custom_call.1} parent=0
    #allocation3 [shape = 'u8[32768]{0}', space=vmem, size = 0x8000, scoped, tag = 'input window, operand 0, single buffered']
    #allocation4 [shape = 's32[1]{0}', space=sflag, size = 0x4, scoped, tag = 'scoped memory for tpu_custom_call.1']
    #allocation5 [shape = 's32[1]{0}', space=sflag, size = 0x4, scoped, tag = 'scoped memory for tpu_custom_call.1']
    #allocation6 [shape = 'u8[262144]{0}', space=vmem, size = 0x40000, scoped, tag = 'input window, operand 1, single buffered']
    #allocation7 [shape = 's32[1]{0}', space=sflag, size = 0x4, scoped, tag = 'scoped memory for tpu_custom_call.1']
    #allocation8 [shape = 'u8[262144]{0}', space=vmem, size = 0x40000, scoped, tag = 'input window, operand 2, single buffered']
    #allocation9 [shape = 'u8[32768]{0}', space=vmem, size = 0x8000, scoped, tag = 'output window, operand 0, single buffered']
    #allocation10 [shape = 'u8[4096]{0}', space=vmem, size = 0x1000, scoped, tag = 'output window, operand 1, single buffered']
    #allocation11 [shape = 's32[1]{0}', space=sflag, size = 0x4, scoped, tag = 'scoped memory for tpu_custom_call.1']
    #allocation12 [shape = 'u8[4096]{0}', space=vmem, size = 0x1000, scoped, tag = 'output window, operand 2, single buffered']
    %12 = vsyncpa [#allocation4], 0
    %13 = vsyncpa [#allocation7], 0
    %14 = vsyncpa [#allocation5], 0
    %15 = vsyncpa [#allocation11], 0
    // Predicated region
    $region2: #{tpu_custom_call.1} parent=1 // pred_check
      _
    $region3: #{tpu_custom_call.1} parent=1 // pred_check_branch
      %17 = sbr.rel (0) target = $region5
    $region4: #{tpu_custom_call.1} parent=1 // pred_region
      %s19 = ssub.s32 1024, 1024
      %20 = vsyncadd [#allocation4], %s19
      %s21 = sshll.u32 [#allocation3], 4
      %s22 = int_to_ptr.vmem [resolvable:$true] %s21
      %27 = dma.hbm_to_vmem [thread:$0]  %s0, 1024, %s22, [#allocation4], 128, 128, 8
    $region5: #{tpu_custom_call.1} parent=1 // pred_fallthru
      _
    // Predicated region
    $region6: #{tpu_custom_call.1} parent=1 // pred_check
      _
    $region7: #{tpu_custom_call.1} parent=1 // pred_check_branch
      %29 = sbr.rel (0) target = $region9
    $region8: #{tpu_custom_call.1} parent=1 // pred_region
      %s31 = ssub.s32 8192, 8192
      %32 = vsyncadd [#allocation7], %s31
      %s33 = sshll.u32 [#allocation6], 4
      %s34 = int_to_ptr.vmem [resolvable:$true] %s33
      %39 = dma.hbm_to_vmem [thread:$0]  %s1, 8192, %s34, [#allocation7], 512, 512, 32
    $region9: #{tpu_custom_call.1} parent=1 // pred_fallthru
      _
    // Predicated region
    $region10: #{tpu_custom_call.1} parent=1 // pred_check
      _
    $region11: #{tpu_custom_call.1} parent=1 // pred_check_branch
      %41 = sbr.rel (0) target = $region13
    $region12: #{tpu_custom_call.1} parent=1 // pred_region
      %s43 = ssub.s32 8192, 8192
      %44 = vsyncadd [#allocation7], %s43
      %s45 = sshll.u32 [#allocation8], 4
      %s46 = int_to_ptr.vmem [resolvable:$true] %s45
      %51 = dma.hbm_to_vmem [thread:$0]  %s2, 8192, %s46, [#allocation7], 512, 512, 32
    $region13: #{tpu_custom_call.1} parent=1 // pred_fallthru
      _
    // Predicated region
    $region14: #{tpu_custom_call.1} parent=1 // pred_check
      _
    $region15: #{tpu_custom_call.1} parent=1 // pred_check_branch
      %53 = sbr.rel (0) target = $region17
    $region16: #{tpu_custom_call.1} parent=1 // pred_region
      _
    $region17: #{tpu_custom_call.1} parent=1 // pred_fallthru
      _
    // Predicated region
    $region18: #{tpu_custom_call.1} parent=1 // pred_check
      _
    $region19: #{tpu_custom_call.1} parent=1 // pred_check_branch
      %55 = sbr.rel (0) target = $region21
    $region20: #{tpu_custom_call.1} parent=1 // pred_region
      %56 = dma.done [#allocation4], 1024
    $region21: #{tpu_custom_call.1} parent=1 // pred_fallthru
      _
    // Predicated region
    $region22: #{tpu_custom_call.1} parent=1 // pred_check
      _
    $region23: #{tpu_custom_call.1} parent=1 // pred_check_branch
      %58 = sbr.rel (0) target = $region25
    $region24: #{tpu_custom_call.1} parent=1 // pred_region
      %59 = dma.done [#allocation7], 8192
    $region25: #{tpu_custom_call.1} parent=1 // pred_fallthru
      _
    // Predicated region
    $region26: #{tpu_custom_call.1} parent=1 // pred_check
      _
    $region27: #{tpu_custom_call.1} parent=1 // pred_check_branch
      %61 = sbr.rel (0) target = $region29
    $region28: #{tpu_custom_call.1} parent=1 // pred_region
      %62 = dma.done [#allocation7], 8192
    $region29: #{tpu_custom_call.1} parent=1 // pred_fallthru
      _
    %v63 = vld [vmem:[#allocation3] sm:$0xff]
    %v64 = vld [vmem:[#allocation3 + $0x8] sm:$0xff]
    %v65 = vld [vmem:[#allocation3 + $0x10] sm:$0xff]
    %v66 = vld [vmem:[#allocation3 + $0x18] sm:$0xff]
    %v67 = vld [vmem:[#allocation3 + $0x20] sm:$0xff]
    %v68 = vld [vmem:[#allocation3 + $0x28] sm:$0xff]
    %v69 = vld [vmem:[#allocation3 + $0x30] sm:$0xff]
    %v70 = vld [vmem:[#allocation3 + $0x38] sm:$0xff]
    %v71 = vld [vmem:[#allocation6] sm:$0xff]
    %v72 = vld [vmem:[#allocation6 + $0x8] sm:$0xff]
    %v73 = vld [vmem:[#allocation6 + $0x10] sm:$0xff]
    %v74 = vld [vmem:[#allocation6 + $0x18] sm:$0xff]
    %v75 = vld [vmem:[#allocation6 + $0x20] sm:$0xff]
    %v76 = vld [vmem:[#allocation6 + $0x28] sm:$0xff]
    %v77 = vld [vmem:[#allocation6 + $0x30] sm:$0xff]
    %v78 = vld [vmem:[#allocation6 + $0x38] sm:$0xff]
    %v79 = vld [vmem:[#allocation6 + $0x40] sm:$0xff]
    %v80 = vld [vmem:[#allocation6 + $0x48] sm:$0xff]
    %v81 = vld [vmem:[#allocation6 + $0x50] sm:$0xff]
    %v82 = vld [vmem:[#allocation6 + $0x58] sm:$0xff]
    %v83 = vld [vmem:[#allocation6 + $0x60] sm:$0xff]
    %v84 = vld [vmem:[#allocation6 + $0x68] sm:$0xff]
    %v85 = vld [vmem:[#allocation6 + $0x70] sm:$0xff]
    %v86 = vld [vmem:[#allocation6 + $0x78] sm:$0xff]
    %v87 = vld [vmem:[#allocation6 + $0x80] sm:$0xff]
    %v88 = vld [vmem:[#allocation6 + $0x88] sm:$0xff]
    %v89 = vld [vmem:[#allocation6 + $0x90] sm:$0xff]
    %v90 = vld [vmem:[#allocation6 + $0x98] sm:$0xff]
    %v91 = vld [vmem:[#allocation6 + $0xa0] sm:$0xff]
    %v92 = vld [vmem:[#allocation6 + $0xa8] sm:$0xff]
    %v93 = vld [vmem:[#allocation6 + $0xb0] sm:$0xff]
    %v94 = vld [vmem:[#allocation6 + $0xb8] sm:$0xff]
    %v95 = vld [vmem:[#allocation6 + $0xc0] sm:$0xff]
    %v96 = vld [vmem:[#allocation6 + $0xc8] sm:$0xff]
    %v97 = vld [vmem:[#allocation6 + $0xd0] sm:$0xff]
    %v98 = vld [vmem:[#allocation6 + $0xd8] sm:$0xff]
    %v99 = vld [vmem:[#allocation6 + $0xe0] sm:$0xff]
    %v100 = vld [vmem:[#allocation6 + $0xe8] sm:$0xff]
    %v101 = vld [vmem:[#allocation6 + $0xf0] sm:$0xff]
    %v102 = vld [vmem:[#allocation6 + $0xf8] sm:$0xff]
    %v103 = vld [vmem:[#allocation6 + $0x100] sm:$0xff]
    %v104 = vld [vmem:[#allocation6 + $0x108] sm:$0xff]
    %v105 = vld [vmem:[#allocation6 + $0x110] sm:$0xff]
    %v106 = vld [vmem:[#allocation6 + $0x118] sm:$0xff]
    %v107 = vld [vmem:[#allocation6 + $0x120] sm:$0xff]
    %v108 = vld [vmem:[#allocation6 + $0x128] sm:$0xff]
    %v109 = vld [vmem:[#allocation6 + $0x130] sm:$0xff]
    %v110 = vld [vmem:[#allocation6 + $0x138] sm:$0xff]
    %v111 = vld [vmem:[#allocation6 + $0x140] sm:$0xff]
    %v112 = vld [vmem:[#allocation6 + $0x148] sm:$0xff]
    %v113 = vld [vmem:[#allocation6 + $0x150] sm:$0xff]
    %v114 = vld [vmem:[#allocation6 + $0x158] sm:$0xff]
    %v115 = vld [vmem:[#allocation6 + $0x160] sm:$0xff]
    %v116 = vld [vmem:[#allocation6 + $0x168] sm:$0xff]
    %v117 = vld [vmem:[#allocation6 + $0x170] sm:$0xff]
    %v118 = vld [vmem:[#allocation6 + $0x178] sm:$0xff]
    %v119 = vld [vmem:[#allocation6 + $0x180] sm:$0xff]
    %v120 = vld [vmem:[#allocation6 + $0x188] sm:$0xff]
    %v121 = vld [vmem:[#allocation6 + $0x190] sm:$0xff]
    %v122 = vld [vmem:[#allocation6 + $0x198] sm:$0xff]
    %v123 = vld [vmem:[#allocation6 + $0x1a0] sm:$0xff]
    %v124 = vld [vmem:[#allocation6 + $0x1a8] sm:$0xff]
    %v125 = vld [vmem:[#allocation6 + $0x1b0] sm:$0xff]
    %v126 = vld [vmem:[#allocation6 + $0x1b8] sm:$0xff]
    %v127 = vld [vmem:[#allocation6 + $0x1c0] sm:$0xff]
    %v128 = vld [vmem:[#allocation6 + $0x1c8] sm:$0xff]
    %v129 = vld [vmem:[#allocation6 + $0x1d0] sm:$0xff]
    %v130 = vld [vmem:[#allocation6 + $0x1d8] sm:$0xff]
    %v131 = vld [vmem:[#allocation6 + $0x1e0] sm:$0xff]
    %v132 = vld [vmem:[#allocation6 + $0x1e8] sm:$0xff]
    %v133 = vld [vmem:[#allocation6 + $0x1f0] sm:$0xff]
    %v134 = vld [vmem:[#allocation6 + $0x1f8] sm:$0xff]
    %v135 = vld [vmem:[%s3] sm:$0xf]
    %v137 = vlaneseq
    %v138 = vshrl.u32 %v137, 7
    %v139 = vsub.s32 0, %v138
    %v140 = vrot.slane %v135, %v139
    %v141 = vlaneseq
    %v142 = vshrl.u32 %v141, 7
    %v143 = vsub.s32 1, %v142
    %v144 = vrot.slane %v135, %v143
    %v145 = vlaneseq
    %v146 = vshrl.u32 %v145, 7
    %v147 = vsub.s32 2, %v146
    %v148 = vrot.slane %v135, %v147
    %v149 = vlaneseq
    %v150 = vshrl.u32 %v149, 7
    %v151 = vsub.s32 3, %v150
    %v152 = vrot.slane %v135, %v151
    %157 = vmatprep.subr.mxu0 %v132
    %158 = vmatpush1.msra.mxu0 %v131
    %159 = vmatprep.subr.mxu0 %v128
    %160 = vmatpush1.msra.mxu0 %v127
    %161 = vmatprep.subr.mxu0 %v124
    %162 = vmatpush1.msra.mxu0 %v123
    %163 = vmatprep.subr.mxu0 %v120
    %164 = vmatpush1.msra.mxu0 %v119
    %165 = vmatprep.subr.mxu0 %v116
    %166 = vmatpush1.msra.mxu0 %v115
    %167 = vmatprep.subr.mxu0 %v112
    %168 = vmatpush1.msra.mxu0 %v111
    %169 = vmatprep.subr.mxu0 %v108
    %170 = vmatpush1.msra.mxu0 %v107
    %171 = vmatprep.subr.mxu0 %v104
    %172 = vmatpush1.msra.mxu0 %v103
    %173 = vmatprep.subr.mxu0 %v100
    %174 = vmatpush1.msra.mxu0 %v99
    %175 = vmatprep.subr.mxu0 %v96
    %176 = vmatpush1.msra.mxu0 %v95
    %177 = vmatprep.subr.mxu0 %v92
    %178 = vmatpush1.msra.mxu0 %v91
    %179 = vmatprep.subr.mxu0 %v88
    %180 = vmatpush1.msra.mxu0 %v87
    %181 = vmatprep.subr.mxu0 %v84
    %182 = vmatpush1.msra.mxu0 %v83
    %183 = vmatprep.subr.mxu0 %v80
    %184 = vmatpush1.msra.mxu0 %v79
    %185 = vmatprep.subr.mxu0 %v76
    %186 = vmatpush1.msra.mxu0 %v75
    %187 = vmatprep.subr.mxu0 %v72
    %188 = vmatpush1.msra.mxu0 %v71
    %189 = vmatprep.subr.mxu0 0.0
    %190 = vmatpush2.msra.mxu0 0.0
    %191 = vmatprep.subr.mxu0 0.0
    %192 = vmatpush2.msra.mxu0 0.0
    %193 = vmatprep.subr.mxu0 0.0
    %194 = vmatpush2.msra.mxu0 0.0
    %195 = vmatprep.subr.mxu0 0.0
    %196 = vmatpush2.msra.mxu0 0.0
    %197 = vmatprep.subr.mxu0 0.0
    %198 = vmatpush2.msra.mxu0 0.0
    %199 = vmatprep.subr.mxu0 0.0
    %200 = vmatpush2.msra.mxu0 0.0
    %201 = vmatprep.subr.mxu0 0.0
    %202 = vmatpush2.msra.mxu0 0.0
    %203 = vmatprep.subr.mxu0 0.0
    %204 = vmatpush2.msra.mxu0 0.0
    %205 = vmatprep.subr.mxu0 0.0
    %206 = vmatpush2.msra.mxu0 0.0
    %207 = vmatprep.subr.mxu0 0.0
    %208 = vmatpush2.msra.mxu0 0.0
    %209 = vmatprep.subr.mxu0 0.0
    %210 = vmatpush2.msra.mxu0 0.0
    %211 = vmatprep.subr.mxu0 0.0
    %212 = vmatpush2.msra.mxu0 0.0
    %213 = vmatprep.subr.mxu0 0.0
    %214 = vmatpush2.msra.mxu0 0.0
    %215 = vmatprep.subr.mxu0 0.0
    %216 = vmatpush2.msra.mxu0 0.0
    %217 = vmatprep.subr.mxu0 0.0
    %218 = vmatpush2.msra.mxu0 0.0
    %219 = vmatprep.subr.mxu0 0.0
    %220 = vmatpush2.msra.mxu0 0.0
    %221 = vmatprep.mubr.f32.mxu0 0.0
    %222 = vmatmul.mubr.f32.gmra.mxu0 %v63
    %v223 = vpop.f32.mrf.mxu0
    %v224 = vadd.f32 %v140, %v223
    %v225 = vpop.f32.mrf.mxu0
    %v226 = vadd.f32 %v144, %v225
    %227 = vmatprep.mubr.f32.mxu0 0.0
    %228 = vmatmul.mubr.f32.gmra.mxu0 %v64
    %v229 = vpop.f32.mrf.mxu0
    %v230 = vadd.f32 %v140, %v229
    %v231 = vpop.f32.mrf.mxu0
    %v232 = vadd.f32 %v144, %v231
    %233 = vmatprep.mubr.f32.mxu0 0.0
    %234 = vmatmul.mubr.f32.gmra.mxu0 %v65
    %v235 = vpop.f32.mrf.mxu0
    %v236 = vadd.f32 %v140, %v235
    %v237 = vpop.f32.mrf.mxu0
    %v238 = vadd.f32 %v144, %v237
    %239 = vmatprep.mubr.f32.mxu0 0.0
    %240 = vmatmul.mubr.f32.gmra.mxu0 %v66
    %v241 = vpop.f32.mrf.mxu0
    %v242 = vadd.f32 %v140, %v241
    %v243 = vpop.f32.mrf.mxu0
    %v244 = vadd.f32 %v144, %v243
    %245 = vmatprep.mubr.f32.mxu0 0.0
    %246 = vmatmul.mubr.f32.gmra.mxu0 %v67
    %v247 = vpop.f32.mrf.mxu0
    %v248 = vadd.f32 %v140, %v247
    %v249 = vpop.f32.mrf.mxu0
    %v250 = vadd.f32 %v144, %v249
    %251 = vmatprep.mubr.f32.mxu0 0.0
    %252 = vmatmul.mubr.f32.gmra.mxu0 %v68
    %v253 = vpop.f32.mrf.mxu0
    %v254 = vadd.f32 %v140, %v253
    %v255 = vpop.f32.mrf.mxu0
    %v256 = vadd.f32 %v144, %v255
    %257 = vmatprep.mubr.f32.mxu0 0.0
    %258 = vmatmul.mubr.f32.gmra.mxu0 %v69
    %v259 = vpop.f32.mrf.mxu0
    %v260 = vadd.f32 %v140, %v259
    %v261 = vpop.f32.mrf.mxu0
    %v262 = vadd.f32 %v144, %v261
    %263 = vmatprep.mubr.f32.mxu0 0.0
    %264 = vmatmul.mubr.f32.gmra.mxu0 %v70
    %v265 = vpop.f32.mrf.mxu0
    %v266 = vadd.f32 %v140, %v265
    %v267 = vpop.f32.mrf.mxu0
    %v268 = vadd.f32 %v144, %v267
    %269 = vdwg.mxu0
    %270 = vmatprep.subr.mxu0 %v134
    %271 = vmatpush1.msra.mxu0 %v133
    %272 = vmatprep.subr.mxu0 %v130
    %273 = vmatpush1.msra.mxu0 %v129
    %274 = vmatprep.subr.mxu0 %v126
    %275 = vmatpush1.msra.mxu0 %v125
    %276 = vmatprep.subr.mxu0 %v122
    %277 = vmatpush1.msra.mxu0 %v121
    %278 = vmatprep.subr.mxu0 %v118
    %279 = vmatpush1.msra.mxu0 %v117
    %280 = vmatprep.subr.mxu0 %v114
    %281 = vmatpush1.msra.mxu0 %v113
    %282 = vmatprep.subr.mxu0 %v110
    %283 = vmatpush1.msra.mxu0 %v109
    %284 = vmatprep.subr.mxu0 %v106
    %285 = vmatpush1.msra.mxu0 %v105
    %286 = vmatprep.subr.mxu0 %v102
    %287 = vmatpush1.msra.mxu0 %v101
    %288 = vmatprep.subr.mxu0 %v98
    %289 = vmatpush1.msra.mxu0 %v97
    %290 = vmatprep.subr.mxu0 %v94
    %291 = vmatpush1.msra.mxu0 %v93
    %292 = vmatprep.subr.mxu0 %v90
    %293 = vmatpush1.msra.mxu0 %v89
    %294 = vmatprep.subr.mxu0 %v86
    %295 = vmatpush1.msra.mxu0 %v85
    %296 = vmatprep.subr.mxu0 %v82
    %297 = vmatpush1.msra.mxu0 %v81
    %298 = vmatprep.subr.mxu0 %v78
    %299 = vmatpush1.msra.mxu0 %v77
    %300 = vmatprep.subr.mxu0 %v74
    %301 = vmatpush1.msra.mxu0 %v73
    %302 = vmatprep.subr.mxu0 0.0
    %303 = vmatpush2.msra.mxu0 0.0
    %304 = vmatprep.subr.mxu0 0.0
    %305 = vmatpush2.msra.mxu0 0.0
    %306 = vmatprep.subr.mxu0 0.0
    %307 = vmatpush2.msra.mxu0 0.0
    %308 = vmatprep.subr.mxu0 0.0
    %309 = vmatpush2.msra.mxu0 0.0
    %310 = vmatprep.subr.mxu0 0.0
    %311 = vmatpush2.msra.mxu0 0.0
    %312 = vmatprep.subr.mxu0 0.0
    %313 = vmatpush2.msra.mxu0 0.0
    %314 = vmatprep.subr.mxu0 0.0
    %315 = vmatpush2.msra.mxu0 0.0
    %316 = vmatprep.subr.mxu0 0.0
    %317 = vmatpush2.msra.mxu0 0.0
    %318 = vmatprep.subr.mxu0 0.0
    %319 = vmatpush2.msra.mxu0 0.0
    %320 = vmatprep.subr.mxu0 0.0
    %321 = vmatpush2.msra.mxu0 0.0
    %322 = vmatprep.subr.mxu0 0.0
    %323 = vmatpush2.msra.mxu0 0.0
    %324 = vmatprep.subr.mxu0 0.0
    %325 = vmatpush2.msra.mxu0 0.0
    %326 = vmatprep.subr.mxu0 0.0
    %327 = vmatpush2.msra.mxu0 0.0
    %328 = vmatprep.subr.mxu0 0.0
    %329 = vmatpush2.msra.mxu0 0.0
    %330 = vmatprep.subr.mxu0 0.0
    %331 = vmatpush2.msra.mxu0 0.0
    %332 = vmatprep.subr.mxu0 0.0
    %333 = vmatpush2.msra.mxu0 0.0
    %334 = vmatprep.mubr.f32.mxu0 0.0
    %335 = vmatmul.mubr.f32.gmra.mxu0 %v63
    %v336 = vpop.f32.mrf.mxu0
    %v337 = vadd.f32 %v148, %v336
    %v338 = vpop.f32.mrf.mxu0
    %v339 = vadd.f32 %v152, %v338
    %340 = vmatprep.mubr.f32.mxu0 0.0
    %341 = vmatmul.mubr.f32.gmra.mxu0 %v64
    %v342 = vpop.f32.mrf.mxu0
    %v343 = vadd.f32 %v148, %v342
    %v344 = vpop.f32.mrf.mxu0
    %v345 = vadd.f32 %v152, %v344
    %346 = vmatprep.mubr.f32.mxu0 0.0
    %347 = vmatmul.mubr.f32.gmra.mxu0 %v65
    %v348 = vpop.f32.mrf.mxu0
    %v349 = vadd.f32 %v148, %v348
    %v350 = vpop.f32.mrf.mxu0
    %v351 = vadd.f32 %v152, %v350
    %352 = vmatprep.mubr.f32.mxu0 0.0
    %353 = vmatmul.mubr.f32.gmra.mxu0 %v66
    %v354 = vpop.f32.mrf.mxu0
    %v355 = vadd.f32 %v148, %v354
    %v356 = vpop.f32.mrf.mxu0
    %v357 = vadd.f32 %v152, %v356
    %358 = vmatprep.mubr.f32.mxu0 0.0
    %359 = vmatmul.mubr.f32.gmra.mxu0 %v67
    %v360 = vpop.f32.mrf.mxu0
    %v361 = vadd.f32 %v148, %v360
    %v362 = vpop.f32.mrf.mxu0
    %v363 = vadd.f32 %v152, %v362
    %364 = vmatprep.mubr.f32.mxu0 0.0
    %365 = vmatmul.mubr.f32.gmra.mxu0 %v68
    %v366 = vpop.f32.mrf.mxu0
    %v367 = vadd.f32 %v148, %v366
    %v368 = vpop.f32.mrf.mxu0
    %v369 = vadd.f32 %v152, %v368
    %370 = vmatprep.mubr.f32.mxu0 0.0
    %371 = vmatmul.mubr.f32.gmra.mxu0 %v69
    %v372 = vpop.f32.mrf.mxu0
    %v373 = vadd.f32 %v148, %v372
    %v374 = vpop.f32.mrf.mxu0
    %v375 = vadd.f32 %v152, %v374
    %376 = vmatprep.mubr.f32.mxu0 0.0
    %377 = vmatmul.mubr.f32.gmra.mxu0 %v70
    %v378 = vpop.f32.mrf.mxu0
    %v379 = vadd.f32 %v148, %v378
    %v380 = vpop.f32.mrf.mxu0
    %v381 = vadd.f32 %v152, %v380
    %382 = vdwg.mxu0
    %383 = vst [vmem:[#allocation2] sm:$0xff] %v224
    %384 = vst [vmem:[#allocation2 + $0x8] sm:$0xff] %v226
    %385 = vst [vmem:[#allocation2 + $0x10] sm:$0xff] %v337
    %386 = vst [vmem:[#allocation2 + $0x18] sm:$0xff] %v339
    %387 = vst [vmem:[#allocation2 + $0x20] sm:$0xff] %v230
    %388 = vst [vmem:[#allocation2 + $0x28] sm:$0xff] %v232
    %389 = vst [vmem:[#allocation2 + $0x30] sm:$0xff] %v343
    %390 = vst [vmem:[#allocation2 + $0x38] sm:$0xff] %v345
    %391 = vst [vmem:[#allocation2 + $0x40] sm:$0xff] %v236
    %392 = vst [vmem:[#allocation2 + $0x48] sm:$0xff] %v238
    %393 = vst [vmem:[#allocation2 + $0x50] sm:$0xff] %v349
    %394 = vst [vmem:[#allocation2 + $0x58] sm:$0xff] %v351
    %395 = vst [vmem:[#allocation2 + $0x60] sm:$0xff] %v242
    %396 = vst [vmem:[#allocation2 + $0x68] sm:$0xff] %v244
    %397 = vst [vmem:[#allocation2 + $0x70] sm:$0xff] %v355
    %398 = vst [vmem:[#allocation2 + $0x78] sm:$0xff] %v357
    %399 = vst [vmem:[#allocation2 + $0x80] sm:$0xff] %v248
    %400 = vst [vmem:[#allocation2 + $0x88] sm:$0xff] %v250
    %401 = vst [vmem:[#allocation2 + $0x90] sm:$0xff] %v361
    %402 = vst [vmem:[#allocation2 + $0x98] sm:$0xff] %v363
    %403 = vst [vmem:[#allocation2 + $0xa0] sm:$0xff] %v254
    %404 = vst [vmem:[#allocation2 + $0xa8] sm:$0xff] %v256
    %405 = vst [vmem:[#allocation2 + $0xb0] sm:$0xff] %v367
    %406 = vst [vmem:[#allocation2 + $0xb8] sm:$0xff] %v369
    %407 = vst [vmem:[#allocation2 + $0xc0] sm:$0xff] %v260
    %408 = vst [vmem:[#allocation2 + $0xc8] sm:$0xff] %v262
    %409 = vst [vmem:[#allocation2 + $0xd0] sm:$0xff] %v373
    %410 = vst [vmem:[#allocation2 + $0xd8] sm:$0xff] %v375
    %411 = vst [vmem:[#allocation2 + $0xe0] sm:$0xff] %v266
    %412 = vst [vmem:[#allocation2 + $0xe8] sm:$0xff] %v268
    %413 = vst [vmem:[#allocation2 + $0xf0] sm:$0xff] %v379
    %414 = vst [vmem:[#allocation2 + $0xf8] sm:$0xff] %v381
    %v415 = vld [vmem:[#allocation2] sm:$0xff]
    %v416 = vld [vmem:[#allocation2 + $0x8] sm:$0xff]
    %v417 = vld [vmem:[#allocation2 + $0x10] sm:$0xff]
    %v418 = vld [vmem:[#allocation2 + $0x18] sm:$0xff]
    %v419 = vld [vmem:[#allocation8] sm:$0xff]
    %v420 = vld [vmem:[#allocation8 + $0x8] sm:$0xff]
    %v421 = vld [vmem:[#allocation8 + $0x10] sm:$0xff]
    %v422 = vld [vmem:[#allocation8 + $0x18] sm:$0xff]
    %v423 = vld [vmem:[#allocation8 + $0x20] sm:$0xff]
    %v424 = vld [vmem:[#allocation8 + $0x28] sm:$0xff]
    %v425 = vld [vmem:[#allocation8 + $0x30] sm:$0xff]
    %v426 = vld [vmem:[#allocation8 + $0x38] sm:$0xff]
    %v427 = vld [vmem:[#allocation8 + $0x40] sm:$0xff]
    %v428 = vld [vmem:[#allocation8 + $0x48] sm:$0xff]
    %v429 = vld [vmem:[#allocation8 + $0x50] sm:$0xff]
    %v430 = vld [vmem:[#allocation8 + $0x58] sm:$0xff]
    %v431 = vld [vmem:[#allocation8 + $0x60] sm:$0xff]
    %v432 = vld [vmem:[#allocation8 + $0x68] sm:$0xff]
    %v433 = vld [vmem:[#allocation8 + $0x70] sm:$0xff]
    %v434 = vld [vmem:[#allocation8 + $0x78] sm:$0xff]
    %v435 = vld [vmem:[#allocation8 + $0x80] sm:$0xff]
    %v436 = vld [vmem:[#allocation8 + $0x88] sm:$0xff]
    %v437 = vld [vmem:[#allocation8 + $0x90] sm:$0xff]
    %v438 = vld [vmem:[#allocation8 + $0x98] sm:$0xff]
    %v439 = vld [vmem:[#allocation8 + $0xa0] sm:$0xff]
    %v440 = vld [vmem:[#allocation8 + $0xa8] sm:$0xff]
    %v441 = vld [vmem:[#allocation8 + $0xb0] sm:$0xff]
    %v442 = vld [vmem:[#allocation8 + $0xb8] sm:$0xff]
    %v443 = vld [vmem:[#allocation8 + $0xc0] sm:$0xff]
    %v444 = vld [vmem:[#allocation8 + $0xc8] sm:$0xff]
    %v445 = vld [vmem:[#allocation8 + $0xd0] sm:$0xff]
    %v446 = vld [vmem:[#allocation8 + $0xd8] sm:$0xff]
    %v447 = vld [vmem:[#allocation8 + $0xe0] sm:$0xff]
    %v448 = vld [vmem:[#allocation8 + $0xe8] sm:$0xff]
    %v449 = vld [vmem:[#allocation8 + $0xf0] sm:$0xff]
    %v450 = vld [vmem:[#allocation8 + $0xf8] sm:$0xff]
    %v451 = vld [vmem:[#allocation8 + $0x100] sm:$0xff]
    %v452 = vld [vmem:[#allocation8 + $0x108] sm:$0xff]
    %v453 = vld [vmem:[#allocation8 + $0x110] sm:$0xff]
    %v454 = vld [vmem:[#allocation8 + $0x118] sm:$0xff]
    %v455 = vld [vmem:[#allocation8 + $0x120] sm:$0xff]
    %v456 = vld [vmem:[#allocation8 + $0x128] sm:$0xff]
    %v457 = vld [vmem:[#allocation8 + $0x130] sm:$0xff]
    %v458 = vld [vmem:[#allocation8 + $0x138] sm:$0xff]
    %v459 = vld [vmem:[#allocation8 + $0x140] sm:$0xff]
    %v460 = vld [vmem:[#allocation8 + $0x148] sm:$0xff]
    %v461 = vld [vmem:[#allocation8 + $0x150] sm:$0xff]
    %v462 = vld [vmem:[#allocation8 + $0x158] sm:$0xff]
    %v463 = vld [vmem:[#allocation8 + $0x160] sm:$0xff]
    %v464 = vld [vmem:[#allocation8 + $0x168] sm:$0xff]
    %v465 = vld [vmem:[#allocation8 + $0x170] sm:$0xff]
    %v466 = vld [vmem:[#allocation8 + $0x178] sm:$0xff]
    %v467 = vld [vmem:[#allocation8 + $0x180] sm:$0xff]
    %v468 = vld [vmem:[#allocation8 + $0x188] sm:$0xff]
    %v469 = vld [vmem:[#allocation8 + $0x190] sm:$0xff]
    %v470 = vld [vmem:[#allocation8 + $0x198] sm:$0xff]
    %v471 = vld [vmem:[#allocation8 + $0x1a0] sm:$0xff]
    %v472 = vld [vmem:[#allocation8 + $0x1a8] sm:$0xff]
    %v473 = vld [vmem:[#allocation8 + $0x1b0] sm:$0xff]
    %v474 = vld [vmem:[#allocation8 + $0x1b8] sm:$0xff]
    %v475 = vld [vmem:[#allocation8 + $0x1c0] sm:$0xff]
    %v476 = vld [vmem:[#allocation8 + $0x1c8] sm:$0xff]
    %v477 = vld [vmem:[#allocation8 + $0x1d0] sm:$0xff]
    %v478 = vld [vmem:[#allocation8 + $0x1d8] sm:$0xff]
    %v479 = vld [vmem:[#allocation8 + $0x1e0] sm:$0xff]
    %v480 = vld [vmem:[#allocation8 + $0x1e8] sm:$0xff]
    %v481 = vld [vmem:[#allocation8 + $0x1f0] sm:$0xff]
    %v482 = vld [vmem:[#allocation8 + $0x1f8] sm:$0xff]
    %483 = vmatprep.subr.mxu0 %v480
    %484 = vmatpush1.msra.mxu0 %v479
    %485 = vmatprep.subr.mxu0 %v476
    %486 = vmatpush1.msra.mxu0 %v475
    %487 = vmatprep.subr.mxu0 %v472
    %488 = vmatpush1.msra.mxu0 %v471
    %489 = vmatprep.subr.mxu0 %v468
    %490 = vmatpush1.msra.mxu0 %v467
    %491 = vmatprep.subr.mxu0 %v464
    %492 = vmatpush1.msra.mxu0 %v463
    %493 = vmatprep.subr.mxu0 %v460
    %494 = vmatpush1.msra.mxu0 %v459
    %495 = vmatprep.subr.mxu0 %v456
    %496 = vmatpush1.msra.mxu0 %v455
    %497 = vmatprep.subr.mxu0 %v452
    %498 = vmatpush1.msra.mxu0 %v451
    %499 = vmatprep.subr.mxu0 %v448
    %500 = vmatpush1.msra.mxu0 %v447
    %501 = vmatprep.subr.mxu0 %v444
    %502 = vmatpush1.msra.mxu0 %v443
    %503 = vmatprep.subr.mxu0 %v440
    %504 = vmatpush1.msra.mxu0 %v439
    %505 = vmatprep.subr.mxu0 %v436
    %506 = vmatpush1.msra.mxu0 %v435
    %507 = vmatprep.subr.mxu0 %v432
    %508 = vmatpush1.msra.mxu0 %v431
    %509 = vmatprep.subr.mxu0 %v428
    %510 = vmatpush1.msra.mxu0 %v427
    %511 = vmatprep.subr.mxu0 %v424
    %512 = vmatpush1.msra.mxu0 %v423
    %513 = vmatprep.subr.mxu0 %v420
    %514 = vmatpush1.msra.mxu0 %v419
    %515 = vmatprep.subr.mxu0 0.0
    %516 = vmatpush2.msra.mxu0 0.0
    %517 = vmatprep.subr.mxu0 0.0
    %518 = vmatpush2.msra.mxu0 0.0
    %519 = vmatprep.subr.mxu0 0.0
    %520 = vmatpush2.msra.mxu0 0.0
    %521 = vmatprep.subr.mxu0 0.0
    %522 = vmatpush2.msra.mxu0 0.0
    %523 = vmatprep.subr.mxu0 0.0
    %524 = vmatpush2.msra.mxu0 0.0
    %525 = vmatprep.subr.mxu0 0.0
    %526 = vmatpush2.msra.mxu0 0.0
    %527 = vmatprep.subr.mxu0 0.0
    %528 = vmatpush2.msra.mxu0 0.0
    %529 = vmatprep.subr.mxu0 0.0
    %530 = vmatpush2.msra.mxu0 0.0
    %531 = vmatprep.subr.mxu0 0.0
    %532 = vmatpush2.msra.mxu0 0.0
    %533 = vmatprep.subr.mxu0 0.0
    %534 = vmatpush2.msra.mxu0 0.0
    %535 = vmatprep.subr.mxu0 0.0
    %536 = vmatpush2.msra.mxu0 0.0
    %537 = vmatprep.subr.mxu0 0.0
    %538 = vmatpush2.msra.mxu0 0.0
    %539 = vmatprep.subr.mxu0 0.0
    %540 = vmatpush2.msra.mxu0 0.0
    %541 = vmatprep.subr.mxu0 0.0
    %542 = vmatpush2.msra.mxu0 0.0
    %543 = vmatprep.subr.mxu0 0.0
    %544 = vmatpush2.msra.mxu0 0.0
    %545 = vmatprep.subr.mxu0 0.0
    %546 = vmatpush2.msra.mxu0 0.0
    %547 = vmatprep.mubr.f32.mxu0 0.0
    %548 = vmatmul.mubr.f32.gmra.mxu0 0.0
    %v549 = vpop.f32.mrf.mxu0
    %v550 = vadd.f32 0.0, %v549
    %v551 = vpop.f32.mrf.mxu0
    %v552 = vadd.f32 0.0, %v551
    %553 = vdwg.mxu0
    %554 = vmatprep.subr.mxu0 %v482
    %555 = vmatpush1.msra.mxu0 %v481
    %556 = vmatprep.subr.mxu0 %v478
    %557 = vmatpush1.msra.mxu0 %v477
    %558 = vmatprep.subr.mxu0 %v474
    %559 = vmatpush1.msra.mxu0 %v473
    %560 = vmatprep.subr.mxu0 %v470
    %561 = vmatpush1.msra.mxu0 %v469
    %562 = vmatprep.subr.mxu0 %v466
    %563 = vmatpush1.msra.mxu0 %v465
    %564 = vmatprep.subr.mxu0 %v462
    %565 = vmatpush1.msra.mxu0 %v461
    %566 = vmatprep.subr.mxu0 %v458
    %567 = vmatpush1.msra.mxu0 %v457
    %568 = vmatprep.subr.mxu0 %v454
    %569 = vmatpush1.msra.mxu0 %v453
    %570 = vmatprep.subr.mxu0 %v450
    %571 = vmatpush1.msra.mxu0 %v449
    %572 = vmatprep.subr.mxu0 %v446
    %573 = vmatpush1.msra.mxu0 %v445
    %574 = vmatprep.subr.mxu0 %v442
    %575 = vmatpush1.msra.mxu0 %v441
    %576 = vmatprep.subr.mxu0 %v438
    %577 = vmatpush1.msra.mxu0 %v437
    %578 = vmatprep.subr.mxu0 %v434
    %579 = vmatpush1.msra.mxu0 %v433
    %580 = vmatprep.subr.mxu0 %v430
    %581 = vmatpush1.msra.mxu0 %v429
    %582 = vmatprep.subr.mxu0 %v426
    %583 = vmatpush1.msra.mxu0 %v425
    %584 = vmatprep.subr.mxu0 %v422
    %585 = vmatpush1.msra.mxu0 %v421
    %586 = vmatprep.subr.mxu0 0.0
    %587 = vmatpush2.msra.mxu0 0.0
    %588 = vmatprep.subr.mxu0 0.0
    %589 = vmatpush2.msra.mxu0 0.0
    %590 = vmatprep.subr.mxu0 0.0
    %591 = vmatpush2.msra.mxu0 0.0
    %592 = vmatprep.subr.mxu0 0.0
    %593 = vmatpush2.msra.mxu0 0.0
    %594 = vmatprep.subr.mxu0 0.0
    %595 = vmatpush2.msra.mxu0 0.0
    %596 = vmatprep.subr.mxu0 0.0
    %597 = vmatpush2.msra.mxu0 0.0
    %598 = vmatprep.subr.mxu0 0.0
    %599 = vmatpush2.msra.mxu0 0.0
    %600 = vmatprep.subr.mxu0 0.0
    %601 = vmatpush2.msra.mxu0 0.0
    %602 = vmatprep.subr.mxu0 0.0
    %603 = vmatpush2.msra.mxu0 0.0
    %604 = vmatprep.subr.mxu0 0.0
    %605 = vmatpush2.msra.mxu0 0.0
    %606 = vmatprep.subr.mxu0 0.0
    %607 = vmatpush2.msra.mxu0 0.0
    %608 = vmatprep.subr.mxu0 0.0
    %609 = vmatpush2.msra.mxu0 0.0
    %610 = vmatprep.subr.mxu0 0.0
    %611 = vmatpush2.msra.mxu0 0.0
    %612 = vmatprep.subr.mxu0 0.0
    %613 = vmatpush2.msra.mxu0 0.0
    %614 = vmatprep.subr.mxu0 0.0
    %615 = vmatpush2.msra.mxu0 0.0
    %616 = vmatprep.subr.mxu0 0.0
    %617 = vmatpush2.msra.mxu0 0.0
    %618 = vmatprep.mubr.f32.mxu0 0.0
    %619 = vmatmul.mubr.f32.gmra.mxu0 0.0
    %v620 = vpop.f32.mrf.mxu0
    %v621 = vadd.f32 0.0, %v620
    %v622 = vpop.f32.mrf.mxu0
    %v623 = vadd.f32 0.0, %v622
    %624 = vdwg.mxu0
    %v625 = vadd.f32 %v415, %v550
    %v626 = vadd.f32 %v416, %v552
    %v627 = vadd.f32 %v417, %v621
    %v628 = vadd.f32 %v418, %v623
    %v629 = vxor.u32 %v625, 2147483648
    %v630 = vmul.f32 %v629, 1.442695
    %v631 = vpow.pop %v630
    %v632 = vadd.f32 %v631, 1.0
    %v633 = vrcp.pop %v632
    %v634 = vmul.f32 1.0, %v633
    %v635 = vxor.u32 %v626, 2147483648
    %v636 = vmul.f32 %v635, 1.442695
    %v637 = vpow.pop %v636
    %v638 = vadd.f32 %v637, 1.0
    %v639 = vrcp.pop %v638
    %v640 = vmul.f32 1.0, %v639
    %v641 = vtanh.pop %v627
    %v642 = vxor.u32 %v628, 2147483648
    %v643 = vmul.f32 %v642, 1.442695
    %v644 = vpow.pop %v643
    %v645 = vadd.f32 %v644, 1.0
    %v646 = vrcp.pop %v645
    %v647 = vmul.f32 1.0, %v646
    %v648 = vmul.f32 %v640, 0.0
    %v649 = vmul.f32 %v634, %v641
    %v650 = vadd.f32 %v648, %v649
    %v651 = vtanh.pop %v650
    %v652 = vmul.f32 %v647, %v651
    %653 = vst [vmem:[#allocation9] sm:$0xff] %v652
    %s654 = scalar_lea.vmem [#allocation2], 32
    %v655 = vld [vmem:[%s654] sm:$0xff]
    %v656 = vld [vmem:[%s654 + $0x8] sm:$0xff]
    %v657 = vld [vmem:[%s654 + $0x10] sm:$0xff]
    %v658 = vld [vmem:[%s654 + $0x18] sm:$0xff]
    %v659 = vld [vmem:[#allocation8] sm:$0xff]
    %v660 = vld [vmem:[#allocation8 + $0x8] sm:$0xff]
    %v661 = vld [vmem:[#allocation8 + $0x10] sm:$0xff]
    %v662 = vld [vmem:[#allocation8 + $0x18] sm:$0xff]
    %v663 = vld [vmem:[#allocation8 + $0x20] sm:$0xff]
    %v664 = vld [vmem:[#allocation8 + $0x28] sm:$0xff]
    %v665 = vld [vmem:[#allocation8 + $0x30] sm:$0xff]
    %v666 = vld [vmem:[#allocation8 + $0x38] sm:$0xff]
    %v667 = vld [vmem:[#allocation8 + $0x40] sm:$0xff]
    %v668 = vld [vmem:[#allocation8 + $0x48] sm:$0xff]
    %v669 = vld [vmem:[#allocation8 + $0x50] sm:$0xff]
    %v670 = vld [vmem:[#allocation8 + $0x58] sm:$0xff]
    %v671 = vld [vmem:[#allocation8 + $0x60] sm:$0xff]
    %v672 = vld [vmem:[#allocation8 + $0x68] sm:$0xff]
    %v673 = vld [vmem:[#allocation8 + $0x70] sm:$0xff]
    %v674 = vld [vmem:[#allocation8 + $0x78] sm:$0xff]
    %v675 = vld [vmem:[#allocation8 + $0x80] sm:$0xff]
    %v676 = vld [vmem:[#allocation8 + $0x88] sm:$0xff]
    %v677 = vld [vmem:[#allocation8 + $0x90] sm:$0xff]
    %v678 = vld [vmem:[#allocation8 + $0x98] sm:$0xff]
    %v679 = vld [vmem:[#allocation8 + $0xa0] sm:$0xff]
    %v680 = vld [vmem:[#allocation8 + $0xa8] sm:$0xff]
    %v681 = vld [vmem:[#allocation8 + $0xb0] sm:$0xff]
    %v682 = vld [vmem:[#allocation8 + $0xb8] sm:$0xff]
    %v683 = vld [vmem:[#allocation8 + $0xc0] sm:$0xff]
    %v684 = vld [vmem:[#allocation8 + $0xc8] sm:$0xff]
    %v685 = vld [vmem:[#allocation8 + $0xd0] sm:$0xff]
    %v686 = vld [vmem:[#allocation8 + $0xd8] sm:$0xff]
    %v687 = vld [vmem:[#allocation8 + $0xe0] sm:$0xff]
    %v688 = vld [vmem:[#allocation8 + $0xe8] sm:$0xff]
    %v689 = vld [vmem:[#allocation8 + $0xf0] sm:$0xff]
    %v690 = vld [vmem:[#allocation8 + $0xf8] sm:$0xff]
    %v691 = vld [vmem:[#allocation8 + $0x100] sm:$0xff]
    %v692 = vld [vmem:[#allocation8 + $0x108] sm:$0xff]
    %v693 = vld [vmem:[#allocation8 + $0x110] sm:$0xff]
    %v694 = vld [vmem:[#allocation8 + $0x118] sm:$0xff]
    %v695 = vld [vmem:[#allocation8 + $0x120] sm:$0xff]
    %v696 = vld [vmem:[#allocation8 + $0x128] sm:$0xff]
    %v697 = vld [vmem:[#allocation8 + $0x130] sm:$0xff]
    %v698 = vld [vmem:[#allocation8 + $0x138] sm:$0xff]
    %v699 = vld [vmem:[#allocation8 + $0x140] sm:$0xff]
    %v700 = vld [vmem:[#allocation8 + $0x148] sm:$0xff]
    %v701 = vld [vmem:[#allocation8 + $0x150] sm:$0xff]
    %v702 = vld [vmem:[#allocation8 + $0x158] sm:$0xff]
    %v703 = vld [vmem:[#allocation8 + $0x160] sm:$0xff]
    %v704 = vld [vmem:[#allocation8 + $0x168] sm:$0xff]
    %v705 = vld [vmem:[#allocation8 + $0x170] sm:$0xff]
    %v706 = vld [vmem:[#allocation8 + $0x178] sm:$0xff]
    %v707 = vld [vmem:[#allocation8 + $0x180] sm:$0xff]
    %v708 = vld [vmem:[#allocation8 + $0x188] sm:$0xff]
    %v709 = vld [vmem:[#allocation8 + $0x190] sm:$0xff]
    %v710 = vld [vmem:[#allocation8 + $0x198] sm:$0xff]
    %v711 = vld [vmem:[#allocation8 + $0x1a0] sm:$0xff]
    %v712 = vld [vmem:[#allocation8 + $0x1a8] sm:$0xff]
    %v713 = vld [vmem:[#allocation8 + $0x1b0] sm:$0xff]
    %v714 = vld [vmem:[#allocation8 + $0x1b8] sm:$0xff]
    %v715 = vld [vmem:[#allocation8 + $0x1c0] sm:$0xff]
    %v716 = vld [vmem:[#allocation8 + $0x1c8] sm:$0xff]
    %v717 = vld [vmem:[#allocation8 + $0x1d0] sm:$0xff]
    %v718 = vld [vmem:[#allocation8 + $0x1d8] sm:$0xff]
    %v719 = vld [vmem:[#allocation8 + $0x1e0] sm:$0xff]
    %v720 = vld [vmem:[#allocation8 + $0x1e8] sm:$0xff]
    %v721 = vld [vmem:[#allocation8 + $0x1f0] sm:$0xff]
    %v722 = vld [vmem:[#allocation8 + $0x1f8] sm:$0xff]
    %723 = vmatprep.subr.mxu0 %v720
    %724 = vmatpush1.msra.mxu0 %v719
    %725 = vmatprep.subr.mxu0 %v716
    %726 = vmatpush1.msra.mxu0 %v715
    %727 = vmatprep.subr.mxu0 %v712
    %728 = vmatpush1.msra.mxu0 %v711
    %729 = vmatprep.subr.mxu0 %v708
    %730 = vmatpush1.msra.mxu0 %v707
    %731 = vmatprep.subr.mxu0 %v704
    %732 = vmatpush1.msra.mxu0 %v703
    %733 = vmatprep.subr.mxu0 %v700
    %734 = vmatpush1.msra.mxu0 %v699
    %735 = vmatprep.subr.mxu0 %v696
    %736 = vmatpush1.msra.mxu0 %v695
    %737 = vmatprep.subr.mxu0 %v692
    %738 = vmatpush1.msra.mxu0 %v691
    %739 = vmatprep.subr.mxu0 %v688
    %740 = vmatpush1.msra.mxu0 %v687
    %741 = vmatprep.subr.mxu0 %v684
    %742 = vmatpush1.msra.mxu0 %v683
    %743 = vmatprep.subr.mxu0 %v680
    %744 = vmatpush1.msra.mxu0 %v679
    %745 = vmatprep.subr.mxu0 %v676
    %746 = vmatpush1.msra.mxu0 %v675
    %747 = vmatprep.subr.mxu0 %v672
    %748 = vmatpush1.msra.mxu0 %v671
    %749 = vmatprep.subr.mxu0 %v668
    %750 = vmatpush1.msra.mxu0 %v667
    %751 = vmatprep.subr.mxu0 %v664
    %752 = vmatpush1.msra.mxu0 %v663
    %753 = vmatprep.subr.mxu0 %v660
    %754 = vmatpush1.msra.mxu0 %v659
    %755 = vmatprep.subr.mxu0 0.0
    %756 = vmatpush2.msra.mxu0 0.0
    %757 = vmatprep.subr.mxu0 0.0
    %758 = vmatpush2.msra.mxu0 0.0
    %759 = vmatprep.subr.mxu0 0.0
    %760 = vmatpush2.msra.mxu0 0.0
    %761 = vmatprep.subr.mxu0 0.0
    %762 = vmatpush2.msra.mxu0 0.0
    %763 = vmatprep.subr.mxu0 0.0
    %764 = vmatpush2.msra.mxu0 0.0
    %765 = vmatprep.subr.mxu0 0.0
    %766 = vmatpush2.msra.mxu0 0.0
    %767 = vmatprep.subr.mxu0 0.0
    %768 = vmatpush2.msra.mxu0 0.0
    %769 = vmatprep.subr.mxu0 0.0
    %770 = vmatpush2.msra.mxu0 0.0
    %771 = vmatprep.subr.mxu0 0.0
    %772 = vmatpush2.msra.mxu0 0.0
    %773 = vmatprep.subr.mxu0 0.0
    %774 = vmatpush2.msra.mxu0 0.0
    %775 = vmatprep.subr.mxu0 0.0
    %776 = vmatpush2.msra.mxu0 0.0
    %777 = vmatprep.subr.mxu0 0.0
    %778 = vmatpush2.msra.mxu0 0.0
    %779 = vmatprep.subr.mxu0 0.0
    %780 = vmatpush2.msra.mxu0 0.0
    %781 = vmatprep.subr.mxu0 0.0
    %782 = vmatpush2.msra.mxu0 0.0
    %783 = vmatprep.subr.mxu0 0.0
    %784 = vmatpush2.msra.mxu0 0.0
    %785 = vmatprep.subr.mxu0 0.0
    %786 = vmatpush2.msra.mxu0 0.0
    %787 = vmatprep.mubr.f32.mxu0 0.0
    %788 = vmatmul.mubr.f32.gmra.mxu0 %v652
    %v789 = vpop.f32.mrf.mxu0
    %v790 = vadd.f32 0.0, %v789
    %v791 = vpop.f32.mrf.mxu0
    %v792 = vadd.f32 0.0, %v791
    %793 = vdwg.mxu0
    %794 = vmatprep.subr.mxu0 %v722
    %795 = vmatpush1.msra.mxu0 %v721
    %796 = vmatprep.subr.mxu0 %v718
    %797 = vmatpush1.msra.mxu0 %v717
    %798 = vmatprep.subr.mxu0 %v714
    %799 = vmatpush1.msra.mxu0 %v713
    %800 = vmatprep.subr.mxu0 %v710
    %801 = vmatpush1.msra.mxu0 %v709
    %802 = vmatprep.subr.mxu0 %v706
    %803 = vmatpush1.msra.mxu0 %v705
    %804 = vmatprep.subr.mxu0 %v702
    %805 = vmatpush1.msra.mxu0 %v701
    %806 = vmatprep.subr.mxu0 %v698
    %807 = vmatpush1.msra.mxu0 %v697
    %808 = vmatprep.subr.mxu0 %v694
    %809 = vmatpush1.msra.mxu0 %v693
    %810 = vmatprep.subr.mxu0 %v690
    %811 = vmatpush1.msra.mxu0 %v689
    %812 = vmatprep.subr.mxu0 %v686
    %813 = vmatpush1.msra.mxu0 %v685
    %814 = vmatprep.subr.mxu0 %v682
    %815 = vmatpush1.msra.mxu0 %v681
    %816 = vmatprep.subr.mxu0 %v678
    %817 = vmatpush1.msra.mxu0 %v677
    %818 = vmatprep.subr.mxu0 %v674
    %819 = vmatpush1.msra.mxu0 %v673
    %820 = vmatprep.subr.mxu0 %v670
    %821 = vmatpush1.msra.mxu0 %v669
    %822 = vmatprep.subr.mxu0 %v666
    %823 = vmatpush1.msra.mxu0 %v665
    %824 = vmatprep.subr.mxu0 %v662
    %825 = vmatpush1.msra.mxu0 %v661
    %826 = vmatprep.subr.mxu0 0.0
    %827 = vmatpush2.msra.mxu0 0.0
    %828 = vmatprep.subr.mxu0 0.0
    %829 = vmatpush2.msra.mxu0 0.0
    %830 = vmatprep.subr.mxu0 0.0
    %831 = vmatpush2.msra.mxu0 0.0
    %832 = vmatprep.subr.mxu0 0.0
    %833 = vmatpush2.msra.mxu0 0.0
    %834 = vmatprep.subr.mxu0 0.0
    %835 = vmatpush2.msra.mxu0 0.0
    %836 = vmatprep.subr.mxu0 0.0
    %837 = vmatpush2.msra.mxu0 0.0
    %838 = vmatprep.subr.mxu0 0.0
    %839 = vmatpush2.msra.mxu0 0.0
    %840 = vmatprep.subr.mxu0 0.0
    %841 = vmatpush2.msra.mxu0 0.0
    %842 = vmatprep.subr.mxu0 0.0
    %843 = vmatpush2.msra.mxu0 0.0
    %844 = vmatprep.subr.mxu0 0.0
    %845 = vmatpush2.msra.mxu0 0.0
    %846 = vmatprep.subr.mxu0 0.0
    %847 = vmatpush2.msra.mxu0 0.0
    %848 = vmatprep.subr.mxu0 0.0
    %849 = vmatpush2.msra.mxu0 0.0
    %850 = vmatprep.subr.mxu0 0.0
    %851 = vmatpush2.msra.mxu0 0.0
    %852 = vmatprep.subr.mxu0 0.0
    %853 = vmatpush2.msra.mxu0 0.0
    %854 = vmatprep.subr.mxu0 0.0
    %855 = vmatpush2.msra.mxu0 0.0
    %856 = vmatprep.subr.mxu0 0.0
    %857 = vmatpush2.msra.mxu0 0.0
    %858 = vmatprep.mubr.f32.mxu0 0.0
    %859 = vmatmul.mubr.f32.gmra.mxu0 %v652
    %v860 = vpop.f32.mrf.mxu0
    %v861 = vadd.f32 0.0, %v860
    %v862 = vpop.f32.mrf.mxu0
    %v863 = vadd.f32 0.0, %v862
    %864 = vdwg.mxu0
    %v865 = vadd.f32 %v655, %v790
    %v866 = vadd.f32 %v656, %v792
    %v867 = vadd.f32 %v657, %v861
    %v868 = vadd.f32 %v658, %v863
    %v869 = vxor.u32 %v865, 2147483648
    %v870 = vmul.f32 %v869, 1.442695
    %v871 = vpow.pop %v870
    %v872 = vadd.f32 %v871, 1.0
    %v873 = vrcp.pop %v872
    %v874 = vmul.f32 1.0, %v873
    %v875 = vxor.u32 %v866, 2147483648
    %v876 = vmul.f32 %v875, 1.442695
    %v877 = vpow.pop %v876
    %v878 = vadd.f32 %v877, 1.0
    %v879 = vrcp.pop %v878
    %v880 = vmul.f32 1.0, %v879
    %v881 = vtanh.pop %v867
    %v882 = vxor.u32 %v868, 2147483648
    %v883 = vmul.f32 %v882, 1.442695
    %v884 = vpow.pop %v883
    %v885 = vadd.f32 %v884, 1.0
    %v886 = vrcp.pop %v885
    %v887 = vmul.f32 1.0, %v886
    %v888 = vmul.f32 %v880, %v650
    %v889 = vmul.f32 %v874, %v881
    %v890 = vadd.f32 %v888, %v889
    %v891 = vtanh.pop %v890
    %v892 = vmul.f32 %v887, %v891
    %s893 = scalar_lea.vmem [#allocation9], 8
    %894 = vst [vmem:[%s893] sm:$0xff] %v892
    %s895 = scalar_lea.vmem [#allocation2], 64
    %v896 = vld [vmem:[%s895] sm:$0xff]
    %v897 = vld [vmem:[%s895 + $0x8] sm:$0xff]
    %v898 = vld [vmem:[%s895 + $0x10] sm:$0xff]
    %v899 = vld [vmem:[%s895 + $0x18] sm:$0xff]
    %v900 = vld [vmem:[#allocation8] sm:$0xff]
    %v901 = vld [vmem:[#allocation8 + $0x8] sm:$0xff]
    %v902 = vld [vmem:[#allocation8 + $0x10] sm:$0xff]
    %v903 = vld [vmem:[#allocation8 + $0x18] sm:$0xff]
    %v904 = vld [vmem:[#allocation8 + $0x20] sm:$0xff]
    %v905 = vld [vmem:[#allocation8 + $0x28] sm:$0xff]
    %v906 = vld [vmem:[#allocation8 + $0x30] sm:$0xff]
    %v907 = vld [vmem:[#allocation8 + $0x38] sm:$0xff]
    %v908 = vld [vmem:[#allocation8 + $0x40] sm:$0xff]
    %v909 = vld [vmem:[#allocation8 + $0x48] sm:$0xff]
    %v910 = vld [vmem:[#allocation8 + $0x50] sm:$0xff]
    %v911 = vld [vmem:[#allocation8 + $0x58] sm:$0xff]
    %v912 = vld [vmem:[#allocation8 + $0x60] sm:$0xff]
    %v913 = vld [vmem:[#allocation8 + $0x68] sm:$0xff]
    %v914 = vld [vmem:[#allocation8 + $0x70] sm:$0xff]
    %v915 = vld [vmem:[#allocation8 + $0x78] sm:$0xff]
    %v916 = vld [vmem:[#allocation8 + $0x80] sm:$0xff]
    %v917 = vld [vmem:[#allocation8 + $0x88] sm:$0xff]
    %v918 = vld [vmem:[#allocation8 + $0x90] sm:$0xff]
    %v919 = vld [vmem:[#allocation8 + $0x98] sm:$0xff]
    %v920 = vld [vmem:[#allocation8 + $0xa0] sm:$0xff]
    %v921 = vld [vmem:[#allocation8 + $0xa8] sm:$0xff]
    %v922 = vld [vmem:[#allocation8 + $0xb0] sm:$0xff]
    %v923 = vld [vmem:[#allocation8 + $0xb8] sm:$0xff]
    %v924 = vld [vmem:[#allocation8 + $0xc0] sm:$0xff]
    %v925 = vld [vmem:[#allocation8 + $0xc8] sm:$0xff]
    %v926 = vld [vmem:[#allocation8 + $0xd0] sm:$0xff]
    %v927 = vld [vmem:[#allocation8 + $0xd8] sm:$0xff]
    %v928 = vld [vmem:[#allocation8 + $0xe0] sm:$0xff]
    %v929 = vld [vmem:[#allocation8 + $0xe8] sm:$0xff]
    %v930 = vld [vmem:[#allocation8 + $0xf0] sm:$0xff]
    %v931 = vld [vmem:[#allocation8 + $0xf8] sm:$0xff]
    %v932 = vld [vmem:[#allocation8 + $0x100] sm:$0xff]
    %v933 = vld [vmem:[#allocation8 + $0x108] sm:$0xff]
    %v934 = vld [vmem:[#allocation8 + $0x110] sm:$0xff]
    %v935 = vld [vmem:[#allocation8 + $0x118] sm:$0xff]
    %v936 = vld [vmem:[#allocation8 + $0x120] sm:$0xff]
    %v937 = vld [vmem:[#allocation8 + $0x128] sm:$0xff]
    %v938 = vld [vmem:[#allocation8 + $0x130] sm:$0xff]
    %v939 = vld [vmem:[#allocation8 + $0x138] sm:$0xff]
    %v940 = vld [vmem:[#allocation8 + $0x140] sm:$0xff]
    %v941 = vld [vmem:[#allocation8 + $0x148] sm:$0xff]
    %v942 = vld [vmem:[#allocation8 + $0x150] sm:$0xff]
    %v943 = vld [vmem:[#allocation8 + $0x158] sm:$0xff]
    %v944 = vld [vmem:[#allocation8 + $0x160] sm:$0xff]
    %v945 = vld [vmem:[#allocation8 + $0x168] sm:$0xff]
    %v946 = vld [vmem:[#allocation8 + $0x170] sm:$0xff]
    %v947 = vld [vmem:[#allocation8 + $0x178] sm:$0xff]
    %v948 = vld [vmem:[#allocation8 + $0x180] sm:$0xff]
    %v949 = vld [vmem:[#allocation8 + $0x188] sm:$0xff]
    %v950 = vld [vmem:[#allocation8 + $0x190] sm:$0xff]
    %v951 = vld [vmem:[#allocation8 + $0x198] sm:$0xff]
    %v952 = vld [vmem:[#allocation8 + $0x1a0] sm:$0xff]
    %v953 = vld [vmem:[#allocation8 + $0x1a8] sm:$0xff]
    %v954 = vld [vmem:[#allocation8 + $0x1b0] sm:$0xff]
    %v955 = vld [vmem:[#allocation8 + $0x1b8] sm:$0xff]
    %v956 = vld [vmem:[#allocation8 + $0x1c0] sm:$0xff]
    %v957 = vld [vmem:[#allocation8 + $0x1c8] sm:$0xff]
    %v958 = vld [vmem:[#allocation8 + $0x1d0] sm:$0xff]
    %v959 = vld [vmem:[#allocation8 + $0x1d8] sm:$0xff]
    %v960 = vld [vmem:[#allocation8 + $0x1e0] sm:$0xff]
    %v961 = vld [vmem:[#allocation8 + $0x1e8] sm:$0xff]
    %v962 = vld [vmem:[#allocation8 + $0x1f0] sm:$0xff]
    %v963 = vld [vmem:[#allocation8 + $0x1f8] sm:$0xff]
    %964 = vmatprep.subr.mxu0 %v961
    %965 = vmatpush1.msra.mxu0 %v960
    %966 = vmatprep.subr.mxu0 %v957
    %967 = vmatpush1.msra.mxu0 %v956
    %968 = vmatprep.subr.mxu0 %v953
    %969 = vmatpush1.msra.mxu0 %v952
    %970 = vmatprep.subr.mxu0 %v949
    %971 = vmatpush1.msra.mxu0 %v948
    %972 = vmatprep.subr.mxu0 %v945
    %973 = vmatpush1.msra.mxu0 %v944
    %974 = vmatprep.subr.mxu0 %v941
    %975 = vmatpush1.msra.mxu0 %v940
    %976 = vmatprep.subr.mxu0 %v937
    %977 = vmatpush1.msra.mxu0 %v936
    %978 = vmatprep.subr.mxu0 %v933
    %979 = vmatpush1.msra.mxu0 %v932
    %980 = vmatprep.subr.mxu0 %v929
    %981 = vmatpush1.msra.mxu0 %v928
    %982 = vmatprep.subr.mxu0 %v925
    %983 = vmatpush1.msra.mxu0 %v924
    %984 = vmatprep.subr.mxu0 %v921
    %985 = vmatpush1.msra.mxu0 %v920
    %986 = vmatprep.subr.mxu0 %v917
    %987 = vmatpush1.msra.mxu0 %v916
    %988 = vmatprep.subr.mxu0 %v913
    %989 = vmatpush1.msra.mxu0 %v912
    %990 = vmatprep.subr.mxu0 %v909
    %991 = vmatpush1.msra.mxu0 %v908
    %992 = vmatprep.subr.mxu0 %v905
    %993 = vmatpush1.msra.mxu0 %v904
    %994 = vmatprep.subr.mxu0 %v901
    %995 = vmatpush1.msra.mxu0 %v900
    %996 = vmatprep.subr.mxu0 0.0
    %997 = vmatpush2.msra.mxu0 0.0
    %998 = vmatprep.subr.mxu0 0.0
    %999 = vmatpush2.msra.mxu0 0.0
    %1000 = vmatprep.subr.mxu0 0.0
    %1001 = vmatpush2.msra.mxu0 0.0
    %1002 = vmatprep.subr.mxu0 0.0
    %1003 = vmatpush2.msra.mxu0 0.0
    %1004 = vmatprep.subr.mxu0 0.0
    %1005 = vmatpush2.msra.mxu0 0.0
    %1006 = vmatprep.subr.mxu0 0.0
    %1007 = vmatpush2.msra.mxu0 0.0
    %1008 = vmatprep.subr.mxu0 0.0
    %1009 = vmatpush2.msra.mxu0 0.0
    %1010 = vmatprep.subr.mxu0 0.0
    %1011 = vmatpush2.msra.mxu0 0.0
    %1012 = vmatprep.subr.mxu0 0.0
    %1013 = vmatpush2.msra.mxu0 0.0
    %1014 = vmatprep.subr.mxu0 0.0
    %1015 = vmatpush2.msra.mxu0 0.0
    %1016 = vmatprep.subr.mxu0 0.0
    %1017 = vmatpush2.msra.mxu0 0.0
    %1018 = vmatprep.subr.mxu0 0.0
    %1019 = vmatpush2.msra.mxu0 0.0
    %1020 = vmatprep.subr.mxu0 0.0
    %1021 = vmatpush2.msra.mxu0 0.0
    %1022 = vmatprep.subr.mxu0 0.0
    %1023 = vmatpush2.msra.mxu0 0.0
    %1024 = vmatprep.subr.mxu0 0.0
    %1025 = vmatpush2.msra.mxu0 0.0
    %1026 = vmatprep.subr.mxu0 0.0
    %1027 = vmatpush2.msra.mxu0 0.0
    %1028 = vmatprep.mubr.f32.mxu0 0.0
    %1029 = vmatmul.mubr.f32.gmra.mxu0 %v892
    %v1030 = vpop.f32.mrf.mxu0
    %v1031 = vadd.f32 0.0, %v1030
    %v1032 = vpop.f32.mrf.mxu0
    %v1033 = vadd.f32 0.0, %v1032
    %1034 = vdwg.mxu0
    %1035 = vmatprep.subr.mxu0 %v963
    %1036 = vmatpush1.msra.mxu0 %v962
    %1037 = vmatprep.subr.mxu0 %v959
    %1038 = vmatpush1.msra.mxu0 %v958
    %1039 = vmatprep.subr.mxu0 %v955
    %1040 = vmatpush1.msra.mxu0 %v954
    %1041 = vmatprep.subr.mxu0 %v951
    %1042 = vmatpush1.msra.mxu0 %v950
    %1043 = vmatprep.subr.mxu0 %v947
    %1044 = vmatpush1.msra.mxu0 %v946
    %1045 = vmatprep.subr.mxu0 %v943
    %1046 = vmatpush1.msra.mxu0 %v942
    %1047 = vmatprep.subr.mxu0 %v939
    %1048 = vmatpush1.msra.mxu0 %v938
    %1049 = vmatprep.subr.mxu0 %v935
    %1050 = vmatpush1.msra.mxu0 %v934
    %1051 = vmatprep.subr.mxu0 %v931
    %1052 = vmatpush1.msra.mxu0 %v930
    %1053 = vmatprep.subr.mxu0 %v927
    %1054 = vmatpush1.msra.mxu0 %v926
    %1055 = vmatprep.subr.mxu0 %v923
    %1056 = vmatpush1.msra.mxu0 %v922
    %1057 = vmatprep.subr.mxu0 %v919
    %1058 = vmatpush1.msra.mxu0 %v918
    %1059 = vmatprep.subr.mxu0 %v915
    %1060 = vmatpush1.msra.mxu0 %v914
    %1061 = vmatprep.subr.mxu0 %v911
    %1062 = vmatpush1.msra.mxu0 %v910
    %1063 = vmatprep.subr.mxu0 %v907
    %1064 = vmatpush1.msra.mxu0 %v906
    %1065 = vmatprep.subr.mxu0 %v903
    %1066 = vmatpush1.msra.mxu0 %v902
    %1067 = vmatprep.subr.mxu0 0.0
    %1068 = vmatpush2.msra.mxu0 0.0
    %1069 = vmatprep.subr.mxu0 0.0
    %1070 = vmatpush2.msra.mxu0 0.0
    %1071 = vmatprep.subr.mxu0 0.0
    %1072 = vmatpush2.msra.mxu0 0.0
    %1073 = vmatprep.subr.mxu0 0.0
    %1074 = vmatpush2.msra.mxu0 0.0
    %1075 = vmatprep.subr.mxu0 0.0
    %1076 = vmatpush2.msra.mxu0 0.0
    %1077 = vmatprep.subr.mxu0 0.0
    %1078 = vmatpush2.msra.mxu0 0.0
    %1079 = vmatprep.subr.mxu0 0.0
    %1080 = vmatpush2.msra.mxu0 0.0
    %1081 = vmatprep.subr.mxu0 0.0
    %1082 = vmatpush2.msra.mxu0 0.0
    %1083 = vmatprep.subr.mxu0 0.0
    %1084 = vmatpush2.msra.mxu0 0.0
    %1085 = vmatprep.subr.mxu0 0.0
    %1086 = vmatpush2.msra.mxu0 0.0
    %1087 = vmatprep.subr.mxu0 0.0
    %1088 = vmatpush2.msra.mxu0 0.0
    %1089 = vmatprep.subr.mxu0 0.0
    %1090 = vmatpush2.msra.mxu0 0.0
    %1091 = vmatprep.subr.mxu0 0.0
    %1092 = vmatpush2.msra.mxu0 0.0
    %1093 = vmatprep.subr.mxu0 0.0
    %1094 = vmatpush2.msra.mxu0 0.0
    %1095 = vmatprep.subr.mxu0 0.0
    %1096 = vmatpush2.msra.mxu0 0.0
    %1097 = vmatprep.subr.mxu0 0.0
    %1098 = vmatpush2.msra.mxu0 0.0
    %1099 = vmatprep.mubr.f32.mxu0 0.0
    %1100 = vmatmul.mubr.f32.gmra.mxu0 %v892
    %v1101 = vpop.f32.mrf.mxu0
    %v1102 = vadd.f32 0.0, %v1101
    %v1103 = vpop.f32.mrf.mxu0
    %v1104 = vadd.f32 0.0, %v1103
    %1105 = vdwg.mxu0
    %v1106 = vadd.f32 %v896, %v1031
    %v1107 = vadd.f32 %v897, %v1033
    %v1108 = vadd.f32 %v898, %v1102
    %v1109 = vadd.f32 %v899, %v1104
    %v1110 = vxor.u32 %v1106, 2147483648
    %v1111 = vmul.f32 %v1110, 1.442695
    %v1112 = vpow.pop %v1111
    %v1113 = vadd.f32 %v1112, 1.0
    %v1114 = vrcp.pop %v1113
    %v1115 = vmul.f32 1.0, %v1114
    %v1116 = vxor.u32 %v1107, 2147483648
    %v1117 = vmul.f32 %v1116, 1.442695
    %v1118 = vpow.pop %v1117
    %v1119 = vadd.f32 %v1118, 1.0
    %v1120 = vrcp.pop %v1119
    %v1121 = vmul.f32 1.0, %v1120
    %v1122 = vtanh.pop %v1108
    %v1123 = vxor.u32 %v1109, 2147483648
    %v1124 = vmul.f32 %v1123, 1.442695
    %v1125 = vpow.pop %v1124
    %v1126 = vadd.f32 %v1125, 1.0
    %v1127 = vrcp.pop %v1126
    %v1128 = vmul.f32 1.0, %v1127
    %v1129 = vmul.f32 %v1121, %v890
    %v1130 = vmul.f32 %v1115, %v1122
    %v1131 = vadd.f32 %v1129, %v1130
    %v1132 = vtanh.pop %v1131
    %v1133 = vmul.f32 %v1128, %v1132
    %s1134 = scalar_lea.vmem [#allocation9], 16
    %1135 = vst [vmem:[%s1134] sm:$0xff] %v1133
    %s1136 = scalar_lea.vmem [#allocation2], 96
    %v1137 = vld [vmem:[%s1136] sm:$0xff]
    %v1138 = vld [vmem:[%s1136 + $0x8] sm:$0xff]
    %v1139 = vld [vmem:[%s1136 + $0x10] sm:$0xff]
    %v1140 = vld [vmem:[%s1136 + $0x18] sm:$0xff]
    %v1141 = vld [vmem:[#allocation8] sm:$0xff]
    %v1142 = vld [vmem:[#allocation8 + $0x8] sm:$0xff]
    %v1143 = vld [vmem:[#allocation8 + $0x10] sm:$0xff]
    %v1144 = vld [vmem:[#allocation8 + $0x18] sm:$0xff]
    %v1145 = vld [vmem:[#allocation8 + $0x20] sm:$0xff]
    %v1146 = vld [vmem:[#allocation8 + $0x28] sm:$0xff]
    %v1147 = vld [vmem:[#allocation8 + $0x30] sm:$0xff]
    %v1148 = vld [vmem:[#allocation8 + $0x38] sm:$0xff]
    %v1149 = vld [vmem:[#allocation8 + $0x40] sm:$0xff]
    %v1150 = vld [vmem:[#allocation8 + $0x48] sm:$0xff]
    %v1151 = vld [vmem:[#allocation8 + $0x50] sm:$0xff]
    %v1152 = vld [vmem:[#allocation8 + $0x58] sm:$0xff]
    %v1153 = vld [vmem:[#allocation8 + $0x60] sm:$0xff]
    %v1154 = vld [vmem:[#allocation8 + $0x68] sm:$0xff]
    %v1155 = vld [vmem:[#allocation8 + $0x70] sm:$0xff]
    %v1156 = vld [vmem:[#allocation8 + $0x78] sm:$0xff]
    %v1157 = vld [vmem:[#allocation8 + $0x80] sm:$0xff]
    %v1158 = vld [vmem:[#allocation8 + $0x88] sm:$0xff]
    %v1159 = vld [vmem:[#allocation8 + $0x90] sm:$0xff]
    %v1160 = vld [vmem:[#allocation8 + $0x98] sm:$0xff]
    %v1161 = vld [vmem:[#allocation8 + $0xa0] sm:$0xff]
    %v1162 = vld [vmem:[#allocation8 + $0xa8] sm:$0xff]
    %v1163 = vld [vmem:[#allocation8 + $0xb0] sm:$0xff]
    %v1164 = vld [vmem:[#allocation8 + $0xb8] sm:$0xff]
    %v1165 = vld [vmem:[#allocation8 + $0xc0] sm:$0xff]
    %v1166 = vld [vmem:[#allocation8 + $0xc8] sm:$0xff]
    %v1167 = vld [vmem:[#allocation8 + $0xd0] sm:$0xff]
    %v1168 = vld [vmem:[#allocation8 + $0xd8] sm:$0xff]
    %v1169 = vld [vmem:[#allocation8 + $0xe0] sm:$0xff]
    %v1170 = vld [vmem:[#allocation8 + $0xe8] sm:$0xff]
    %v1171 = vld [vmem:[#allocation8 + $0xf0] sm:$0xff]
    %v1172 = vld [vmem:[#allocation8 + $0xf8] sm:$0xff]
    %v1173 = vld [vmem:[#allocation8 + $0x100] sm:$0xff]
    %v1174 = vld [vmem:[#allocation8 + $0x108] sm:$0xff]
    %v1175 = vld [vmem:[#allocation8 + $0x110] sm:$0xff]
    %v1176 = vld [vmem:[#allocation8 + $0x118] sm:$0xff]
    %v1177 = vld [vmem:[#allocation8 + $0x120] sm:$0xff]
    %v1178 = vld [vmem:[#allocation8 + $0x128] sm:$0xff]
    %v1179 = vld [vmem:[#allocation8 + $0x130] sm:$0xff]
    %v1180 = vld [vmem:[#allocation8 + $0x138] sm:$0xff]
    %v1181 = vld [vmem:[#allocation8 + $0x140] sm:$0xff]
    %v1182 = vld [vmem:[#allocation8 + $0x148] sm:$0xff]
    %v1183 = vld [vmem:[#allocation8 + $0x150] sm:$0xff]
    %v1184 = vld [vmem:[#allocation8 + $0x158] sm:$0xff]
    %v1185 = vld [vmem:[#allocation8 + $0x160] sm:$0xff]
    %v1186 = vld [vmem:[#allocation8 + $0x168] sm:$0xff]
    %v1187 = vld [vmem:[#allocation8 + $0x170] sm:$0xff]
    %v1188 = vld [vmem:[#allocation8 + $0x178] sm:$0xff]
    %v1189 = vld [vmem:[#allocation8 + $0x180] sm:$0xff]
    %v1190 = vld [vmem:[#allocation8 + $0x188] sm:$0xff]
    %v1191 = vld [vmem:[#allocation8 + $0x190] sm:$0xff]
    %v1192 = vld [vmem:[#allocation8 + $0x198] sm:$0xff]
    %v1193 = vld [vmem:[#allocation8 + $0x1a0] sm:$0xff]
    %v1194 = vld [vmem:[#allocation8 + $0x1a8] sm:$0xff]
    %v1195 = vld [vmem:[#allocation8 + $0x1b0] sm:$0xff]
    %v1196 = vld [vmem:[#allocation8 + $0x1b8] sm:$0xff]
    %v1197 = vld [vmem:[#allocation8 + $0x1c0] sm:$0xff]
    %v1198 = vld [vmem:[#allocation8 + $0x1c8] sm:$0xff]
    %v1199 = vld [vmem:[#allocation8 + $0x1d0] sm:$0xff]
    %v1200 = vld [vmem:[#allocation8 + $0x1d8] sm:$0xff]
    %v1201 = vld [vmem:[#allocation8 + $0x1e0] sm:$0xff]
    %v1202 = vld [vmem:[#allocation8 + $0x1e8] sm:$0xff]
    %v1203 = vld [vmem:[#allocation8 + $0x1f0] sm:$0xff]
    %v1204 = vld [vmem:[#allocation8 + $0x1f8] sm:$0xff]
    %1205 = vmatprep.subr.mxu0 %v1202
    %1206 = vmatpush1.msra.mxu0 %v1201
    %1207 = vmatprep.subr.mxu0 %v1198
    %1208 = vmatpush1.msra.mxu0 %v1197
    %1209 = vmatprep.subr.mxu0 %v1194
    %1210 = vmatpush1.msra.mxu0 %v1193
    %1211 = vmatprep.subr.mxu0 %v1190
    %1212 = vmatpush1.msra.mxu0 %v1189
    %1213 = vmatprep.subr.mxu0 %v1186
    %1214 = vmatpush1.msra.mxu0 %v1185
    %1215 = vmatprep.subr.mxu0 %v1182
    %1216 = vmatpush1.msra.mxu0 %v1181
    %1217 = vmatprep.subr.mxu0 %v1178
    %1218 = vmatpush1.msra.mxu0 %v1177
    %1219 = vmatprep.subr.mxu0 %v1174
    %1220 = vmatpush1.msra.mxu0 %v1173
    %1221 = vmatprep.subr.mxu0 %v1170
    %1222 = vmatpush1.msra.mxu0 %v1169
    %1223 = vmatprep.subr.mxu0 %v1166
    %1224 = vmatpush1.msra.mxu0 %v1165
    %1225 = vmatprep.subr.mxu0 %v1162
    %1226 = vmatpush1.msra.mxu0 %v1161
    %1227 = vmatprep.subr.mxu0 %v1158
    %1228 = vmatpush1.msra.mxu0 %v1157
    %1229 = vmatprep.subr.mxu0 %v1154
    %1230 = vmatpush1.msra.mxu0 %v1153
    %1231 = vmatprep.subr.mxu0 %v1150
    %1232 = vmatpush1.msra.mxu0 %v1149
    %1233 = vmatprep.subr.mxu0 %v1146
    %1234 = vmatpush1.msra.mxu0 %v1145
    %1235 = vmatprep.subr.mxu0 %v1142
    %1236 = vmatpush1.msra.mxu0 %v1141
    %1237 = vmatprep.subr.mxu0 0.0
    %1238 = vmatpush2.msra.mxu0 0.0
    %1239 = vmatprep.subr.mxu0 0.0
    %1240 = vmatpush2.msra.mxu0 0.0
    %1241 = vmatprep.subr.mxu0 0.0
    %1242 = vmatpush2.msra.mxu0 0.0
    %1243 = vmatprep.subr.mxu0 0.0
    %1244 = vmatpush2.msra.mxu0 0.0
    %1245 = vmatprep.subr.mxu0 0.0
    %1246 = vmatpush2.msra.mxu0 0.0
    %1247 = vmatprep.subr.mxu0 0.0
    %1248 = vmatpush2.msra.mxu0 0.0
    %1249 = vmatprep.subr.mxu0 0.0
    %1250 = vmatpush2.msra.mxu0 0.0
    %1251 = vmatprep.subr.mxu0 0.0
    %1252 = vmatpush2.msra.mxu0 0.0
    %1253 = vmatprep.subr.mxu0 0.0
    %1254 = vmatpush2.msra.mxu0 0.0
    %1255 = vmatprep.subr.mxu0 0.0
    %1256 = vmatpush2.msra.mxu0 0.0
    %1257 = vmatprep.subr.mxu0 0.0
    %1258 = vmatpush2.msra.mxu0 0.0
    %1259 = vmatprep.subr.mxu0 0.0
    %1260 = vmatpush2.msra.mxu0 0.0
    %1261 = vmatprep.subr.mxu0 0.0
    %1262 = vmatpush2.msra.mxu0 0.0
    %1263 = vmatprep.subr.mxu0 0.0
    %1264 = vmatpush2.msra.mxu0 0.0
    %1265 = vmatprep.subr.mxu0 0.0
    %1266 = vmatpush2.msra.mxu0 0.0
    %1267 = vmatprep.subr.mxu0 0.0
    %1268 = vmatpush2.msra.mxu0 0.0
    %1269 = vmatprep.mubr.f32.mxu0 0.0
    %1270 = vmatmul.mubr.f32.gmra.mxu0 %v1133
    %v1271 = vpop.f32.mrf.mxu0
    %v1272 = vadd.f32 0.0, %v1271
    %v1273 = vpop.f32.mrf.mxu0
    %v1274 = vadd.f32 0.0, %v1273
    %1275 = vdwg.mxu0
    %1276 = vmatprep.subr.mxu0 %v1204
    %1277 = vmatpush1.msra.mxu0 %v1203
    %1278 = vmatprep.subr.mxu0 %v1200
    %1279 = vmatpush1.msra.mxu0 %v1199
    %1280 = vmatprep.subr.mxu0 %v1196
    %1281 = vmatpush1.msra.mxu0 %v1195
    %1282 = vmatprep.subr.mxu0 %v1192
    %1283 = vmatpush1.msra.mxu0 %v1191
    %1284 = vmatprep.subr.mxu0 %v1188
    %1285 = vmatpush1.msra.mxu0 %v1187
    %1286 = vmatprep.subr.mxu0 %v1184
    %1287 = vmatpush1.msra.mxu0 %v1183
    %1288 = vmatprep.subr.mxu0 %v1180
    %1289 = vmatpush1.msra.mxu0 %v1179
    %1290 = vmatprep.subr.mxu0 %v1176
    %1291 = vmatpush1.msra.mxu0 %v1175
    %1292 = vmatprep.subr.mxu0 %v1172
    %1293 = vmatpush1.msra.mxu0 %v1171
    %1294 = vmatprep.subr.mxu0 %v1168
    %1295 = vmatpush1.msra.mxu0 %v1167
    %1296 = vmatprep.subr.mxu0 %v1164
    %1297 = vmatpush1.msra.mxu0 %v1163
    %1298 = vmatprep.subr.mxu0 %v1160
    %1299 = vmatpush1.msra.mxu0 %v1159
    %1300 = vmatprep.subr.mxu0 %v1156
    %1301 = vmatpush1.msra.mxu0 %v1155
    %1302 = vmatprep.subr.mxu0 %v1152
    %1303 = vmatpush1.msra.mxu0 %v1151
    %1304 = vmatprep.subr.mxu0 %v1148
    %1305 = vmatpush1.msra.mxu0 %v1147
    %1306 = vmatprep.subr.mxu0 %v1144
    %1307 = vmatpush1.msra.mxu0 %v1143
    %1308 = vmatprep.subr.mxu0 0.0
    %1309 = vmatpush2.msra.mxu0 0.0
    %1310 = vmatprep.subr.mxu0 0.0
    %1311 = vmatpush2.msra.mxu0 0.0
    %1312 = vmatprep.subr.mxu0 0.0
    %1313 = vmatpush2.msra.mxu0 0.0
    %1314 = vmatprep.subr.mxu0 0.0
    %1315 = vmatpush2.msra.mxu0 0.0
    %1316 = vmatprep.subr.mxu0 0.0
    %1317 = vmatpush2.msra.mxu0 0.0
    %1318 = vmatprep.subr.mxu0 0.0
    %1319 = vmatpush2.msra.mxu0 0.0
    %1320 = vmatprep.subr.mxu0 0.0
    %1321 = vmatpush2.msra.mxu0 0.0
    %1322 = vmatprep.subr.mxu0 0.0
    %1323 = vmatpush2.msra.mxu0 0.0
    %1324 = vmatprep.subr.mxu0 0.0
    %1325 = vmatpush2.msra.mxu0 0.0
    %1326 = vmatprep.subr.mxu0 0.0
    %1327 = vmatpush2.msra.mxu0 0.0
    %1328 = vmatprep.subr.mxu0 0.0
    %1329 = vmatpush2.msra.mxu0 0.0
    %1330 = vmatprep.subr.mxu0 0.0
    %1331 = vmatpush2.msra.mxu0 0.0
    %1332 = vmatprep.subr.mxu0 0.0
    %1333 = vmatpush2.msra.mxu0 0.0
    %1334 = vmatprep.subr.mxu0 0.0
    %1335 = vmatpush2.msra.mxu0 0.0
    %1336 = vmatprep.subr.mxu0 0.0
    %1337 = vmatpush2.msra.mxu0 0.0
    %1338 = vmatprep.subr.mxu0 0.0
    %1339 = vmatpush2.msra.mxu0 0.0
    %1340 = vmatprep.mubr.f32.mxu0 0.0
    %1341 = vmatmul.mubr.f32.gmra.mxu0 %v1133
    %v1342 = vpop.f32.mrf.mxu0
    %v1343 = vadd.f32 0.0, %v1342
    %v1344 = vpop.f32.mrf.mxu0
    %v1345 = vadd.f32 0.0, %v1344
    %1346 = vdwg.mxu0
    %v1347 = vadd.f32 %v1137, %v1272
    %v1348 = vadd.f32 %v1138, %v1274
    %v1349 = vadd.f32 %v1139, %v1343
    %v1350 = vadd.f32 %v1140, %v1345
    %v1351 = vxor.u32 %v1347, 2147483648
    %v1352 = vmul.f32 %v1351, 1.442695
    %v1353 = vpow.pop %v1352
    %v1354 = vadd.f32 %v1353, 1.0
    %v1355 = vrcp.pop %v1354
    %v1356 = vmul.f32 1.0, %v1355
    %v1357 = vxor.u32 %v1348, 2147483648
    %v1358 = vmul.f32 %v1357, 1.442695
    %v1359 = vpow.pop %v1358
    %v1360 = vadd.f32 %v1359, 1.0
    %v1361 = vrcp.pop %v1360
    %v1362 = vmul.f32 1.0, %v1361
    %v1363 = vtanh.pop %v1349
    %v1364 = vxor.u32 %v1350, 2147483648
    %v1365 = vmul.f32 %v1364, 1.442695
    %v1366 = vpow.pop %v1365
    %v1367 = vadd.f32 %v1366, 1.0
    %v1368 = vrcp.pop %v1367
    %v1369 = vmul.f32 1.0, %v1368
    %v1370 = vmul.f32 %v1362, %v1131
    %v1371 = vmul.f32 %v1356, %v1363
    %v1372 = vadd.f32 %v1370, %v1371
    %v1373 = vtanh.pop %v1372
    %v1374 = vmul.f32 %v1369, %v1373
    %s1375 = scalar_lea.vmem [#allocation9], 24
    %1376 = vst [vmem:[%s1375] sm:$0xff] %v1374
    %s1377 = scalar_lea.vmem [#allocation2], 128
    %v1378 = vld [vmem:[%s1377] sm:$0xff]
    %v1379 = vld [vmem:[%s1377 + $0x8] sm:$0xff]
    %v1380 = vld [vmem:[%s1377 + $0x10] sm:$0xff]
    %v1381 = vld [vmem:[%s1377 + $0x18] sm:$0xff]
    %v1382 = vld [vmem:[#allocation8] sm:$0xff]
    %v1383 = vld [vmem:[#allocation8 + $0x8] sm:$0xff]
    %v1384 = vld [vmem:[#allocation8 + $0x10] sm:$0xff]
    %v1385 = vld [vmem:[#allocation8 + $0x18] sm:$0xff]
    %v1386 = vld [vmem:[#allocation8 + $0x20] sm:$0xff]
    %v1387 = vld [vmem:[#allocation8 + $0x28] sm:$0xff]
    %v1388 = vld [vmem:[#allocation8 + $0x30] sm:$0xff]
    %v1389 = vld [vmem:[#allocation8 + $0x38] sm:$0xff]
    %v1390 = vld [vmem:[#allocation8 + $0x40] sm:$0xff]
    %v1391 = vld [vmem:[#allocation8 + $0x48] sm:$0xff]
    %v1392 = vld [vmem:[#allocation8 + $0x50] sm:$0xff]
    %v1393 = vld [vmem:[#allocation8 + $0x58] sm:$0xff]
    %v1394 = vld [vmem:[#allocation8 + $0x60] sm:$0xff]
    %v1395 = vld [vmem:[#allocation8 + $0x68] sm:$0xff]
    %v1396 = vld [vmem:[#allocation8 + $0x70] sm:$0xff]
    %v1397 = vld [vmem:[#allocation8 + $0x78] sm:$0xff]
    %v1398 = vld [vmem:[#allocation8 + $0x80] sm:$0xff]
    %v1399 = vld [vmem:[#allocation8 + $0x88] sm:$0xff]
    %v1400 = vld [vmem:[#allocation8 + $0x90] sm:$0xff]
    %v1401 = vld [vmem:[#allocation8 + $0x98] sm:$0xff]
    %v1402 = vld [vmem:[#allocation8 + $0xa0] sm:$0xff]
    %v1403 = vld [vmem:[#allocation8 + $0xa8] sm:$0xff]
    %v1404 = vld [vmem:[#allocation8 + $0xb0] sm:$0xff]
    %v1405 = vld [vmem:[#allocation8 + $0xb8] sm:$0xff]
    %v1406 = vld [vmem:[#allocation8 + $0xc0] sm:$0xff]
    %v1407 = vld [vmem:[#allocation8 + $0xc8] sm:$0xff]
    %v1408 = vld [vmem:[#allocation8 + $0xd0] sm:$0xff]
    %v1409 = vld [vmem:[#allocation8 + $0xd8] sm:$0xff]
    %v1410 = vld [vmem:[#allocation8 + $0xe0] sm:$0xff]
    %v1411 = vld [vmem:[#allocation8 + $0xe8] sm:$0xff]
    %v1412 = vld [vmem:[#allocation8 + $0xf0] sm:$0xff]
    %v1413 = vld [vmem:[#allocation8 + $0xf8] sm:$0xff]
    %v1414 = vld [vmem:[#allocation8 + $0x100] sm:$0xff]
    %v1415 = vld [vmem:[#allocation8 + $0x108] sm:$0xff]
    %v1416 = vld [vmem:[#allocation8 + $0x110] sm:$0xff]
    %v1417 = vld [vmem:[#allocation8 + $0x118] sm:$0xff]
    %v1418 = vld [vmem:[#allocation8 + $0x120] sm:$0xff]
    %v1419 = vld [vmem:[#allocation8 + $0x128] sm:$0xff]
    %v1420 = vld [vmem:[#allocation8 + $0x130] sm:$0xff]
    %v1421 = vld [vmem:[#allocation8 + $0x138] sm:$0xff]
    %v1422 = vld [vmem:[#allocation8 + $0x140] sm:$0xff]
    %v1423 = vld [vmem:[#allocation8 + $0x148] sm:$0xff]
    %v1424 = vld [vmem:[#allocation8 + $0x150] sm:$0xff]
    %v1425 = vld [vmem:[#allocation8 + $0x158] sm:$0xff]
    %v1426 = vld [vmem:[#allocation8 + $0x160] sm:$0xff]
    %v1427 = vld [vmem:[#allocation8 + $0x168] sm:$0xff]
    %v1428 = vld [vmem:[#allocation8 + $0x170] sm:$0xff]
    %v1429 = vld [vmem:[#allocation8 + $0x178] sm:$0xff]
    %v1430 = vld [vmem:[#allocation8 + $0x180] sm:$0xff]
    %v1431 = vld [vmem:[#allocation8 + $0x188] sm:$0xff]
    %v1432 = vld [vmem:[#allocation8 + $0x190] sm:$0xff]
    %v1433 = vld [vmem:[#allocation8 + $0x198] sm:$0xff]
    %v1434 = vld [vmem:[#allocation8 + $0x1a0] sm:$0xff]
    %v1435 = vld [vmem:[#allocation8 + $0x1a8] sm:$0xff]
    %v1436 = vld [vmem:[#allocation8 + $0x1b0] sm:$0xff]
    %v1437 = vld [vmem:[#allocation8 + $0x1b8] sm:$0xff]
    %v1438 = vld [vmem:[#allocation8 + $0x1c0] sm:$0xff]
    %v1439 = vld [vmem:[#allocation8 + $0x1c8] sm:$0xff]
    %v1440 = vld [vmem:[#allocation8 + $0x1d0] sm:$0xff]
    %v1441 = vld [vmem:[#allocation8 + $0x1d8] sm:$0xff]
    %v1442 = vld [vmem:[#allocation8 + $0x1e0] sm:$0xff]
    %v1443 = vld [vmem:[#allocation8 + $0x1e8] sm:$0xff]
    %v1444 = vld [vmem:[#allocation8 + $0x1f0] sm:$0xff]
    %v1445 = vld [vmem:[#allocation8 + $0x1f8] sm:$0xff]
    %1446 = vmatprep.subr.mxu0 %v1443
    %1447 = vmatpush1.msra.mxu0 %v1442
    %1448 = vmatprep.subr.mxu0 %v1439
    %1449 = vmatpush1.msra.mxu0 %v1438
    %1450 = vmatprep.subr.mxu0 %v1435
    %1451 = vmatpush1.msra.mxu0 %v1434
    %1452 = vmatprep.subr.mxu0 %v1431
    %1453 = vmatpush1.msra.mxu0 %v1430
    %1454 = vmatprep.subr.mxu0 %v1427
    %1455 = vmatpush1.msra.mxu0 %v1426
    %1456 = vmatprep.subr.mxu0 %v1423
    %1457 = vmatpush1.msra.mxu0 %v1422
    %1458 = vmatprep.subr.mxu0 %v1419
    %1459 = vmatpush1.msra.mxu0 %v1418
    %1460 = vmatprep.subr.mxu0 %v1415
    %1461 = vmatpush1.msra.mxu0 %v1414
    %1462 = vmatprep.subr.mxu0 %v1411
    %1463 = vmatpush1.msra.mxu0 %v1410
    %1464 = vmatprep.subr.mxu0 %v1407
    %1465 = vmatpush1.msra.mxu0 %v1406
    %1466 = vmatprep.subr.mxu0 %v1403
    %1467 = vmatpush1.msra.mxu0 %v1402
    %1468 = vmatprep.subr.mxu0 %v1399
    %1469 = vmatpush1.msra.mxu0 %v1398
    %1470 = vmatprep.subr.mxu0 %v1395
    %1471 = vmatpush1.msra.mxu0 %v1394
    %1472 = vmatprep.subr.mxu0 %v1391
    %1473 = vmatpush1.msra.mxu0 %v1390
    %1474 = vmatprep.subr.mxu0 %v1387
    %1475 = vmatpush1.msra.mxu0 %v1386
    %1476 = vmatprep.subr.mxu0 %v1383
    %1477 = vmatpush1.msra.mxu0 %v1382
    %1478 = vmatprep.subr.mxu0 0.0
    %1479 = vmatpush2.msra.mxu0 0.0
    %1480 = vmatprep.subr.mxu0 0.0
    %1481 = vmatpush2.msra.mxu0 0.0
    %1482 = vmatprep.subr.mxu0 0.0
    %1483 = vmatpush2.msra.mxu0 0.0
    %1484 = vmatprep.subr.mxu0 0.0
    %1485 = vmatpush2.msra.mxu0 0.0
    %1486 = vmatprep.subr.mxu0 0.0
    %1487 = vmatpush2.msra.mxu0 0.0
    %1488 = vmatprep.subr.mxu0 0.0
    %1489 = vmatpush2.msra.mxu0 0.0
    %1490 = vmatprep.subr.mxu0 0.0
    %1491 = vmatpush2.msra.mxu0 0.0
    %1492 = vmatprep.subr.mxu0 0.0
    %1493 = vmatpush2.msra.mxu0 0.0
    %1494 = vmatprep.subr.mxu0 0.0
    %1495 = vmatpush2.msra.mxu0 0.0
    %1496 = vmatprep.subr.mxu0 0.0
    %1497 = vmatpush2.msra.mxu0 0.0
    %1498 = vmatprep.subr.mxu0 0.0
    %1499 = vmatpush2.msra.mxu0 0.0
    %1500 = vmatprep.subr.mxu0 0.0
    %1501 = vmatpush2.msra.mxu0 0.0
    %1502 = vmatprep.subr.mxu0 0.0
    %1503 = vmatpush2.msra.mxu0 0.0
    %1504 = vmatprep.subr.mxu0 0.0
    %1505 = vmatpush2.msra.mxu0 0.0
    %1506 = vmatprep.subr.mxu0 0.0
    %1507 = vmatpush2.msra.mxu0 0.0
    %1508 = vmatprep.subr.mxu0 0.0
    %1509 = vmatpush2.msra.mxu0 0.0
    %1510 = vmatprep.mubr.f32.mxu0 0.0
    %1511 = vmatmul.mubr.f32.gmra.mxu0 %v1374
    %v1512 = vpop.f32.mrf.mxu0
    %v1513 = vadd.f32 0.0, %v1512
    %v1514 = vpop.f32.mrf.mxu0
    %v1515 = vadd.f32 0.0, %v1514
    %1516 = vdwg.mxu0
    %1517 = vmatprep.subr.mxu0 %v1445
    %1518 = vmatpush1.msra.mxu0 %v1444
    %1519 = vmatprep.subr.mxu0 %v1441
    %1520 = vmatpush1.msra.mxu0 %v1440
    %1521 = vmatprep.subr.mxu0 %v1437
    %1522 = vmatpush1.msra.mxu0 %v1436
    %1523 = vmatprep.subr.mxu0 %v1433
    %1524 = vmatpush1.msra.mxu0 %v1432
    %1525 = vmatprep.subr.mxu0 %v1429
    %1526 = vmatpush1.msra.mxu0 %v1428
    %1527 = vmatprep.subr.mxu0 %v1425
    %1528 = vmatpush1.msra.mxu0 %v1424
    %1529 = vmatprep.subr.mxu0 %v1421
    %1530 = vmatpush1.msra.mxu0 %v1420
    %1531 = vmatprep.subr.mxu0 %v1417
    %1532 = vmatpush1.msra.mxu0 %v1416
    %1533 = vmatprep.subr.mxu0 %v1413
    %1534 = vmatpush1.msra.mxu0 %v1412
    %1535 = vmatprep.subr.mxu0 %v1409
    %1536 = vmatpush1.msra.mxu0 %v1408
    %1537 = vmatprep.subr.mxu0 %v1405
    %1538 = vmatpush1.msra.mxu0 %v1404
    %1539 = vmatprep.subr.mxu0 %v1401
    %1540 = vmatpush1.msra.mxu0 %v1400
    %1541 = vmatprep.subr.mxu0 %v1397
    %1542 = vmatpush1.msra.mxu0 %v1396
    %1543 = vmatprep.subr.mxu0 %v1393
    %1544 = vmatpush1.msra.mxu0 %v1392
    %1545 = vmatprep.subr.mxu0 %v1389
    %1546 = vmatpush1.msra.mxu0 %v1388
    %1547 = vmatprep.subr.mxu0 %v1385
    %1548 = vmatpush1.msra.mxu0 %v1384
    %1549 = vmatprep.subr.mxu0 0.0
    %1550 = vmatpush2.msra.mxu0 0.0
    %1551 = vmatprep.subr.mxu0 0.0
    %1552 = vmatpush2.msra.mxu0 0.0
    %1553 = vmatprep.subr.mxu0 0.0
    %1554 = vmatpush2.msra.mxu0 0.0
    %1555 = vmatprep.subr.mxu0 0.0
    %1556 = vmatpush2.msra.mxu0 0.0
    %1557 = vmatprep.subr.mxu0 0.0
    %1558 = vmatpush2.msra.mxu0 0.0
    %1559 = vmatprep.subr.mxu0 0.0
    %1560 = vmatpush2.msra.mxu0 0.0
    %1561 = vmatprep.subr.mxu0 0.0
    %1562 = vmatpush2.msra.mxu0 0.0
    %1563 = vmatprep.subr.mxu0 0.0
    %1564 = vmatpush2.msra.mxu0 0.0
    %1565 = vmatprep.subr.mxu0 0.0
    %1566 = vmatpush2.msra.mxu0 0.0
    %1567 = vmatprep.subr.mxu0 0.0
    %1568 = vmatpush2.msra.mxu0 0.0
    %1569 = vmatprep.subr.mxu0 0.0
    %1570 = vmatpush2.msra.mxu0 0.0
    %1571 = vmatprep.subr.mxu0 0.0
    %1572 = vmatpush2.msra.mxu0 0.0
    %1573 = vmatprep.subr.mxu0 0.0
    %1574 = vmatpush2.msra.mxu0 0.0
    %1575 = vmatprep.subr.mxu0 0.0
    %1576 = vmatpush2.msra.mxu0 0.0
    %1577 = vmatprep.subr.mxu0 0.0
    %1578 = vmatpush2.msra.mxu0 0.0
    %1579 = vmatprep.subr.mxu0 0.0
    %1580 = vmatpush2.msra.mxu0 0.0
    %1581 = vmatprep.mubr.f32.mxu0 0.0
    %1582 = vmatmul.mubr.f32.gmra.mxu0 %v1374
    %v1583 = vpop.f32.mrf.mxu0
    %v1584 = vadd.f32 0.0, %v1583
    %v1585 = vpop.f32.mrf.mxu0
    %v1586 = vadd.f32 0.0, %v1585
    %1587 = vdwg.mxu0
    %v1588 = vadd.f32 %v1378, %v1513
    %v1589 = vadd.f32 %v1379, %v1515
    %v1590 = vadd.f32 %v1380, %v1584
    %v1591 = vadd.f32 %v1381, %v1586
    %v1592 = vxor.u32 %v1588, 2147483648
    %v1593 = vmul.f32 %v1592, 1.442695
    %v1594 = vpow.pop %v1593
    %v1595 = vadd.f32 %v1594, 1.0
    %v1596 = vrcp.pop %v1595
    %v1597 = vmul.f32 1.0, %v1596
    %v1598 = vxor.u32 %v1589, 2147483648
    %v1599 = vmul.f32 %v1598, 1.442695
    %v1600 = vpow.pop %v1599
    %v1601 = vadd.f32 %v1600, 1.0
    %v1602 = vrcp.pop %v1601
    %v1603 = vmul.f32 1.0, %v1602
    %v1604 = vtanh.pop %v1590
    %v1605 = vxor.u32 %v1591, 2147483648
    %v1606 = vmul.f32 %v1605, 1.442695
    %v1607 = vpow.pop %v1606
    %v1608 = vadd.f32 %v1607, 1.0
    %v1609 = vrcp.pop %v1608
    %v1610 = vmul.f32 1.0, %v1609
    %v1611 = vmul.f32 %v1603, %v1372
    %v1612 = vmul.f32 %v1597, %v1604
    %v1613 = vadd.f32 %v1611, %v1612
    %v1614 = vtanh.pop %v1613
    %v1615 = vmul.f32 %v1610, %v1614
    %s1616 = scalar_lea.vmem [#allocation9], 32
    %1617 = vst [vmem:[%s1616] sm:$0xff] %v1615
    %s1618 = scalar_lea.vmem [#allocation2], 160
    %v1619 = vld [vmem:[%s1618] sm:$0xff]
    %v1620 = vld [vmem:[%s1618 + $0x8] sm:$0xff]
    %v1621 = vld [vmem:[%s1618 + $0x10] sm:$0xff]
    %v1622 = vld [vmem:[%s1618 + $0x18] sm:$0xff]
    %v1623 = vld [vmem:[#allocation8] sm:$0xff]
    %v1624 = vld [vmem:[#allocation8 + $0x8] sm:$0xff]
    %v1625 = vld [vmem:[#allocation8 + $0x10] sm:$0xff]
    %v1626 = vld [vmem:[#allocation8 + $0x18] sm:$0xff]
    %v1627 = vld [vmem:[#allocation8 + $0x20] sm:$0xff]
    %v1628 = vld [vmem:[#allocation8 + $0x28] sm:$0xff]
    %v1629 = vld [vmem:[#allocation8 + $0x30] sm:$0xff]
    %v1630 = vld [vmem:[#allocation8 + $0x38] sm:$0xff]
    %v1631 = vld [vmem:[#allocation8 + $0x40] sm:$0xff]
    %v1632 = vld [vmem:[#allocation8 + $0x48] sm:$0xff]
    %v1633 = vld [vmem:[#allocation8 + $0x50] sm:$0xff]
    %v1634 = vld [vmem:[#allocation8 + $0x58] sm:$0xff]
    %v1635 = vld [vmem:[#allocation8 + $0x60] sm:$0xff]
    %v1636 = vld [vmem:[#allocation8 + $0x68] sm:$0xff]
    %v1637 = vld [vmem:[#allocation8 + $0x70] sm:$0xff]
    %v1638 = vld [vmem:[#allocation8 + $0x78] sm:$0xff]
    %v1639 = vld [vmem:[#allocation8 + $0x80] sm:$0xff]
    %v1640 = vld [vmem:[#allocation8 + $0x88] sm:$0xff]
    %v1641 = vld [vmem:[#allocation8 + $0x90] sm:$0xff]
    %v1642 = vld [vmem:[#allocation8 + $0x98] sm:$0xff]
    %v1643 = vld [vmem:[#allocation8 + $0xa0] sm:$0xff]
    %v1644 = vld [vmem:[#allocation8 + $0xa8] sm:$0xff]
    %v1645 = vld [vmem:[#allocation8 + $0xb0] sm:$0xff]
    %v1646 = vld [vmem:[#allocation8 + $0xb8] sm:$0xff]
    %v1647 = vld [vmem:[#allocation8 + $0xc0] sm:$0xff]
    %v1648 = vld [vmem:[#allocation8 + $0xc8] sm:$0xff]
    %v1649 = vld [vmem:[#allocation8 + $0xd0] sm:$0xff]
    %v1650 = vld [vmem:[#allocation8 + $0xd8] sm:$0xff]
    %v1651 = vld [vmem:[#allocation8 + $0xe0] sm:$0xff]
    %v1652 = vld [vmem:[#allocation8 + $0xe8] sm:$0xff]
    %v1653 = vld [vmem:[#allocation8 + $0xf0] sm:$0xff]
    %v1654 = vld [vmem:[#allocation8 + $0xf8] sm:$0xff]
    %v1655 = vld [vmem:[#allocation8 + $0x100] sm:$0xff]
    %v1656 = vld [vmem:[#allocation8 + $0x108] sm:$0xff]
    %v1657 = vld [vmem:[#allocation8 + $0x110] sm:$0xff]
    %v1658 = vld [vmem:[#allocation8 + $0x118] sm:$0xff]
    %v1659 = vld [vmem:[#allocation8 + $0x120] sm:$0xff]
    %v1660 = vld [vmem:[#allocation8 + $0x128] sm:$0xff]
    %v1661 = vld [vmem:[#allocation8 + $0x130] sm:$0xff]
    %v1662 = vld [vmem:[#allocation8 + $0x138] sm:$0xff]
    %v1663 = vld [vmem:[#allocation8 + $0x140] sm:$0xff]
    %v1664 = vld [vmem:[#allocation8 + $0x148] sm:$0xff]
    %v1665 = vld [vmem:[#allocation8 + $0x150] sm:$0xff]
    %v1666 = vld [vmem:[#allocation8 + $0x158] sm:$0xff]
    %v1667 = vld [vmem:[#allocation8 + $0x160] sm:$0xff]
    %v1668 = vld [vmem:[#allocation8 + $0x168] sm:$0xff]
    %v1669 = vld [vmem:[#allocation8 + $0x170] sm:$0xff]
    %v1670 = vld [vmem:[#allocation8 + $0x178] sm:$0xff]
    %v1671 = vld [vmem:[#allocation8 + $0x180] sm:$0xff]
    %v1672 = vld [vmem:[#allocation8 + $0x188] sm:$0xff]
    %v1673 = vld [vmem:[#allocation8 + $0x190] sm:$0xff]
    %v1674 = vld [vmem:[#allocation8 + $0x198] sm:$0xff]
    %v1675 = vld [vmem:[#allocation8 + $0x1a0] sm:$0xff]
    %v1676 = vld [vmem:[#allocation8 + $0x1a8] sm:$0xff]
    %v1677 = vld [vmem:[#allocation8 + $0x1b0] sm:$0xff]
    %v1678 = vld [vmem:[#allocation8 + $0x1b8] sm:$0xff]
    %v1679 = vld [vmem:[#allocation8 + $0x1c0] sm:$0xff]
    %v1680 = vld [vmem:[#allocation8 + $0x1c8] sm:$0xff]
    %v1681 = vld [vmem:[#allocation8 + $0x1d0] sm:$0xff]
    %v1682 = vld [vmem:[#allocation8 + $0x1d8] sm:$0xff]
    %v1683 = vld [vmem:[#allocation8 + $0x1e0] sm:$0xff]
    %v1684 = vld [vmem:[#allocation8 + $0x1e8] sm:$0xff]
    %v1685 = vld [vmem:[#allocation8 + $0x1f0] sm:$0xff]
    %v1686 = vld [vmem:[#allocation8 + $0x1f8] sm:$0xff]
    %1687 = vmatprep.subr.mxu0 %v1684
    %1688 = vmatpush1.msra.mxu0 %v1683
    %1689 = vmatprep.subr.mxu0 %v1680
    %1690 = vmatpush1.msra.mxu0 %v1679
    %1691 = vmatprep.subr.mxu0 %v1676
    %1692 = vmatpush1.msra.mxu0 %v1675
    %1693 = vmatprep.subr.mxu0 %v1672
    %1694 = vmatpush1.msra.mxu0 %v1671
    %1695 = vmatprep.subr.mxu0 %v1668
    %1696 = vmatpush1.msra.mxu0 %v1667
    %1697 = vmatprep.subr.mxu0 %v1664
    %1698 = vmatpush1.msra.mxu0 %v1663
    %1699 = vmatprep.subr.mxu0 %v1660
    %1700 = vmatpush1.msra.mxu0 %v1659
    %1701 = vmatprep.subr.mxu0 %v1656
    %1702 = vmatpush1.msra.mxu0 %v1655
    %1703 = vmatprep.subr.mxu0 %v1652
    %1704 = vmatpush1.msra.mxu0 %v1651
    %1705 = vmatprep.subr.mxu0 %v1648
    %1706 = vmatpush1.msra.mxu0 %v1647
    %1707 = vmatprep.subr.mxu0 %v1644
    %1708 = vmatpush1.msra.mxu0 %v1643
    %1709 = vmatprep.subr.mxu0 %v1640
    %1710 = vmatpush1.msra.mxu0 %v1639
    %1711 = vmatprep.subr.mxu0 %v1636
    %1712 = vmatpush1.msra.mxu0 %v1635
    %1713 = vmatprep.subr.mxu0 %v1632
    %1714 = vmatpush1.msra.mxu0 %v1631
    %1715 = vmatprep.subr.mxu0 %v1628
    %1716 = vmatpush1.msra.mxu0 %v1627
    %1717 = vmatprep.subr.mxu0 %v1624
    %1718 = vmatpush1.msra.mxu0 %v1623
    %1719 = vmatprep.subr.mxu0 0.0
    %1720 = vmatpush2.msra.mxu0 0.0
    %1721 = vmatprep.subr.mxu0 0.0
    %1722 = vmatpush2.msra.mxu0 0.0
    %1723 = vmatprep.subr.mxu0 0.0
    %1724 = vmatpush2.msra.mxu0 0.0
    %1725 = vmatprep.subr.mxu0 0.0
    %1726 = vmatpush2.msra.mxu0 0.0
    %1727 = vmatprep.subr.mxu0 0.0
    %1728 = vmatpush2.msra.mxu0 0.0
    %1729 = vmatprep.subr.mxu0 0.0
    %1730 = vmatpush2.msra.mxu0 0.0
    %1731 = vmatprep.subr.mxu0 0.0
    %1732 = vmatpush2.msra.mxu0 0.0
    %1733 = vmatprep.subr.mxu0 0.0
    %1734 = vmatpush2.msra.mxu0 0.0
    %1735 = vmatprep.subr.mxu0 0.0
    %1736 = vmatpush2.msra.mxu0 0.0
    %1737 = vmatprep.subr.mxu0 0.0
    %1738 = vmatpush2.msra.mxu0 0.0
    %1739 = vmatprep.subr.mxu0 0.0
    %1740 = vmatpush2.msra.mxu0 0.0
    %1741 = vmatprep.subr.mxu0 0.0
    %1742 = vmatpush2.msra.mxu0 0.0
    %1743 = vmatprep.subr.mxu0 0.0
    %1744 = vmatpush2.msra.mxu0 0.0
    %1745 = vmatprep.subr.mxu0 0.0
    %1746 = vmatpush2.msra.mxu0 0.0
    %1747 = vmatprep.subr.mxu0 0.0
    %1748 = vmatpush2.msra.mxu0 0.0
    %1749 = vmatprep.subr.mxu0 0.0
    %1750 = vmatpush2.msra.mxu0 0.0
    %1751 = vmatprep.mubr.f32.mxu0 0.0
    %1752 = vmatmul.mubr.f32.gmra.mxu0 %v1615
    %v1753 = vpop.f32.mrf.mxu0
    %v1754 = vadd.f32 0.0, %v1753
    %v1755 = vpop.f32.mrf.mxu0
    %v1756 = vadd.f32 0.0, %v1755
    %1757 = vdwg.mxu0
    %1758 = vmatprep.subr.mxu0 %v1686
    %1759 = vmatpush1.msra.mxu0 %v1685
    %1760 = vmatprep.subr.mxu0 %v1682
    %1761 = vmatpush1.msra.mxu0 %v1681
    %1762 = vmatprep.subr.mxu0 %v1678
    %1763 = vmatpush1.msra.mxu0 %v1677
    %1764 = vmatprep.subr.mxu0 %v1674
    %1765 = vmatpush1.msra.mxu0 %v1673
    %1766 = vmatprep.subr.mxu0 %v1670
    %1767 = vmatpush1.msra.mxu0 %v1669
    %1768 = vmatprep.subr.mxu0 %v1666
    %1769 = vmatpush1.msra.mxu0 %v1665
    %1770 = vmatprep.subr.mxu0 %v1662
    %1771 = vmatpush1.msra.mxu0 %v1661
    %1772 = vmatprep.subr.mxu0 %v1658
    %1773 = vmatpush1.msra.mxu0 %v1657
    %1774 = vmatprep.subr.mxu0 %v1654
    %1775 = vmatpush1.msra.mxu0 %v1653
    %1776 = vmatprep.subr.mxu0 %v1650
    %1777 = vmatpush1.msra.mxu0 %v1649
    %1778 = vmatprep.subr.mxu0 %v1646
    %1779 = vmatpush1.msra.mxu0 %v1645
    %1780 = vmatprep.subr.mxu0 %v1642
    %1781 = vmatpush1.msra.mxu0 %v1641
    %1782 = vmatprep.subr.mxu0 %v1638
    %1783 = vmatpush1.msra.mxu0 %v1637
    %1784 = vmatprep.subr.mxu0 %v1634
    %1785 = vmatpush1.msra.mxu0 %v1633
    %1786 = vmatprep.subr.mxu0 %v1630
    %1787 = vmatpush1.msra.mxu0 %v1629
    %1788 = vmatprep.subr.mxu0 %v1626
    %1789 = vmatpush1.msra.mxu0 %v1625
    %1790 = vmatprep.subr.mxu0 0.0
    %1791 = vmatpush2.msra.mxu0 0.0
    %1792 = vmatprep.subr.mxu0 0.0
    %1793 = vmatpush2.msra.mxu0 0.0
    %1794 = vmatprep.subr.mxu0 0.0
    %1795 = vmatpush2.msra.mxu0 0.0
    %1796 = vmatprep.subr.mxu0 0.0
    %1797 = vmatpush2.msra.mxu0 0.0
    %1798 = vmatprep.subr.mxu0 0.0
    %1799 = vmatpush2.msra.mxu0 0.0
    %1800 = vmatprep.subr.mxu0 0.0
    %1801 = vmatpush2.msra.mxu0 0.0
    %1802 = vmatprep.subr.mxu0 0.0
    %1803 = vmatpush2.msra.mxu0 0.0
    %1804 = vmatprep.subr.mxu0 0.0
    %1805 = vmatpush2.msra.mxu0 0.0
    %1806 = vmatprep.subr.mxu0 0.0
    %1807 = vmatpush2.msra.mxu0 0.0
    %1808 = vmatprep.subr.mxu0 0.0
    %1809 = vmatpush2.msra.mxu0 0.0
    %1810 = vmatprep.subr.mxu0 0.0
    %1811 = vmatpush2.msra.mxu0 0.0
    %1812 = vmatprep.subr.mxu0 0.0
    %1813 = vmatpush2.msra.mxu0 0.0
    %1814 = vmatprep.subr.mxu0 0.0
    %1815 = vmatpush2.msra.mxu0 0.0
    %1816 = vmatprep.subr.mxu0 0.0
    %1817 = vmatpush2.msra.mxu0 0.0
    %1818 = vmatprep.subr.mxu0 0.0
    %1819 = vmatpush2.msra.mxu0 0.0
    %1820 = vmatprep.subr.mxu0 0.0
    %1821 = vmatpush2.msra.mxu0 0.0
    %1822 = vmatprep.mubr.f32.mxu0 0.0
    %1823 = vmatmul.mubr.f32.gmra.mxu0 %v1615
    %v1824 = vpop.f32.mrf.mxu0
    %v1825 = vadd.f32 0.0, %v1824
    %v1826 = vpop.f32.mrf.mxu0
    %v1827 = vadd.f32 0.0, %v1826
    %1828 = vdwg.mxu0
    %v1829 = vadd.f32 %v1619, %v1754
    %v1830 = vadd.f32 %v1620, %v1756
    %v1831 = vadd.f32 %v1621, %v1825
    %v1832 = vadd.f32 %v1622, %v1827
    %v1833 = vxor.u32 %v1829, 2147483648
    %v1834 = vmul.f32 %v1833, 1.442695
    %v1835 = vpow.pop %v1834
    %v1836 = vadd.f32 %v1835, 1.0
    %v1837 = vrcp.pop %v1836
    %v1838 = vmul.f32 1.0, %v1837
    %v1839 = vxor.u32 %v1830, 2147483648
    %v1840 = vmul.f32 %v1839, 1.442695
    %v1841 = vpow.pop %v1840
    %v1842 = vadd.f32 %v1841, 1.0
    %v1843 = vrcp.pop %v1842
    %v1844 = vmul.f32 1.0, %v1843
    %v1845 = vtanh.pop %v1831
    %v1846 = vxor.u32 %v1832, 2147483648
    %v1847 = vmul.f32 %v1846, 1.442695
    %v1848 = vpow.pop %v1847
    %v1849 = vadd.f32 %v1848, 1.0
    %v1850 = vrcp.pop %v1849
    %v1851 = vmul.f32 1.0, %v1850
    %v1852 = vmul.f32 %v1844, %v1613
    %v1853 = vmul.f32 %v1838, %v1845
    %v1854 = vadd.f32 %v1852, %v1853
    %v1855 = vtanh.pop %v1854
    %v1856 = vmul.f32 %v1851, %v1855
    %s1857 = scalar_lea.vmem [#allocation9], 40
    %1858 = vst [vmem:[%s1857] sm:$0xff] %v1856
    %s1859 = scalar_lea.vmem [#allocation2], 192
    %v1860 = vld [vmem:[%s1859] sm:$0xff]
    %v1861 = vld [vmem:[%s1859 + $0x8] sm:$0xff]
    %v1862 = vld [vmem:[%s1859 + $0x10] sm:$0xff]
    %v1863 = vld [vmem:[%s1859 + $0x18] sm:$0xff]
    %v1864 = vld [vmem:[#allocation8] sm:$0xff]
    %v1865 = vld [vmem:[#allocation8 + $0x8] sm:$0xff]
    %v1866 = vld [vmem:[#allocation8 + $0x10] sm:$0xff]
    %v1867 = vld [vmem:[#allocation8 + $0x18] sm:$0xff]
    %v1868 = vld [vmem:[#allocation8 + $0x20] sm:$0xff]
    %v1869 = vld [vmem:[#allocation8 + $0x28] sm:$0xff]
    %v1870 = vld [vmem:[#allocation8 + $0x30] sm:$0xff]
    %v1871 = vld [vmem:[#allocation8 + $0x38] sm:$0xff]
    %v1872 = vld [vmem:[#allocation8 + $0x40] sm:$0xff]
    %v1873 = vld [vmem:[#allocation8 + $0x48] sm:$0xff]
    %v1874 = vld [vmem:[#allocation8 + $0x50] sm:$0xff]
    %v1875 = vld [vmem:[#allocation8 + $0x58] sm:$0xff]
    %v1876 = vld [vmem:[#allocation8 + $0x60] sm:$0xff]
    %v1877 = vld [vmem:[#allocation8 + $0x68] sm:$0xff]
    %v1878 = vld [vmem:[#allocation8 + $0x70] sm:$0xff]
    %v1879 = vld [vmem:[#allocation8 + $0x78] sm:$0xff]
    %v1880 = vld [vmem:[#allocation8 + $0x80] sm:$0xff]
    %v1881 = vld [vmem:[#allocation8 + $0x88] sm:$0xff]
    %v1882 = vld [vmem:[#allocation8 + $0x90] sm:$0xff]
    %v1883 = vld [vmem:[#allocation8 + $0x98] sm:$0xff]
    %v1884 = vld [vmem:[#allocation8 + $0xa0] sm:$0xff]
    %v1885 = vld [vmem:[#allocation8 + $0xa8] sm:$0xff]
    %v1886 = vld [vmem:[#allocation8 + $0xb0] sm:$0xff]
    %v1887 = vld [vmem:[#allocation8 + $0xb8] sm:$0xff]
    %v1888 = vld [vmem:[#allocation8 + $0xc0] sm:$0xff]
    %v1889 = vld [vmem:[#allocation8 + $0xc8] sm:$0xff]
    %v1890 = vld [vmem:[#allocation8 + $0xd0] sm:$0xff]
    %v1891 = vld [vmem:[#allocation8 + $0xd8] sm:$0xff]
    %v1892 = vld [vmem:[#allocation8 + $0xe0] sm:$0xff]
    %v1893 = vld [vmem:[#allocation8 + $0xe8] sm:$0xff]
    %v1894 = vld [vmem:[#allocation8 + $0xf0] sm:$0xff]
    %v1895 = vld [vmem:[#allocation8 + $0xf8] sm:$0xff]
    %v1896 = vld [vmem:[#allocation8 + $0x100] sm:$0xff]
    %v1897 = vld [vmem:[#allocation8 + $0x108] sm:$0xff]
    %v1898 = vld [vmem:[#allocation8 + $0x110] sm:$0xff]
    %v1899 = vld [vmem:[#allocation8 + $0x118] sm:$0xff]
    %v1900 = vld [vmem:[#allocation8 + $0x120] sm:$0xff]
    %v1901 = vld [vmem:[#allocation8 + $0x128] sm:$0xff]
    %v1902 = vld [vmem:[#allocation8 + $0x130] sm:$0xff]
    %v1903 = vld [vmem:[#allocation8 + $0x138] sm:$0xff]
    %v1904 = vld [vmem:[#allocation8 + $0x140] sm:$0xff]
    %v1905 = vld [vmem:[#allocation8 + $0x148] sm:$0xff]
    %v1906 = vld [vmem:[#allocation8 + $0x150] sm:$0xff]
    %v1907 = vld [vmem:[#allocation8 + $0x158] sm:$0xff]
    %v1908 = vld [vmem:[#allocation8 + $0x160] sm:$0xff]
    %v1909 = vld [vmem:[#allocation8 + $0x168] sm:$0xff]
    %v1910 = vld [vmem:[#allocation8 + $0x170] sm:$0xff]
    %v1911 = vld [vmem:[#allocation8 + $0x178] sm:$0xff]
    %v1912 = vld [vmem:[#allocation8 + $0x180] sm:$0xff]
    %v1913 = vld [vmem:[#allocation8 + $0x188] sm:$0xff]
    %v1914 = vld [vmem:[#allocation8 + $0x190] sm:$0xff]
    %v1915 = vld [vmem:[#allocation8 + $0x198] sm:$0xff]
    %v1916 = vld [vmem:[#allocation8 + $0x1a0] sm:$0xff]
    %v1917 = vld [vmem:[#allocation8 + $0x1a8] sm:$0xff]
    %v1918 = vld [vmem:[#allocation8 + $0x1b0] sm:$0xff]
    %v1919 = vld [vmem:[#allocation8 + $0x1b8] sm:$0xff]
    %v1920 = vld [vmem:[#allocation8 + $0x1c0] sm:$0xff]
    %v1921 = vld [vmem:[#allocation8 + $0x1c8] sm:$0xff]
    %v1922 = vld [vmem:[#allocation8 + $0x1d0] sm:$0xff]
    %v1923 = vld [vmem:[#allocation8 + $0x1d8] sm:$0xff]
    %v1924 = vld [vmem:[#allocation8 + $0x1e0] sm:$0xff]
    %v1925 = vld [vmem:[#allocation8 + $0x1e8] sm:$0xff]
    %v1926 = vld [vmem:[#allocation8 + $0x1f0] sm:$0xff]
    %v1927 = vld [vmem:[#allocation8 + $0x1f8] sm:$0xff]
    %1928 = vmatprep.subr.mxu0 %v1925
    %1929 = vmatpush1.msra.mxu0 %v1924
    %1930 = vmatprep.subr.mxu0 %v1921
    %1931 = vmatpush1.msra.mxu0 %v1920
    %1932 = vmatprep.subr.mxu0 %v1917
    %1933 = vmatpush1.msra.mxu0 %v1916
    %1934 = vmatprep.subr.mxu0 %v1913
    %1935 = vmatpush1.msra.mxu0 %v1912
    %1936 = vmatprep.subr.mxu0 %v1909
    %1937 = vmatpush1.msra.mxu0 %v1908
    %1938 = vmatprep.subr.mxu0 %v1905
    %1939 = vmatpush1.msra.mxu0 %v1904
    %1940 = vmatprep.subr.mxu0 %v1901
    %1941 = vmatpush1.msra.mxu0 %v1900
    %1942 = vmatprep.subr.mxu0 %v1897
    %1943 = vmatpush1.msra.mxu0 %v1896
    %1944 = vmatprep.subr.mxu0 %v1893
    %1945 = vmatpush1.msra.mxu0 %v1892
    %1946 = vmatprep.subr.mxu0 %v1889
    %1947 = vmatpush1.msra.mxu0 %v1888
    %1948 = vmatprep.subr.mxu0 %v1885
    %1949 = vmatpush1.msra.mxu0 %v1884
    %1950 = vmatprep.subr.mxu0 %v1881
    %1951 = vmatpush1.msra.mxu0 %v1880
    %1952 = vmatprep.subr.mxu0 %v1877
    %1953 = vmatpush1.msra.mxu0 %v1876
    %1954 = vmatprep.subr.mxu0 %v1873
    %1955 = vmatpush1.msra.mxu0 %v1872
    %1956 = vmatprep.subr.mxu0 %v1869
    %1957 = vmatpush1.msra.mxu0 %v1868
    %1958 = vmatprep.subr.mxu0 %v1865
    %1959 = vmatpush1.msra.mxu0 %v1864
    %1960 = vmatprep.subr.mxu0 0.0
    %1961 = vmatpush2.msra.mxu0 0.0
    %1962 = vmatprep.subr.mxu0 0.0
    %1963 = vmatpush2.msra.mxu0 0.0
    %1964 = vmatprep.subr.mxu0 0.0
    %1965 = vmatpush2.msra.mxu0 0.0
    %1966 = vmatprep.subr.mxu0 0.0
    %1967 = vmatpush2.msra.mxu0 0.0
    %1968 = vmatprep.subr.mxu0 0.0
    %1969 = vmatpush2.msra.mxu0 0.0
    %1970 = vmatprep.subr.mxu0 0.0
    %1971 = vmatpush2.msra.mxu0 0.0
    %1972 = vmatprep.subr.mxu0 0.0
    %1973 = vmatpush2.msra.mxu0 0.0
    %1974 = vmatprep.subr.mxu0 0.0
    %1975 = vmatpush2.msra.mxu0 0.0
    %1976 = vmatprep.subr.mxu0 0.0
    %1977 = vmatpush2.msra.mxu0 0.0
    %1978 = vmatprep.subr.mxu0 0.0
    %1979 = vmatpush2.msra.mxu0 0.0
    %1980 = vmatprep.subr.mxu0 0.0
    %1981 = vmatpush2.msra.mxu0 0.0
    %1982 = vmatprep.subr.mxu0 0.0
    %1983 = vmatpush2.msra.mxu0 0.0
    %1984 = vmatprep.subr.mxu0 0.0
    %1985 = vmatpush2.msra.mxu0 0.0
    %1986 = vmatprep.subr.mxu0 0.0
    %1987 = vmatpush2.msra.mxu0 0.0
    %1988 = vmatprep.subr.mxu0 0.0
    %1989 = vmatpush2.msra.mxu0 0.0
    %1990 = vmatprep.subr.mxu0 0.0
    %1991 = vmatpush2.msra.mxu0 0.0
    %1992 = vmatprep.mubr.f32.mxu0 0.0
    %1993 = vmatmul.mubr.f32.gmra.mxu0 %v1856
    %v1994 = vpop.f32.mrf.mxu0
    %v1995 = vadd.f32 0.0, %v1994
    %v1996 = vpop.f32.mrf.mxu0
    %v1997 = vadd.f32 0.0, %v1996
    %1998 = vdwg.mxu0
    %1999 = vmatprep.subr.mxu0 %v1927
    %2000 = vmatpush1.msra.mxu0 %v1926
    %2001 = vmatprep.subr.mxu0 %v1923
    %2002 = vmatpush1.msra.mxu0 %v1922
    %2003 = vmatprep.subr.mxu0 %v1919
    %2004 = vmatpush1.msra.mxu0 %v1918
    %2005 = vmatprep.subr.mxu0 %v1915
    %2006 = vmatpush1.msra.mxu0 %v1914
    %2007 = vmatprep.subr.mxu0 %v1911
    %2008 = vmatpush1.msra.mxu0 %v1910
    %2009 = vmatprep.subr.mxu0 %v1907
    %2010 = vmatpush1.msra.mxu0 %v1906
    %2011 = vmatprep.subr.mxu0 %v1903
    %2012 = vmatpush1.msra.mxu0 %v1902
    %2013 = vmatprep.subr.mxu0 %v1899
    %2014 = vmatpush1.msra.mxu0 %v1898
    %2015 = vmatprep.subr.mxu0 %v1895
    %2016 = vmatpush1.msra.mxu0 %v1894
    %2017 = vmatprep.subr.mxu0 %v1891
    %2018 = vmatpush1.msra.mxu0 %v1890
    %2019 = vmatprep.subr.mxu0 %v1887
    %2020 = vmatpush1.msra.mxu0 %v1886
    %2021 = vmatprep.subr.mxu0 %v1883
    %2022 = vmatpush1.msra.mxu0 %v1882
    %2023 = vmatprep.subr.mxu0 %v1879
    %2024 = vmatpush1.msra.mxu0 %v1878
    %2025 = vmatprep.subr.mxu0 %v1875
    %2026 = vmatpush1.msra.mxu0 %v1874
    %2027 = vmatprep.subr.mxu0 %v1871
    %2028 = vmatpush1.msra.mxu0 %v1870
    %2029 = vmatprep.subr.mxu0 %v1867
    %2030 = vmatpush1.msra.mxu0 %v1866
    %2031 = vmatprep.subr.mxu0 0.0
    %2032 = vmatpush2.msra.mxu0 0.0
    %2033 = vmatprep.subr.mxu0 0.0
    %2034 = vmatpush2.msra.mxu0 0.0
    %2035 = vmatprep.subr.mxu0 0.0
    %2036 = vmatpush2.msra.mxu0 0.0
    %2037 = vmatprep.subr.mxu0 0.0
    %2038 = vmatpush2.msra.mxu0 0.0
    %2039 = vmatprep.subr.mxu0 0.0
    %2040 = vmatpush2.msra.mxu0 0.0
    %2041 = vmatprep.subr.mxu0 0.0
    %2042 = vmatpush2.msra.mxu0 0.0
    %2043 = vmatprep.subr.mxu0 0.0
    %2044 = vmatpush2.msra.mxu0 0.0
    %2045 = vmatprep.subr.mxu0 0.0
    %2046 = vmatpush2.msra.mxu0 0.0
    %2047 = vmatprep.subr.mxu0 0.0
    %2048 = vmatpush2.msra.mxu0 0.0
    %2049 = vmatprep.subr.mxu0 0.0
    %2050 = vmatpush2.msra.mxu0 0.0
    %2051 = vmatprep.subr.mxu0 0.0
    %2052 = vmatpush2.msra.mxu0 0.0
    %2053 = vmatprep.subr.mxu0 0.0
    %2054 = vmatpush2.msra.mxu0 0.0
    %2055 = vmatprep.subr.mxu0 0.0
    %2056 = vmatpush2.msra.mxu0 0.0
    %2057 = vmatprep.subr.mxu0 0.0
    %2058 = vmatpush2.msra.mxu0 0.0
    %2059 = vmatprep.subr.mxu0 0.0
    %2060 = vmatpush2.msra.mxu0 0.0
    %2061 = vmatprep.subr.mxu0 0.0
    %2062 = vmatpush2.msra.mxu0 0.0
    %2063 = vmatprep.mubr.f32.mxu0 0.0
    %2064 = vmatmul.mubr.f32.gmra.mxu0 %v1856
    %v2065 = vpop.f32.mrf.mxu0
    %v2066 = vadd.f32 0.0, %v2065
    %v2067 = vpop.f32.mrf.mxu0
    %v2068 = vadd.f32 0.0, %v2067
    %2069 = vdwg.mxu0
    %v2070 = vadd.f32 %v1860, %v1995
    %v2071 = vadd.f32 %v1861, %v1997
    %v2072 = vadd.f32 %v1862, %v2066
    %v2073 = vadd.f32 %v1863, %v2068
    %v2074 = vxor.u32 %v2070, 2147483648
    %v2075 = vmul.f32 %v2074, 1.442695
    %v2076 = vpow.pop %v2075
    %v2077 = vadd.f32 %v2076, 1.0
    %v2078 = vrcp.pop %v2077
    %v2079 = vmul.f32 1.0, %v2078
    %v2080 = vxor.u32 %v2071, 2147483648
    %v2081 = vmul.f32 %v2080, 1.442695
    %v2082 = vpow.pop %v2081
    %v2083 = vadd.f32 %v2082, 1.0
    %v2084 = vrcp.pop %v2083
    %v2085 = vmul.f32 1.0, %v2084
    %v2086 = vtanh.pop %v2072
    %v2087 = vxor.u32 %v2073, 2147483648
    %v2088 = vmul.f32 %v2087, 1.442695
    %v2089 = vpow.pop %v2088
    %v2090 = vadd.f32 %v2089, 1.0
    %v2091 = vrcp.pop %v2090
    %v2092 = vmul.f32 1.0, %v2091
    %v2093 = vmul.f32 %v2085, %v1854
    %v2094 = vmul.f32 %v2079, %v2086
    %v2095 = vadd.f32 %v2093, %v2094
    %v2096 = vtanh.pop %v2095
    %v2097 = vmul.f32 %v2092, %v2096
    %s2098 = scalar_lea.vmem [#allocation9], 48
    %2099 = vst [vmem:[%s2098] sm:$0xff] %v2097
    %s2100 = scalar_lea.vmem [#allocation2], 224
    %v2101 = vld [vmem:[%s2100] sm:$0xff]
    %v2102 = vld [vmem:[%s2100 + $0x8] sm:$0xff]
    %v2103 = vld [vmem:[%s2100 + $0x10] sm:$0xff]
    %v2104 = vld [vmem:[%s2100 + $0x18] sm:$0xff]
    %v2105 = vld [vmem:[#allocation8] sm:$0xff]
    %v2106 = vld [vmem:[#allocation8 + $0x8] sm:$0xff]
    %v2107 = vld [vmem:[#allocation8 + $0x10] sm:$0xff]
    %v2108 = vld [vmem:[#allocation8 + $0x18] sm:$0xff]
    %v2109 = vld [vmem:[#allocation8 + $0x20] sm:$0xff]
    %v2110 = vld [vmem:[#allocation8 + $0x28] sm:$0xff]
    %v2111 = vld [vmem:[#allocation8 + $0x30] sm:$0xff]
    %v2112 = vld [vmem:[#allocation8 + $0x38] sm:$0xff]
    %v2113 = vld [vmem:[#allocation8 + $0x40] sm:$0xff]
    %v2114 = vld [vmem:[#allocation8 + $0x48] sm:$0xff]
    %v2115 = vld [vmem:[#allocation8 + $0x50] sm:$0xff]
    %v2116 = vld [vmem:[#allocation8 + $0x58] sm:$0xff]
    %v2117 = vld [vmem:[#allocation8 + $0x60] sm:$0xff]
    %v2118 = vld [vmem:[#allocation8 + $0x68] sm:$0xff]
    %v2119 = vld [vmem:[#allocation8 + $0x70] sm:$0xff]
    %v2120 = vld [vmem:[#allocation8 + $0x78] sm:$0xff]
    %v2121 = vld [vmem:[#allocation8 + $0x80] sm:$0xff]
    %v2122 = vld [vmem:[#allocation8 + $0x88] sm:$0xff]
    %v2123 = vld [vmem:[#allocation8 + $0x90] sm:$0xff]
    %v2124 = vld [vmem:[#allocation8 + $0x98] sm:$0xff]
    %v2125 = vld [vmem:[#allocation8 + $0xa0] sm:$0xff]
    %v2126 = vld [vmem:[#allocation8 + $0xa8] sm:$0xff]
    %v2127 = vld [vmem:[#allocation8 + $0xb0] sm:$0xff]
    %v2128 = vld [vmem:[#allocation8 + $0xb8] sm:$0xff]
    %v2129 = vld [vmem:[#allocation8 + $0xc0] sm:$0xff]
    %v2130 = vld [vmem:[#allocation8 + $0xc8] sm:$0xff]
    %v2131 = vld [vmem:[#allocation8 + $0xd0] sm:$0xff]
    %v2132 = vld [vmem:[#allocation8 + $0xd8] sm:$0xff]
    %v2133 = vld [vmem:[#allocation8 + $0xe0] sm:$0xff]
    %v2134 = vld [vmem:[#allocation8 + $0xe8] sm:$0xff]
    %v2135 = vld [vmem:[#allocation8 + $0xf0] sm:$0xff]
    %v2136 = vld [vmem:[#allocation8 + $0xf8] sm:$0xff]
    %v2137 = vld [vmem:[#allocation8 + $0x100] sm:$0xff]
    %v2138 = vld [vmem:[#allocation8 + $0x108] sm:$0xff]
    %v2139 = vld [vmem:[#allocation8 + $0x110] sm:$0xff]
    %v2140 = vld [vmem:[#allocation8 + $0x118] sm:$0xff]
    %v2141 = vld [vmem:[#allocation8 + $0x120] sm:$0xff]
    %v2142 = vld [vmem:[#allocation8 + $0x128] sm:$0xff]
    %v2143 = vld [vmem:[#allocation8 + $0x130] sm:$0xff]
    %v2144 = vld [vmem:[#allocation8 + $0x138] sm:$0xff]
    %v2145 = vld [vmem:[#allocation8 + $0x140] sm:$0xff]
    %v2146 = vld [vmem:[#allocation8 + $0x148] sm:$0xff]
    %v2147 = vld [vmem:[#allocation8 + $0x150] sm:$0xff]
    %v2148 = vld [vmem:[#allocation8 + $0x158] sm:$0xff]
    %v2149 = vld [vmem:[#allocation8 + $0x160] sm:$0xff]
    %v2150 = vld [vmem:[#allocation8 + $0x168] sm:$0xff]
    %v2151 = vld [vmem:[#allocation8 + $0x170] sm:$0xff]
    %v2152 = vld [vmem:[#allocation8 + $0x178] sm:$0xff]
    %v2153 = vld [vmem:[#allocation8 + $0x180] sm:$0xff]
    %v2154 = vld [vmem:[#allocation8 + $0x188] sm:$0xff]
    %v2155 = vld [vmem:[#allocation8 + $0x190] sm:$0xff]
    %v2156 = vld [vmem:[#allocation8 + $0x198] sm:$0xff]
    %v2157 = vld [vmem:[#allocation8 + $0x1a0] sm:$0xff]
    %v2158 = vld [vmem:[#allocation8 + $0x1a8] sm:$0xff]
    %v2159 = vld [vmem:[#allocation8 + $0x1b0] sm:$0xff]
    %v2160 = vld [vmem:[#allocation8 + $0x1b8] sm:$0xff]
    %v2161 = vld [vmem:[#allocation8 + $0x1c0] sm:$0xff]
    %v2162 = vld [vmem:[#allocation8 + $0x1c8] sm:$0xff]
    %v2163 = vld [vmem:[#allocation8 + $0x1d0] sm:$0xff]
    %v2164 = vld [vmem:[#allocation8 + $0x1d8] sm:$0xff]
    %v2165 = vld [vmem:[#allocation8 + $0x1e0] sm:$0xff]
    %v2166 = vld [vmem:[#allocation8 + $0x1e8] sm:$0xff]
    %v2167 = vld [vmem:[#allocation8 + $0x1f0] sm:$0xff]
    %v2168 = vld [vmem:[#allocation8 + $0x1f8] sm:$0xff]
    %2169 = vmatprep.subr.mxu0 %v2166
    %2170 = vmatpush1.msra.mxu0 %v2165
    %2171 = vmatprep.subr.mxu0 %v2162
    %2172 = vmatpush1.msra.mxu0 %v2161
    %2173 = vmatprep.subr.mxu0 %v2158
    %2174 = vmatpush1.msra.mxu0 %v2157
    %2175 = vmatprep.subr.mxu0 %v2154
    %2176 = vmatpush1.msra.mxu0 %v2153
    %2177 = vmatprep.subr.mxu0 %v2150
    %2178 = vmatpush1.msra.mxu0 %v2149
    %2179 = vmatprep.subr.mxu0 %v2146
    %2180 = vmatpush1.msra.mxu0 %v2145
    %2181 = vmatprep.subr.mxu0 %v2142
    %2182 = vmatpush1.msra.mxu0 %v2141
    %2183 = vmatprep.subr.mxu0 %v2138
    %2184 = vmatpush1.msra.mxu0 %v2137
    %2185 = vmatprep.subr.mxu0 %v2134
    %2186 = vmatpush1.msra.mxu0 %v2133
    %2187 = vmatprep.subr.mxu0 %v2130
    %2188 = vmatpush1.msra.mxu0 %v2129
    %2189 = vmatprep.subr.mxu0 %v2126
    %2190 = vmatpush1.msra.mxu0 %v2125
    %2191 = vmatprep.subr.mxu0 %v2122
    %2192 = vmatpush1.msra.mxu0 %v2121
    %2193 = vmatprep.subr.mxu0 %v2118
    %2194 = vmatpush1.msra.mxu0 %v2117
    %2195 = vmatprep.subr.mxu0 %v2114
    %2196 = vmatpush1.msra.mxu0 %v2113
    %2197 = vmatprep.subr.mxu0 %v2110
    %2198 = vmatpush1.msra.mxu0 %v2109
    %2199 = vmatprep.subr.mxu0 %v2106
    %2200 = vmatpush1.msra.mxu0 %v2105
    %2201 = vmatprep.subr.mxu0 0.0
    %2202 = vmatpush2.msra.mxu0 0.0
    %2203 = vmatprep.subr.mxu0 0.0
    %2204 = vmatpush2.msra.mxu0 0.0
    %2205 = vmatprep.subr.mxu0 0.0
    %2206 = vmatpush2.msra.mxu0 0.0
    %2207 = vmatprep.subr.mxu0 0.0
    %2208 = vmatpush2.msra.mxu0 0.0
    %2209 = vmatprep.subr.mxu0 0.0
    %2210 = vmatpush2.msra.mxu0 0.0
    %2211 = vmatprep.subr.mxu0 0.0
    %2212 = vmatpush2.msra.mxu0 0.0
    %2213 = vmatprep.subr.mxu0 0.0
    %2214 = vmatpush2.msra.mxu0 0.0
    %2215 = vmatprep.subr.mxu0 0.0
    %2216 = vmatpush2.msra.mxu0 0.0
    %2217 = vmatprep.subr.mxu0 0.0
    %2218 = vmatpush2.msra.mxu0 0.0
    %2219 = vmatprep.subr.mxu0 0.0
    %2220 = vmatpush2.msra.mxu0 0.0
    %2221 = vmatprep.subr.mxu0 0.0
    %2222 = vmatpush2.msra.mxu0 0.0
    %2223 = vmatprep.subr.mxu0 0.0
    %2224 = vmatpush2.msra.mxu0 0.0
    %2225 = vmatprep.subr.mxu0 0.0
    %2226 = vmatpush2.msra.mxu0 0.0
    %2227 = vmatprep.subr.mxu0 0.0
    %2228 = vmatpush2.msra.mxu0 0.0
    %2229 = vmatprep.subr.mxu0 0.0
    %2230 = vmatpush2.msra.mxu0 0.0
    %2231 = vmatprep.subr.mxu0 0.0
    %2232 = vmatpush2.msra.mxu0 0.0
    %2233 = vmatprep.mubr.f32.mxu0 0.0
    %2234 = vmatmul.mubr.f32.gmra.mxu0 %v2097
    %v2235 = vpop.f32.mrf.mxu0
    %v2236 = vadd.f32 0.0, %v2235
    %v2237 = vpop.f32.mrf.mxu0
    %v2238 = vadd.f32 0.0, %v2237
    %2239 = vdwg.mxu0
    %2240 = vmatprep.subr.mxu0 %v2168
    %2241 = vmatpush1.msra.mxu0 %v2167
    %2242 = vmatprep.subr.mxu0 %v2164
    %2243 = vmatpush1.msra.mxu0 %v2163
    %2244 = vmatprep.subr.mxu0 %v2160
    %2245 = vmatpush1.msra.mxu0 %v2159
    %2246 = vmatprep.subr.mxu0 %v2156
    %2247 = vmatpush1.msra.mxu0 %v2155
    %2248 = vmatprep.subr.mxu0 %v2152
    %2249 = vmatpush1.msra.mxu0 %v2151
    %2250 = vmatprep.subr.mxu0 %v2148
    %2251 = vmatpush1.msra.mxu0 %v2147
    %2252 = vmatprep.subr.mxu0 %v2144
    %2253 = vmatpush1.msra.mxu0 %v2143
    %2254 = vmatprep.subr.mxu0 %v2140
    %2255 = vmatpush1.msra.mxu0 %v2139
    %2256 = vmatprep.subr.mxu0 %v2136
    %2257 = vmatpush1.msra.mxu0 %v2135
    %2258 = vmatprep.subr.mxu0 %v2132
    %2259 = vmatpush1.msra.mxu0 %v2131
    %2260 = vmatprep.subr.mxu0 %v2128
    %2261 = vmatpush1.msra.mxu0 %v2127
    %2262 = vmatprep.subr.mxu0 %v2124
    %2263 = vmatpush1.msra.mxu0 %v2123
    %2264 = vmatprep.subr.mxu0 %v2120
    %2265 = vmatpush1.msra.mxu0 %v2119
    %2266 = vmatprep.subr.mxu0 %v2116
    %2267 = vmatpush1.msra.mxu0 %v2115
    %2268 = vmatprep.subr.mxu0 %v2112
    %2269 = vmatpush1.msra.mxu0 %v2111
    %2270 = vmatprep.subr.mxu0 %v2108
    %2271 = vmatpush1.msra.mxu0 %v2107
    %2272 = vmatprep.subr.mxu0 0.0
    %2273 = vmatpush2.msra.mxu0 0.0
    %2274 = vmatprep.subr.mxu0 0.0
    %2275 = vmatpush2.msra.mxu0 0.0
    %2276 = vmatprep.subr.mxu0 0.0
    %2277 = vmatpush2.msra.mxu0 0.0
    %2278 = vmatprep.subr.mxu0 0.0
    %2279 = vmatpush2.msra.mxu0 0.0
    %2280 = vmatprep.subr.mxu0 0.0
    %2281 = vmatpush2.msra.mxu0 0.0
    %2282 = vmatprep.subr.mxu0 0.0
    %2283 = vmatpush2.msra.mxu0 0.0
    %2284 = vmatprep.subr.mxu0 0.0
    %2285 = vmatpush2.msra.mxu0 0.0
    %2286 = vmatprep.subr.mxu0 0.0
    %2287 = vmatpush2.msra.mxu0 0.0
    %2288 = vmatprep.subr.mxu0 0.0
    %2289 = vmatpush2.msra.mxu0 0.0
    %2290 = vmatprep.subr.mxu0 0.0
    %2291 = vmatpush2.msra.mxu0 0.0
    %2292 = vmatprep.subr.mxu0 0.0
    %2293 = vmatpush2.msra.mxu0 0.0
    %2294 = vmatprep.subr.mxu0 0.0
    %2295 = vmatpush2.msra.mxu0 0.0
    %2296 = vmatprep.subr.mxu0 0.0
    %2297 = vmatpush2.msra.mxu0 0.0
    %2298 = vmatprep.subr.mxu0 0.0
    %2299 = vmatpush2.msra.mxu0 0.0
    %2300 = vmatprep.subr.mxu0 0.0
    %2301 = vmatpush2.msra.mxu0 0.0
    %2302 = vmatprep.subr.mxu0 0.0
    %2303 = vmatpush2.msra.mxu0 0.0
    %2304 = vmatprep.mubr.f32.mxu0 0.0
    %2305 = vmatmul.mubr.f32.gmra.mxu0 %v2097
    %v2306 = vpop.f32.mrf.mxu0
    %v2307 = vadd.f32 0.0, %v2306
    %v2308 = vpop.f32.mrf.mxu0
    %v2309 = vadd.f32 0.0, %v2308
    %2310 = vdwg.mxu0
    %v2311 = vadd.f32 %v2101, %v2236
    %v2312 = vadd.f32 %v2102, %v2238
    %v2313 = vadd.f32 %v2103, %v2307
    %v2314 = vadd.f32 %v2104, %v2309
    %v2315 = vxor.u32 %v2311, 2147483648
    %v2316 = vmul.f32 %v2315, 1.442695
    %v2317 = vpow.pop %v2316
    %v2318 = vadd.f32 %v2317, 1.0
    %v2319 = vrcp.pop %v2318
    %v2320 = vmul.f32 1.0, %v2319
    %v2321 = vxor.u32 %v2312, 2147483648
    %v2322 = vmul.f32 %v2321, 1.442695
    %v2323 = vpow.pop %v2322
    %v2324 = vadd.f32 %v2323, 1.0
    %v2325 = vrcp.pop %v2324
    %v2326 = vmul.f32 1.0, %v2325
    %v2327 = vtanh.pop %v2313
    %v2328 = vxor.u32 %v2314, 2147483648
    %v2329 = vmul.f32 %v2328, 1.442695
    %v2330 = vpow.pop %v2329
    %v2331 = vadd.f32 %v2330, 1.0
    %v2332 = vrcp.pop %v2331
    %v2333 = vmul.f32 1.0, %v2332
    %v2334 = vmul.f32 %v2326, %v2095
    %v2335 = vmul.f32 %v2320, %v2327
    %v2336 = vadd.f32 %v2334, %v2335
    %v2337 = vtanh.pop %v2336
    %v2338 = vmul.f32 %v2333, %v2337
    %s2339 = scalar_lea.vmem [#allocation9], 56
    %2340 = vst [vmem:[%s2339] sm:$0xff] %v2338
    %2341 = vst [vmem:[#allocation10] sm:$0xff] %v2338
    %2342 = vst [vmem:[#allocation12] sm:$0xff] %v2336
    // Predicated region
    $region30: #{tpu_custom_call.1} parent=1 // pred_check
      _
    $region31: #{tpu_custom_call.1} parent=1 // pred_check_branch
      %2344 = sbr.rel (0) target = $region33
    $region32: #{tpu_custom_call.1} parent=1 // pred_region
      %s2346 = ssub.s32 1024, 1024
      %2347 = vsyncadd [#allocation5], %s2346
      %s2348 = sshll.u32 [#allocation9], 4
      %s2349 = int_to_ptr.vmem [resolvable:$true] %s2348
      %2354 = dma.vmem_to_hbm [thread:$0]  %s2349, 1024, %s4, [#allocation5], 128, 128, 8
    $region33: #{tpu_custom_call.1} parent=1 // pred_fallthru
      _
    // Predicated region
    $region34: #{tpu_custom_call.1} parent=1 // pred_check
      _
    $region35: #{tpu_custom_call.1} parent=1 // pred_check_branch
      %2356 = sbr.rel (0) target = $region37
    $region36: #{tpu_custom_call.1} parent=1 // pred_region
      %s2358 = ssub.s32 128, 128
      %2359 = vsyncadd [#allocation11], %s2358
      %s2361 = sshll.u32 [#allocation10], 4
      %s2362 = int_to_ptr.vmem [resolvable:$true] %s2361
      %2364 = dma.vmem_to_hbm [thread:$0]  %s2362, 128, %s5, [#allocation11]
    $region37: #{tpu_custom_call.1} parent=1 // pred_fallthru
      _
    // Predicated region
    $region38: #{tpu_custom_call.1} parent=1 // pred_check
      _
    $region39: #{tpu_custom_call.1} parent=1 // pred_check_branch
      %2366 = sbr.rel (0) target = $region41
    $region40: #{tpu_custom_call.1} parent=1 // pred_region
      %s2368 = ssub.s32 128, 128
      %2369 = vsyncadd [#allocation11], %s2368
      %s2371 = sshll.u32 [#allocation12], 4
      %s2372 = int_to_ptr.vmem [resolvable:$true] %s2371
      %2374 = dma.vmem_to_hbm [thread:$0]  %s2372, 128, %s6, [#allocation11]
    $region41: #{tpu_custom_call.1} parent=1 // pred_fallthru
      _
    // Predicated region
    $region42: #{tpu_custom_call.1} parent=1 // pred_check
      _
    $region43: #{tpu_custom_call.1} parent=1 // pred_check_branch
      %2376 = sbr.rel (0) target = $region45
    $region44: #{tpu_custom_call.1} parent=1 // pred_region
      %2377 = dma.done [#allocation5], 1024
    $region45: #{tpu_custom_call.1} parent=1 // pred_fallthru
      _
    // Predicated region
    $region46: #{tpu_custom_call.1} parent=1 // pred_check
      _
    $region47: #{tpu_custom_call.1} parent=1 // pred_check_branch
      %2379 = sbr.rel (0) target = $region49
    $region48: #{tpu_custom_call.1} parent=1 // pred_region
      %2380 = dma.done [#allocation11], 128
    $region49: #{tpu_custom_call.1} parent=1 // pred_fallthru
      _
    // Predicated region
    $region50: #{tpu_custom_call.1} parent=1 // pred_check
      _
    $region51: #{tpu_custom_call.1} parent=1 // pred_check_branch
      %2382 = sbr.rel (0) target = $region53
    $region52: #{tpu_custom_call.1} parent=1 // pred_region
      %2383 = dma.done [#allocation11], 128
    $region53: #{tpu_custom_call.1} parent=1 // pred_fallthru
      _
    %2384 = vsyncpa [#allocation4], 1
    %2385 = vsyncpa [#allocation7], 1
    %2386 = vsyncpa [#allocation5], 1
    %2387 = vsyncpa [#allocation11], 1

</llo_original>
